<compile_context>
chip_gen: v7x
topology: tpu7x:2x2x1
jax: 0.10.0
libtpu: 0.0.40
codegen_flags: <defaults>
</compile_context>

<pallas_src>
import functools

import jax
import jax.numpy as jnp
from jax.experimental import pallas as pl
from jax.experimental.pallas import tpu as pltpu


def _gnn_kernel(step,
                a_in_ref, a_out_ref, h_ref,
                w_ein_ref, b_ein_ref, w_eout_ref, b_eout_ref,
                b_iah_ref, b_oah_ref,
                w_ih_in_ref, w_ih_out_ref, w_hh_ref,
                b_ri_ref, b_ihn_ref, b_hhn_ref,
                out_ref):
    # a_in_ref/a_out_ref: (Bt, N, N)   h_ref/out_ref: (Bt, N, H)
    Bt, N, H = h_ref.shape
    M = Bt * N
    f32 = jnp.float32
    mm_dtype = w_ein_ref.dtype          # MXU input dtype (f32 or bf16)

    a_in = a_in_ref[...]                # (Bt, N, N) — loaded once, reused per step
    a_out = a_out_ref[...]

    # carry hidden in f32 across the fused recurrence
    h = h_ref[...].astype(f32).reshape(M, H)

    # static (short) recurrence — unrolled; weights and A stay resident in VMEM
    for _ in range(step):
        h_mm = h.astype(mm_dtype)

        # linear_edge_in / linear_edge_out on the flattened (Bt*N, H) operand
        edge_in = jnp.dot(h_mm, w_ein_ref[...],
                          preferred_element_type=f32) + b_ein_ref[...]
        edge_out = jnp.dot(h_mm, w_eout_ref[...],
                           preferred_element_type=f32) + b_eout_ref[...]

        # per-graph adjacency matmuls (batched einsum; tiny N x N tiles)
        input_in = jnp.einsum(
            'bnm,bmh->bnh', a_in, edge_in.astype(mm_dtype).reshape(Bt, N, H),
            preferred_element_type=f32).reshape(M, H) + b_iah_ref[...]
        input_out = jnp.einsum(
            'bnm,bmh->bnh', a_out, edge_out.astype(mm_dtype).reshape(Bt, N, H),
            preferred_element_type=f32).reshape(M, H) + b_oah_ref[...]

        x_in = input_in.astype(mm_dtype)
        x_out = input_out.astype(mm_dtype)

        def gi_pre(g):
            # gi gate-g = input_in @ W_in_g + input_out @ W_out_g  (concat-free)
            return (jnp.dot(x_in, w_ih_in_ref[g], preferred_element_type=f32) +
                    jnp.dot(x_out, w_ih_out_ref[g], preferred_element_type=f32))

        # r / i gates: gi_g + gh_g with biases pre-summed wrapper-side
        r_pre = (gi_pre(0) +
                 jnp.dot(h_mm, w_hh_ref[0], preferred_element_type=f32) +
                 b_ri_ref[0])
        z_pre = (gi_pre(1) +
                 jnp.dot(h_mm, w_hh_ref[1], preferred_element_type=f32) +
                 b_ri_ref[1])
        # n gate needs i_n and h_n separately (reset gate multiplies h_n only)
        i_n = gi_pre(2) + b_ihn_ref[...]
        h_n = (jnp.dot(h_mm, w_hh_ref[2], preferred_element_type=f32) +
               b_hhn_ref[...])

        resetgate = jax.nn.sigmoid(r_pre)
        inputgate = jax.nn.sigmoid(z_pre)
        newgate = jnp.tanh(i_n + resetgate * h_n)
        h = newgate + inputgate * (h - newgate)

    out_ref[...] = h.reshape(Bt, N, H).astype(out_ref.dtype)


def _largest_divisor_leq(n, cap):
    cap = max(1, min(n, cap))
    for d in range(cap, 0, -1):
        if n % d == 0:
            return d
    return 1


def gnn_forward_pallas(A, hidden, params, step=1,
                       compute_dtype=jnp.float32, target_rows=256):
    """Runs `step` fused GNN cells. A: (B, N, 2N), hidden: (B, N, H)."""
    B, N, H = hidden.shape
    assert A.shape == (B, N, 2 * N)
    cdt = compute_dtype

    # --- wrapper-side layout plumbing (all lane-axis splits happen here) ----
    A_in = A[:, :, :N].astype(cdt)           # (B, N, N)
    A_out = A[:, :, N:2 * N].astype(cdt)     # (B, N, N)

    w_ein_t = params["w_in"].T.astype(cdt)    # (H, H)
    w_eout_t = params["w_out"].T.astype(cdt)  # (H, H)
    b_ein = params["b_in"].reshape(1, H).astype(jnp.float32)
    b_eout = params["b_out"].reshape(1, H).astype(jnp.float32)
    b_iah = params["b_iah"].reshape(1, H).astype(jnp.float32)
    b_oah = params["b_oah"].reshape(1, H).astype(jnp.float32)

    # PyTorch layout: w_ih (3H, 2H) rows = gates [r, i, n], cols = [in | out];
    # w_hh (3H, H).  Pre-split per gate / per half and pre-transpose.
    w_ih = params["w_ih"]
    w_hh = params["w_hh"]
    w_ih_in_t = jnp.stack(
        [w_ih[g * H:(g + 1) * H, :H].T for g in range(3)]).astype(cdt)   # (3,H,H)
    w_ih_out_t = jnp.stack(
        [w_ih[g * H:(g + 1) * H, H:].T for g in range(3)]).astype(cdt)   # (3,H,H)
    w_hh_t = jnp.stack(
        [w_hh[g * H:(g + 1) * H, :].T for g in range(3)]).astype(cdt)    # (3,H,H)

    b_ih = params["b_ih"].astype(jnp.float32)
    b_hh = params["b_hh"].astype(jnp.float32)
    b_ri = (b_ih[:2 * H] + b_hh[:2 * H]).reshape(2, 1, H)   # pre-summed r/i biases
    b_ihn = b_ih[2 * H:].reshape(1, H)
    b_hhn = b_hh[2 * H:].reshape(1, H)

    # --- batch blocking: feed Bt*N rows per grid step to fill the MXU --------
    Bt = _largest_divisor_leq(B, max(1, target_rows // N))
    nb = B // Bt

    def batch_spec(shape_tail):
        nd = len(shape_tail)
        return pl.BlockSpec((Bt,) + shape_tail,
                            lambda b, _nd=nd: (b,) + (0,) * _nd)

    def full_spec(shape):
        nd = len(shape)
        return pl.BlockSpec(shape, lambda b, _nd=nd: (0,) * _nd)

    kernel = functools.partial(_gnn_kernel, int(step))

    return pl.pallas_call(
        kernel,
        out_shape=jax.ShapeDtypeStruct((B, N, H), hidden.dtype),
        grid_spec=pltpu.PrefetchScalarGridSpec(
            num_scalar_prefetch=0,
            grid=(nb,),
            in_specs=[
                batch_spec((N, N)),                 # A_in
                batch_spec((N, N)),                 # A_out
                batch_spec((N, H)),                 # hidden
                full_spec(w_ein_t.shape), full_spec(b_ein.shape),
                full_spec(w_eout_t.shape), full_spec(b_eout.shape),
                full_spec(b_iah.shape), full_spec(b_oah.shape),
                full_spec(w_ih_in_t.shape), full_spec(w_ih_out_t.shape),
                full_spec(w_hh_t.shape),
                full_spec(b_ri.shape), full_spec(b_ihn.shape),
                full_spec(b_hhn.shape),
            ],
            out_specs=batch_spec((N, H)),
        ),
        compiler_params=pltpu.CompilerParams(
            dimension_semantics=("parallel",)),   # megacore sharding on v7x
    )(A_in, A_out, hidden, w_ein_t, b_ein, w_eout_t, b_eout, b_iah, b_oah,
      w_ih_in_t, w_ih_out_t, w_hh_t, b_ri, b_ihn, b_hhn)


# ----------------------------- reference & test ------------------------------

def init_params(key, hidden_size):
    H = hidden_size
    stdv = 1.0 / (H ** 0.5)
    keys = jax.random.split(key, 12)
    u = lambda k, shape: jax.random.uniform(
        k, shape, jnp.float32, minval=-stdv, maxval=stdv)
    return {
        "w_ih": u(keys[0], (3 * H, 2 * H)),
        "w_hh": u(keys[1], (3 * H, H)),
        "b_ih": u(keys[2], (3 * H,)),
        "b_hh": u(keys[3], (3 * H,)),
        "b_iah": u(keys[4], (H,)),
        "b_oah": u(keys[5], (H,)),
        "w_in": u(keys[6], (H, H)),
        "b_in": u(keys[7], (H,)),
        "w_out": u(keys[8], (H, H)),
        "b_out": u(keys[9], (H,)),
    }


def gnn_cell_ref(A, h, p):
    # pure-JAX reference matching the PyTorch GNNCell
    N = A.shape[1]
    H = h.shape[2]
    edge_in = h @ p["w_in"].T + p["b_in"]
    edge_out = h @ p["w_out"].T + p["b_out"]
    input_in = jnp.matmul(A[:, :, :N], edge_in) + p["b_iah"]
    input_out = jnp.matmul(A[:, :, N:2 * N], edge_out) + p["b_oah"]
    inputs = jnp.concatenate([input_in, input_out], axis=2)
    gi = inputs @ p["w_ih"].T + p["b_ih"]
    gh = h @ p["w_hh"].T + p["b_hh"]
    i_r, i_i, i_n = gi[..., :H], gi[..., H:2 * H], gi[..., 2 * H:]
    h_r, h_i, h_n = gh[..., :H], gh[..., H:2 * H], gh[..., 2 * H:]
    resetgate = jax.nn.sigmoid(i_r + h_r)
    inputgate = jax.nn.sigmoid(i_i + h_i)
    newgate = jnp.tanh(i_n + resetgate * h_n)
    return newgate + inputgate * (h - newgate)


if __name__ == "__main__":
    B, N, H, STEP = 4, 8, 32, 2

    key = jax.random.PRNGKey(0)
    k_a, k_h, k_p = jax.random.split(key, 3)
    A = jax.random.uniform(k_a, (B, N, 2 * N), jnp.float32)
    hidden = jax.random.normal(k_h, (B, N, H), jnp.float32)
    params = init_params(k_p, H)

    out = gnn_forward_pallas(A, hidden, params, step=STEP)
    out = jax.block_until_ready(out)

    ref = hidden
    for _ in range(STEP):
        ref = gnn_cell_ref(A, ref, params)
    assert jnp.allclose(out, ref, atol=1e-5, rtol=1e-5), "mismatch vs reference"

    print("KERNEL_OK")
</pallas_src>

<mosaic_0001>
module attributes {stable_mosaic.version = 11 : i64} {
  func.func @_gnn_kernel(%arg0: i32, %arg1: memref<4x8x8xf32, #tpu.memory_space<vmem>>, %arg2: memref<4x8x8xf32, #tpu.memory_space<vmem>>, %arg3: memref<4x8x32xf32, #tpu.memory_space<vmem>>, %arg4: memref<32x32xf32, #tpu.memory_space<vmem>>, %arg5: memref<1x32xf32, #tpu.memory_space<vmem>>, %arg6: memref<32x32xf32, #tpu.memory_space<vmem>>, %arg7: memref<1x32xf32, #tpu.memory_space<vmem>>, %arg8: memref<1x32xf32, #tpu.memory_space<vmem>>, %arg9: memref<1x32xf32, #tpu.memory_space<vmem>>, %arg10: memref<3x32x32xf32, #tpu.memory_space<vmem>>, %arg11: memref<3x32x32xf32, #tpu.memory_space<vmem>>, %arg12: memref<3x32x32xf32, #tpu.memory_space<vmem>>, %arg13: memref<2x1x32xf32, #tpu.memory_space<vmem>>, %arg14: memref<1x32xf32, #tpu.memory_space<vmem>>, %arg15: memref<1x32xf32, #tpu.memory_space<vmem>>, %arg16: memref<4x8x32xf32, #tpu.memory_space<vmem>>) attributes {dimension_semantics = [#tpu.dimension_semantics<parallel>], iteration_bounds = array<i64: 1>, scalar_prefetch = 0 : i64, scratch_operands = 0 : i64, tpu.core_type = #tpu.core_type<tc>, window_params = [{transform_indices = @transform_0, window_bounds = array<i64: 4, 8, 8>}, {transform_indices = @transform_1, window_bounds = array<i64: 4, 8, 8>}, {transform_indices = @transform_2, window_bounds = array<i64: 4, 8, 32>}, {pipeline_mode = #tpu.pipeline_mode<synchronous>, transform_indices = @transform_3, window_bounds = array<i64: 32, 32>}, {pipeline_mode = #tpu.pipeline_mode<synchronous>, transform_indices = @transform_4, window_bounds = array<i64: 1, 32>}, {pipeline_mode = #tpu.pipeline_mode<synchronous>, transform_indices = @transform_5, window_bounds = array<i64: 32, 32>}, {pipeline_mode = #tpu.pipeline_mode<synchronous>, transform_indices = @transform_6, window_bounds = array<i64: 1, 32>}, {pipeline_mode = #tpu.pipeline_mode<synchronous>, transform_indices = @transform_7, window_bounds = array<i64: 1, 32>}, {pipeline_mode = #tpu.pipeline_mode<synchronous>, transform_indices = @transform_8, window_bounds = array<i64: 1, 32>}, {pipeline_mode = #tpu.pipeline_mode<synchronous>, transform_indices = @transform_9, window_bounds = array<i64: 3, 32, 32>}, {pipeline_mode = #tpu.pipeline_mode<synchronous>, transform_indices = @transform_10, window_bounds = array<i64: 3, 32, 32>}, {pipeline_mode = #tpu.pipeline_mode<synchronous>, transform_indices = @transform_11, window_bounds = array<i64: 3, 32, 32>}, {pipeline_mode = #tpu.pipeline_mode<synchronous>, transform_indices = @transform_12, window_bounds = array<i64: 2, 1, 32>}, {pipeline_mode = #tpu.pipeline_mode<synchronous>, transform_indices = @transform_13, window_bounds = array<i64: 1, 32>}, {pipeline_mode = #tpu.pipeline_mode<synchronous>, transform_indices = @transform_14, window_bounds = array<i64: 1, 32>}, {transform_indices = @transform_15, window_bounds = array<i64: 4, 8, 32>}]} {
    %c0 = arith.constant 0 : index
    %c0_0 = arith.constant 0 : index
    %c0_1 = arith.constant 0 : index
    %0 = vector.load %arg1[%c0, %c0_0, %c0_1] : memref<4x8x8xf32, #tpu.memory_space<vmem>>, vector<4x8x8xf32>
    %c0_2 = arith.constant 0 : index
    %c0_3 = arith.constant 0 : index
    %c0_4 = arith.constant 0 : index
    %1 = vector.load %arg2[%c0_2, %c0_3, %c0_4] : memref<4x8x8xf32, #tpu.memory_space<vmem>>, vector<4x8x8xf32>
    %c0_5 = arith.constant 0 : index
    %c0_6 = arith.constant 0 : index
    %c0_7 = arith.constant 0 : index
    %2 = vector.load %arg3[%c0_5, %c0_6, %c0_7] : memref<4x8x32xf32, #tpu.memory_space<vmem>>, vector<4x8x32xf32>
    %3 = vector.shape_cast %2 : vector<4x8x32xf32> to vector<32x32xf32>
    %c0_8 = arith.constant 0 : index
    %c0_9 = arith.constant 0 : index
    %4 = vector.load %arg4[%c0_8, %c0_9] : memref<32x32xf32, #tpu.memory_space<vmem>>, vector<32x32xf32>
    %cst = arith.constant dense<0.000000e+00> : vector<32x32xf32>
    %5 = tpu.matmul %3, %4, %cst {dimension_numbers = #tpu.dot_dimension_numbers<[1], [0], [0], [1], [0, 0, 1, 1], [], []>} : vector<32x32xf32>, vector<32x32xf32>, vector<32x32xf32> -> vector<32x32xf32>
    %c0_10 = arith.constant 0 : index
    %c0_11 = arith.constant 0 : index
    %6 = vector.load %arg5[%c0_10, %c0_11] : memref<1x32xf32, #tpu.memory_space<vmem>>, vector<1x32xf32>
    %7 = vector.broadcast %6 : vector<1x32xf32> to vector<32x32xf32>
    %8 = arith.addf %5, %7 : vector<32x32xf32>
    %c0_12 = arith.constant 0 : index
    %c0_13 = arith.constant 0 : index
    %9 = vector.load %arg6[%c0_12, %c0_13] : memref<32x32xf32, #tpu.memory_space<vmem>>, vector<32x32xf32>
    %cst_14 = arith.constant dense<0.000000e+00> : vector<32x32xf32>
    %10 = tpu.matmul %3, %9, %cst_14 {dimension_numbers = #tpu.dot_dimension_numbers<[1], [0], [0], [1], [0, 0, 1, 1], [], []>} : vector<32x32xf32>, vector<32x32xf32>, vector<32x32xf32> -> vector<32x32xf32>
    %c0_15 = arith.constant 0 : index
    %c0_16 = arith.constant 0 : index
    %11 = vector.load %arg7[%c0_15, %c0_16] : memref<1x32xf32, #tpu.memory_space<vmem>>, vector<1x32xf32>
    %12 = vector.broadcast %11 : vector<1x32xf32> to vector<32x32xf32>
    %13 = arith.addf %10, %12 : vector<32x32xf32>
    %14 = vector.shape_cast %8 : vector<32x32xf32> to vector<4x8x32xf32>
    "tpu.trace_start"() <{level = 10 : i32, message = "bnm,bmh->bnh"}> : () -> ()
    %cst_17 = arith.constant dense<0.000000e+00> : vector<4x8x32xf32>
    %15 = tpu.matmul %0, %14, %cst_17 {dimension_numbers = #tpu.dot_dimension_numbers<[2], [1], [1], [2], [0, 0, 0, 1, 1, 2], [0], [0]>} : vector<4x8x8xf32>, vector<4x8x32xf32>, vector<4x8x32xf32> -> vector<4x8x32xf32>
    "tpu.trace_stop"() : () -> ()
    %16 = vector.shape_cast %15 : vector<4x8x32xf32> to vector<32x32xf32>
    %c0_18 = arith.constant 0 : index
    %c0_19 = arith.constant 0 : index
    %17 = vector.load %arg8[%c0_18, %c0_19] : memref<1x32xf32, #tpu.memory_space<vmem>>, vector<1x32xf32>
    %18 = vector.broadcast %17 : vector<1x32xf32> to vector<32x32xf32>
    %19 = arith.addf %16, %18 : vector<32x32xf32>
    %20 = vector.shape_cast %13 : vector<32x32xf32> to vector<4x8x32xf32>
    "tpu.trace_start"() <{level = 10 : i32, message = "bnm,bmh->bnh"}> : () -> ()
    %cst_20 = arith.constant dense<0.000000e+00> : vector<4x8x32xf32>
    %21 = tpu.matmul %1, %20, %cst_20 {dimension_numbers = #tpu.dot_dimension_numbers<[2], [1], [1], [2], [0, 0, 0, 1, 1, 2], [0], [0]>} : vector<4x8x8xf32>, vector<4x8x32xf32>, vector<4x8x32xf32> -> vector<4x8x32xf32>
    "tpu.trace_stop"() : () -> ()
    %22 = vector.shape_cast %21 : vector<4x8x32xf32> to vector<32x32xf32>
    %c0_21 = arith.constant 0 : index
    %c0_22 = arith.constant 0 : index
    %23 = vector.load %arg9[%c0_21, %c0_22] : memref<1x32xf32, #tpu.memory_space<vmem>>, vector<1x32xf32>
    %24 = vector.broadcast %23 : vector<1x32xf32> to vector<32x32xf32>
    %25 = arith.addf %22, %24 : vector<32x32xf32>
    %c0_23 = arith.constant 0 : index
    %c0_24 = arith.constant 0 : index
    %c0_25 = arith.constant 0 : index
    %26 = vector.load %arg10[%c0_23, %c0_24, %c0_25] : memref<3x32x32xf32, #tpu.memory_space<vmem>>, vector<1x32x32xf32>
    %27 = vector.shape_cast %26 : vector<1x32x32xf32> to vector<32x32xf32>
    %cst_26 = arith.constant dense<0.000000e+00> : vector<32x32xf32>
    %28 = tpu.matmul %19, %27, %cst_26 {dimension_numbers = #tpu.dot_dimension_numbers<[1], [0], [0], [1], [0, 0, 1, 1], [], []>} : vector<32x32xf32>, vector<32x32xf32>, vector<32x32xf32> -> vector<32x32xf32>
    %c0_27 = arith.constant 0 : index
    %c0_28 = arith.constant 0 : index
    %c0_29 = arith.constant 0 : index
    %29 = vector.load %arg11[%c0_27, %c0_28, %c0_29] : memref<3x32x32xf32, #tpu.memory_space<vmem>>, vector<1x32x32xf32>
    %30 = vector.shape_cast %29 : vector<1x32x32xf32> to vector<32x32xf32>
    %cst_30 = arith.constant dense<0.000000e+00> : vector<32x32xf32>
    %31 = tpu.matmul %25, %30, %cst_30 {dimension_numbers = #tpu.dot_dimension_numbers<[1], [0], [0], [1], [0, 0, 1, 1], [], []>} : vector<32x32xf32>, vector<32x32xf32>, vector<32x32xf32> -> vector<32x32xf32>
    %32 = arith.addf %28, %31 : vector<32x32xf32>
    %c0_31 = arith.constant 0 : index
    %c0_32 = arith.constant 0 : index
    %c0_33 = arith.constant 0 : index
    %33 = vector.load %arg12[%c0_31, %c0_32, %c0_33] : memref<3x32x32xf32, #tpu.memory_space<vmem>>, vector<1x32x32xf32>
    %34 = vector.shape_cast %33 : vector<1x32x32xf32> to vector<32x32xf32>
    %cst_34 = arith.constant dense<0.000000e+00> : vector<32x32xf32>
    %35 = tpu.matmul %3, %34, %cst_34 {dimension_numbers = #tpu.dot_dimension_numbers<[1], [0], [0], [1], [0, 0, 1, 1], [], []>} : vector<32x32xf32>, vector<32x32xf32>, vector<32x32xf32> -> vector<32x32xf32>
    %36 = arith.addf %32, %35 : vector<32x32xf32>
    %c0_35 = arith.constant 0 : index
    %c0_36 = arith.constant 0 : index
    %c0_37 = arith.constant 0 : index
    %37 = vector.load %arg13[%c0_35, %c0_36, %c0_37] : memref<2x1x32xf32, #tpu.memory_space<vmem>>, vector<1x1x32xf32>
    %38 = vector.shape_cast %37 : vector<1x1x32xf32> to vector<1x32xf32>
    %39 = vector.broadcast %38 : vector<1x32xf32> to vector<32x32xf32>
    %40 = arith.addf %36, %39 : vector<32x32xf32>
    %c1 = arith.constant 1 : index
    %c0_38 = arith.constant 0 : index
    %c0_39 = arith.constant 0 : index
    %41 = vector.load %arg10[%c1, %c0_38, %c0_39] : memref<3x32x32xf32, #tpu.memory_space<vmem>>, vector<1x32x32xf32>
    %42 = vector.shape_cast %41 : vector<1x32x32xf32> to vector<32x32xf32>
    %cst_40 = arith.constant dense<0.000000e+00> : vector<32x32xf32>
    %43 = tpu.matmul %19, %42, %cst_40 {dimension_numbers = #tpu.dot_dimension_numbers<[1], [0], [0], [1], [0, 0, 1, 1], [], []>} : vector<32x32xf32>, vector<32x32xf32>, vector<32x32xf32> -> vector<32x32xf32>
    %c1_41 = arith.constant 1 : index
    %c0_42 = arith.constant 0 : index
    %c0_43 = arith.constant 0 : index
    %44 = vector.load %arg11[%c1_41, %c0_42, %c0_43] : memref<3x32x32xf32, #tpu.memory_space<vmem>>, vector<1x32x32xf32>
    %45 = vector.shape_cast %44 : vector<1x32x32xf32> to vector<32x32xf32>
    %cst_44 = arith.constant dense<0.000000e+00> : vector<32x32xf32>
    %46 = tpu.matmul %25, %45, %cst_44 {dimension_numbers = #tpu.dot_dimension_numbers<[1], [0], [0], [1], [0, 0, 1, 1], [], []>} : vector<32x32xf32>, vector<32x32xf32>, vector<32x32xf32> -> vector<32x32xf32>
    %47 = arith.addf %43, %46 : vector<32x32xf32>
    %c1_45 = arith.constant 1 : index
    %c0_46 = arith.constant 0 : index
    %c0_47 = arith.constant 0 : index
    %48 = vector.load %arg12[%c1_45, %c0_46, %c0_47] : memref<3x32x32xf32, #tpu.memory_space<vmem>>, vector<1x32x32xf32>
    %49 = vector.shape_cast %48 : vector<1x32x32xf32> to vector<32x32xf32>
    %cst_48 = arith.constant dense<0.000000e+00> : vector<32x32xf32>
    %50 = tpu.matmul %3, %49, %cst_48 {dimension_numbers = #tpu.dot_dimension_numbers<[1], [0], [0], [1], [0, 0, 1, 1], [], []>} : vector<32x32xf32>, vector<32x32xf32>, vector<32x32xf32> -> vector<32x32xf32>
    %51 = arith.addf %47, %50 : vector<32x32xf32>
    %c1_49 = arith.constant 1 : index
    %c0_50 = arith.constant 0 : index
    %c0_51 = arith.constant 0 : index
    %52 = vector.load %arg13[%c1_49, %c0_50, %c0_51] : memref<2x1x32xf32, #tpu.memory_space<vmem>>, vector<1x1x32xf32>
    %53 = vector.shape_cast %52 : vector<1x1x32xf32> to vector<1x32xf32>
    %54 = vector.broadcast %53 : vector<1x32xf32> to vector<32x32xf32>
    %55 = arith.addf %51, %54 : vector<32x32xf32>
    %c2 = arith.constant 2 : index
    %c0_52 = arith.constant 0 : index
    %c0_53 = arith.constant 0 : index
    %56 = vector.load %arg10[%c2, %c0_52, %c0_53] : memref<3x32x32xf32, #tpu.memory_space<vmem>>, vector<1x32x32xf32>
    %57 = vector.shape_cast %56 : vector<1x32x32xf32> to vector<32x32xf32>
    %cst_54 = arith.constant dense<0.000000e+00> : vector<32x32xf32>
    %58 = tpu.matmul %19, %57, %cst_54 {dimension_numbers = #tpu.dot_dimension_numbers<[1], [0], [0], [1], [0, 0, 1, 1], [], []>} : vector<32x32xf32>, vector<32x32xf32>, vector<32x32xf32> -> vector<32x32xf32>
    %c2_55 = arith.constant 2 : index
    %c0_56 = arith.constant 0 : index
    %c0_57 = arith.constant 0 : index
    %59 = vector.load %arg11[%c2_55, %c0_56, %c0_57] : memref<3x32x32xf32, #tpu.memory_space<vmem>>, vector<1x32x32xf32>
    %60 = vector.shape_cast %59 : vector<1x32x32xf32> to vector<32x32xf32>
    %cst_58 = arith.constant dense<0.000000e+00> : vector<32x32xf32>
    %61 = tpu.matmul %25, %60, %cst_58 {dimension_numbers = #tpu.dot_dimension_numbers<[1], [0], [0], [1], [0, 0, 1, 1], [], []>} : vector<32x32xf32>, vector<32x32xf32>, vector<32x32xf32> -> vector<32x32xf32>
    %62 = arith.addf %58, %61 : vector<32x32xf32>
    %c0_59 = arith.constant 0 : index
    %c0_60 = arith.constant 0 : index
    %63 = vector.load %arg14[%c0_59, %c0_60] : memref<1x32xf32, #tpu.memory_space<vmem>>, vector<1x32xf32>
    %64 = vector.broadcast %63 : vector<1x32xf32> to vector<32x32xf32>
    %65 = arith.addf %62, %64 : vector<32x32xf32>
    %c2_61 = arith.constant 2 : index
    %c0_62 = arith.constant 0 : index
    %c0_63 = arith.constant 0 : index
    %66 = vector.load %arg12[%c2_61, %c0_62, %c0_63] : memref<3x32x32xf32, #tpu.memory_space<vmem>>, vector<1x32x32xf32>
    %67 = vector.shape_cast %66 : vector<1x32x32xf32> to vector<32x32xf32>
    %cst_64 = arith.constant dense<0.000000e+00> : vector<32x32xf32>
    %68 = tpu.matmul %3, %67, %cst_64 {dimension_numbers = #tpu.dot_dimension_numbers<[1], [0], [0], [1], [0, 0, 1, 1], [], []>} : vector<32x32xf32>, vector<32x32xf32>, vector<32x32xf32> -> vector<32x32xf32>
    %c0_65 = arith.constant 0 : index
    %c0_66 = arith.constant 0 : index
    %69 = vector.load %arg15[%c0_65, %c0_66] : memref<1x32xf32, #tpu.memory_space<vmem>>, vector<1x32xf32>
    %70 = vector.broadcast %69 : vector<1x32xf32> to vector<32x32xf32>
    %71 = arith.addf %68, %70 : vector<32x32xf32>
    %72 = arith.negf %40 : vector<32x32xf32>
    %73 = math.exp %72 : vector<32x32xf32>
    %cst_67 = arith.constant 1.000000e+00 : f32
    %74 = vector.broadcast %cst_67 : f32 to vector<32x32xf32>
    %75 = arith.addf %74, %73 : vector<32x32xf32>
    %76 = arith.divf %74, %75 : vector<32x32xf32>
    %77 = arith.negf %55 : vector<32x32xf32>
    %78 = math.exp %77 : vector<32x32xf32>
    %cst_68 = arith.constant 1.000000e+00 : f32
    %79 = vector.broadcast %cst_68 : f32 to vector<32x32xf32>
    %80 = arith.addf %79, %78 : vector<32x32xf32>
    %81 = arith.divf %79, %80 : vector<32x32xf32>
    %82 = arith.mulf %76, %71 : vector<32x32xf32>
    %83 = arith.addf %65, %82 : vector<32x32xf32>
    %84 = math.tanh %83 : vector<32x32xf32>
    %85 = arith.subf %3, %84 : vector<32x32xf32>
    %86 = arith.mulf %81, %85 : vector<32x32xf32>
    %87 = arith.addf %84, %86 : vector<32x32xf32>
    %c0_69 = arith.constant 0 : index
    %c0_70 = arith.constant 0 : index
    %88 = vector.load %arg4[%c0_69, %c0_70] : memref<32x32xf32, #tpu.memory_space<vmem>>, vector<32x32xf32>
    %cst_71 = arith.constant dense<0.000000e+00> : vector<32x32xf32>
    %89 = tpu.matmul %87, %88, %cst_71 {dimension_numbers = #tpu.dot_dimension_numbers<[1], [0], [0], [1], [0, 0, 1, 1], [], []>} : vector<32x32xf32>, vector<32x32xf32>, vector<32x32xf32> -> vector<32x32xf32>
    %c0_72 = arith.constant 0 : index
    %c0_73 = arith.constant 0 : index
    %90 = vector.load %arg5[%c0_72, %c0_73] : memref<1x32xf32, #tpu.memory_space<vmem>>, vector<1x32xf32>
    %91 = vector.broadcast %90 : vector<1x32xf32> to vector<32x32xf32>
    %92 = arith.addf %89, %91 : vector<32x32xf32>
    %c0_74 = arith.constant 0 : index
    %c0_75 = arith.constant 0 : index
    %93 = vector.load %arg6[%c0_74, %c0_75] : memref<32x32xf32, #tpu.memory_space<vmem>>, vector<32x32xf32>
    %cst_76 = arith.constant dense<0.000000e+00> : vector<32x32xf32>
    %94 = tpu.matmul %87, %93, %cst_76 {dimension_numbers = #tpu.dot_dimension_numbers<[1], [0], [0], [1], [0, 0, 1, 1], [], []>} : vector<32x32xf32>, vector<32x32xf32>, vector<32x32xf32> -> vector<32x32xf32>
    %c0_77 = arith.constant 0 : index
    %c0_78 = arith.constant 0 : index
    %95 = vector.load %arg7[%c0_77, %c0_78] : memref<1x32xf32, #tpu.memory_space<vmem>>, vector<1x32xf32>
    %96 = vector.broadcast %95 : vector<1x32xf32> to vector<32x32xf32>
    %97 = arith.addf %94, %96 : vector<32x32xf32>
    %98 = vector.shape_cast %92 : vector<32x32xf32> to vector<4x8x32xf32>
    "tpu.trace_start"() <{level = 10 : i32, message = "bnm,bmh->bnh"}> : () -> ()
    %cst_79 = arith.constant dense<0.000000e+00> : vector<4x8x32xf32>
    %99 = tpu.matmul %0, %98, %cst_79 {dimension_numbers = #tpu.dot_dimension_numbers<[2], [1], [1], [2], [0, 0, 0, 1, 1, 2], [0], [0]>} : vector<4x8x8xf32>, vector<4x8x32xf32>, vector<4x8x32xf32> -> vector<4x8x32xf32>
    "tpu.trace_stop"() : () -> ()
    %100 = vector.shape_cast %99 : vector<4x8x32xf32> to vector<32x32xf32>
    %c0_80 = arith.constant 0 : index
    %c0_81 = arith.constant 0 : index
    %101 = vector.load %arg8[%c0_80, %c0_81] : memref<1x32xf32, #tpu.memory_space<vmem>>, vector<1x32xf32>
    %102 = vector.broadcast %101 : vector<1x32xf32> to vector<32x32xf32>
    %103 = arith.addf %100, %102 : vector<32x32xf32>
    %104 = vector.shape_cast %97 : vector<32x32xf32> to vector<4x8x32xf32>
    "tpu.trace_start"() <{level = 10 : i32, message = "bnm,bmh->bnh"}> : () -> ()
    %cst_82 = arith.constant dense<0.000000e+00> : vector<4x8x32xf32>
    %105 = tpu.matmul %1, %104, %cst_82 {dimension_numbers = #tpu.dot_dimension_numbers<[2], [1], [1], [2], [0, 0, 0, 1, 1, 2], [0], [0]>} : vector<4x8x8xf32>, vector<4x8x32xf32>, vector<4x8x32xf32> -> vector<4x8x32xf32>
    "tpu.trace_stop"() : () -> ()
    %106 = vector.shape_cast %105 : vector<4x8x32xf32> to vector<32x32xf32>
    %c0_83 = arith.constant 0 : index
    %c0_84 = arith.constant 0 : index
    %107 = vector.load %arg9[%c0_83, %c0_84] : memref<1x32xf32, #tpu.memory_space<vmem>>, vector<1x32xf32>
    %108 = vector.broadcast %107 : vector<1x32xf32> to vector<32x32xf32>
    %109 = arith.addf %106, %108 : vector<32x32xf32>
    %c0_85 = arith.constant 0 : index
    %c0_86 = arith.constant 0 : index
    %c0_87 = arith.constant 0 : index
    %110 = vector.load %arg10[%c0_85, %c0_86, %c0_87] : memref<3x32x32xf32, #tpu.memory_space<vmem>>, vector<1x32x32xf32>
    %111 = vector.shape_cast %110 : vector<1x32x32xf32> to vector<32x32xf32>
    %cst_88 = arith.constant dense<0.000000e+00> : vector<32x32xf32>
    %112 = tpu.matmul %103, %111, %cst_88 {dimension_numbers = #tpu.dot_dimension_numbers<[1], [0], [0], [1], [0, 0, 1, 1], [], []>} : vector<32x32xf32>, vector<32x32xf32>, vector<32x32xf32> -> vector<32x32xf32>
    %c0_89 = arith.constant 0 : index
    %c0_90 = arith.constant 0 : index
    %c0_91 = arith.constant 0 : index
    %113 = vector.load %arg11[%c0_89, %c0_90, %c0_91] : memref<3x32x32xf32, #tpu.memory_space<vmem>>, vector<1x32x32xf32>
    %114 = vector.shape_cast %113 : vector<1x32x32xf32> to vector<32x32xf32>
    %cst_92 = arith.constant dense<0.000000e+00> : vector<32x32xf32>
    %115 = tpu.matmul %109, %114, %cst_92 {dimension_numbers = #tpu.dot_dimension_numbers<[1], [0], [0], [1], [0, 0, 1, 1], [], []>} : vector<32x32xf32>, vector<32x32xf32>, vector<32x32xf32> -> vector<32x32xf32>
    %116 = arith.addf %112, %115 : vector<32x32xf32>
    %c0_93 = arith.constant 0 : index
    %c0_94 = arith.constant 0 : index
    %c0_95 = arith.constant 0 : index
    %117 = vector.load %arg12[%c0_93, %c0_94, %c0_95] : memref<3x32x32xf32, #tpu.memory_space<vmem>>, vector<1x32x32xf32>
    %118 = vector.shape_cast %117 : vector<1x32x32xf32> to vector<32x32xf32>
    %cst_96 = arith.constant dense<0.000000e+00> : vector<32x32xf32>
    %119 = tpu.matmul %87, %118, %cst_96 {dimension_numbers = #tpu.dot_dimension_numbers<[1], [0], [0], [1], [0, 0, 1, 1], [], []>} : vector<32x32xf32>, vector<32x32xf32>, vector<32x32xf32> -> vector<32x32xf32>
    %120 = arith.addf %116, %119 : vector<32x32xf32>
    %c0_97 = arith.constant 0 : index
    %c0_98 = arith.constant 0 : index
    %c0_99 = arith.constant 0 : index
    %121 = vector.load %arg13[%c0_97, %c0_98, %c0_99] : memref<2x1x32xf32, #tpu.memory_space<vmem>>, vector<1x1x32xf32>
    %122 = vector.shape_cast %121 : vector<1x1x32xf32> to vector<1x32xf32>
    %123 = vector.broadcast %122 : vector<1x32xf32> to vector<32x32xf32>
    %124 = arith.addf %120, %123 : vector<32x32xf32>
    %c1_100 = arith.constant 1 : index
    %c0_101 = arith.constant 0 : index
    %c0_102 = arith.constant 0 : index
    %125 = vector.load %arg10[%c1_100, %c0_101, %c0_102] : memref<3x32x32xf32, #tpu.memory_space<vmem>>, vector<1x32x32xf32>
    %126 = vector.shape_cast %125 : vector<1x32x32xf32> to vector<32x32xf32>
    %cst_103 = arith.constant dense<0.000000e+00> : vector<32x32xf32>
    %127 = tpu.matmul %103, %126, %cst_103 {dimension_numbers = #tpu.dot_dimension_numbers<[1], [0], [0], [1], [0, 0, 1, 1], [], []>} : vector<32x32xf32>, vector<32x32xf32>, vector<32x32xf32> -> vector<32x32xf32>
    %c1_104 = arith.constant 1 : index
    %c0_105 = arith.constant 0 : index
    %c0_106 = arith.constant 0 : index
    %128 = vector.load %arg11[%c1_104, %c0_105, %c0_106] : memref<3x32x32xf32, #tpu.memory_space<vmem>>, vector<1x32x32xf32>
    %129 = vector.shape_cast %128 : vector<1x32x32xf32> to vector<32x32xf32>
    %cst_107 = arith.constant dense<0.000000e+00> : vector<32x32xf32>
    %130 = tpu.matmul %109, %129, %cst_107 {dimension_numbers = #tpu.dot_dimension_numbers<[1], [0], [0], [1], [0, 0, 1, 1], [], []>} : vector<32x32xf32>, vector<32x32xf32>, vector<32x32xf32> -> vector<32x32xf32>
    %131 = arith.addf %127, %130 : vector<32x32xf32>
    %c1_108 = arith.constant 1 : index
    %c0_109 = arith.constant 0 : index
    %c0_110 = arith.constant 0 : index
    %132 = vector.load %arg12[%c1_108, %c0_109, %c0_110] : memref<3x32x32xf32, #tpu.memory_space<vmem>>, vector<1x32x32xf32>
    %133 = vector.shape_cast %132 : vector<1x32x32xf32> to vector<32x32xf32>
    %cst_111 = arith.constant dense<0.000000e+00> : vector<32x32xf32>
    %134 = tpu.matmul %87, %133, %cst_111 {dimension_numbers = #tpu.dot_dimension_numbers<[1], [0], [0], [1], [0, 0, 1, 1], [], []>} : vector<32x32xf32>, vector<32x32xf32>, vector<32x32xf32> -> vector<32x32xf32>
    %135 = arith.addf %131, %134 : vector<32x32xf32>
    %c1_112 = arith.constant 1 : index
    %c0_113 = arith.constant 0 : index
    %c0_114 = arith.constant 0 : index
    %136 = vector.load %arg13[%c1_112, %c0_113, %c0_114] : memref<2x1x32xf32, #tpu.memory_space<vmem>>, vector<1x1x32xf32>
    %137 = vector.shape_cast %136 : vector<1x1x32xf32> to vector<1x32xf32>
    %138 = vector.broadcast %137 : vector<1x32xf32> to vector<32x32xf32>
    %139 = arith.addf %135, %138 : vector<32x32xf32>
    %c2_115 = arith.constant 2 : index
    %c0_116 = arith.constant 0 : index
    %c0_117 = arith.constant 0 : index
    %140 = vector.load %arg10[%c2_115, %c0_116, %c0_117] : memref<3x32x32xf32, #tpu.memory_space<vmem>>, vector<1x32x32xf32>
    %141 = vector.shape_cast %140 : vector<1x32x32xf32> to vector<32x32xf32>
    %cst_118 = arith.constant dense<0.000000e+00> : vector<32x32xf32>
    %142 = tpu.matmul %103, %141, %cst_118 {dimension_numbers = #tpu.dot_dimension_numbers<[1], [0], [0], [1], [0, 0, 1, 1], [], []>} : vector<32x32xf32>, vector<32x32xf32>, vector<32x32xf32> -> vector<32x32xf32>
    %c2_119 = arith.constant 2 : index
    %c0_120 = arith.constant 0 : index
    %c0_121 = arith.constant 0 : index
    %143 = vector.load %arg11[%c2_119, %c0_120, %c0_121] : memref<3x32x32xf32, #tpu.memory_space<vmem>>, vector<1x32x32xf32>
    %144 = vector.shape_cast %143 : vector<1x32x32xf32> to vector<32x32xf32>
    %cst_122 = arith.constant dense<0.000000e+00> : vector<32x32xf32>
    %145 = tpu.matmul %109, %144, %cst_122 {dimension_numbers = #tpu.dot_dimension_numbers<[1], [0], [0], [1], [0, 0, 1, 1], [], []>} : vector<32x32xf32>, vector<32x32xf32>, vector<32x32xf32> -> vector<32x32xf32>
    %146 = arith.addf %142, %145 : vector<32x32xf32>
    %c0_123 = arith.constant 0 : index
    %c0_124 = arith.constant 0 : index
    %147 = vector.load %arg14[%c0_123, %c0_124] : memref<1x32xf32, #tpu.memory_space<vmem>>, vector<1x32xf32>
    %148 = vector.broadcast %147 : vector<1x32xf32> to vector<32x32xf32>
    %149 = arith.addf %146, %148 : vector<32x32xf32>
    %c2_125 = arith.constant 2 : index
    %c0_126 = arith.constant 0 : index
    %c0_127 = arith.constant 0 : index
    %150 = vector.load %arg12[%c2_125, %c0_126, %c0_127] : memref<3x32x32xf32, #tpu.memory_space<vmem>>, vector<1x32x32xf32>
    %151 = vector.shape_cast %150 : vector<1x32x32xf32> to vector<32x32xf32>
    %cst_128 = arith.constant dense<0.000000e+00> : vector<32x32xf32>
    %152 = tpu.matmul %87, %151, %cst_128 {dimension_numbers = #tpu.dot_dimension_numbers<[1], [0], [0], [1], [0, 0, 1, 1], [], []>} : vector<32x32xf32>, vector<32x32xf32>, vector<32x32xf32> -> vector<32x32xf32>
    %c0_129 = arith.constant 0 : index
    %c0_130 = arith.constant 0 : index
    %153 = vector.load %arg15[%c0_129, %c0_130] : memref<1x32xf32, #tpu.memory_space<vmem>>, vector<1x32xf32>
    %154 = vector.broadcast %153 : vector<1x32xf32> to vector<32x32xf32>
    %155 = arith.addf %152, %154 : vector<32x32xf32>
    %156 = arith.negf %124 : vector<32x32xf32>
    %157 = math.exp %156 : vector<32x32xf32>
    %cst_131 = arith.constant 1.000000e+00 : f32
    %158 = vector.broadcast %cst_131 : f32 to vector<32x32xf32>
    %159 = arith.addf %158, %157 : vector<32x32xf32>
    %160 = arith.divf %158, %159 : vector<32x32xf32>
    %161 = arith.negf %139 : vector<32x32xf32>
    %162 = math.exp %161 : vector<32x32xf32>
    %cst_132 = arith.constant 1.000000e+00 : f32
    %163 = vector.broadcast %cst_132 : f32 to vector<32x32xf32>
    %164 = arith.addf %163, %162 : vector<32x32xf32>
    %165 = arith.divf %163, %164 : vector<32x32xf32>
    %166 = arith.mulf %160, %155 : vector<32x32xf32>
    %167 = arith.addf %149, %166 : vector<32x32xf32>
    %168 = math.tanh %167 : vector<32x32xf32>
    %169 = arith.subf %87, %168 : vector<32x32xf32>
    %170 = arith.mulf %165, %169 : vector<32x32xf32>
    %171 = arith.addf %168, %170 : vector<32x32xf32>
    %172 = vector.shape_cast %171 : vector<32x32xf32> to vector<4x8x32xf32>
    %c0_133 = arith.constant 0 : index
    %c0_134 = arith.constant 0 : index
    %c0_135 = arith.constant 0 : index
    %173 = vector.load %arg16[%c0_133, %c0_134, %c0_135] : memref<4x8x32xf32, #tpu.memory_space<vmem>>, vector<4x8x32xf32>
    tpu.vector_store %arg16[%c0_133, %c0_134, %c0_135], %172 {strides = array<i32>} : memref<4x8x32xf32, #tpu.memory_space<vmem>>, vector<4x8x32xf32>,
    return
  }
  func.func @transform_0(%arg0: i32) -> (i32, i32, i32) {
    %c0_i32 = arith.constant 0 : i32
    %c0_i32_0 = arith.constant 0 : i32
    %c0_i32_1 = arith.constant 0 : i32
    return %arg0, %c0_i32, %c0_i32_0 : i32, i32, i32
  }
  func.func @transform_1(%arg0: i32) -> (i32, i32, i32) {
    %c0_i32 = arith.constant 0 : i32
    %c0_i32_0 = arith.constant 0 : i32
    %c0_i32_1 = arith.constant 0 : i32
    return %arg0, %c0_i32, %c0_i32_0 : i32, i32, i32
  }
  func.func @transform_2(%arg0: i32) -> (i32, i32, i32) {
    %c0_i32 = arith.constant 0 : i32
    %c0_i32_0 = arith.constant 0 : i32
    %c0_i32_1 = arith.constant 0 : i32
    return %arg0, %c0_i32, %c0_i32_0 : i32, i32, i32
  }
  func.func @transform_3(%arg0: i32) -> (i32, i32) {
    %c0_i32 = arith.constant 0 : i32
    %c0_i32_0 = arith.constant 0 : i32
    %c0_i32_1 = arith.constant 0 : i32
    return %c0_i32, %c0_i32_0 : i32, i32
  }
  func.func @transform_4(%arg0: i32) -> (i32, i32) {
    %c0_i32 = arith.constant 0 : i32
    %c0_i32_0 = arith.constant 0 : i32
    %c0_i32_1 = arith.constant 0 : i32
    return %c0_i32, %c0_i32_0 : i32, i32
  }
  func.func @transform_5(%arg0: i32) -> (i32, i32) {
    %c0_i32 = arith.constant 0 : i32
    %c0_i32_0 = arith.constant 0 : i32
    %c0_i32_1 = arith.constant 0 : i32
    return %c0_i32, %c0_i32_0 : i32, i32
  }
  func.func @transform_6(%arg0: i32) -> (i32, i32) {
    %c0_i32 = arith.constant 0 : i32
    %c0_i32_0 = arith.constant 0 : i32
    %c0_i32_1 = arith.constant 0 : i32
    return %c0_i32, %c0_i32_0 : i32, i32
  }
  func.func @transform_7(%arg0: i32) -> (i32, i32) {
    %c0_i32 = arith.constant 0 : i32
    %c0_i32_0 = arith.constant 0 : i32
    %c0_i32_1 = arith.constant 0 : i32
    return %c0_i32, %c0_i32_0 : i32, i32
  }
  func.func @transform_8(%arg0: i32) -> (i32, i32) {
    %c0_i32 = arith.constant 0 : i32
    %c0_i32_0 = arith.constant 0 : i32
    %c0_i32_1 = arith.constant 0 : i32
    return %c0_i32, %c0_i32_0 : i32, i32
  }
  func.func @transform_9(%arg0: i32) -> (i32, i32, i32) {
    %c0_i32 = arith.constant 0 : i32
    %c0_i32_0 = arith.constant 0 : i32
    %c0_i32_1 = arith.constant 0 : i32
    %c0_i32_2 = arith.constant 0 : i32
    return %c0_i32, %c0_i32_0, %c0_i32_1 : i32, i32, i32
  }
  func.func @transform_10(%arg0: i32) -> (i32, i32, i32) {
    %c0_i32 = arith.constant 0 : i32
    %c0_i32_0 = arith.constant 0 : i32
    %c0_i32_1 = arith.constant 0 : i32
    %c0_i32_2 = arith.constant 0 : i32
    return %c0_i32, %c0_i32_0, %c0_i32_1 : i32, i32, i32
  }
  func.func @transform_11(%arg0: i32) -> (i32, i32, i32) {
    %c0_i32 = arith.constant 0 : i32
    %c0_i32_0 = arith.constant 0 : i32
    %c0_i32_1 = arith.constant 0 : i32
    %c0_i32_2 = arith.constant 0 : i32
    return %c0_i32, %c0_i32_0, %c0_i32_1 : i32, i32, i32
  }
  func.func @transform_12(%arg0: i32) -> (i32, i32, i32) {
    %c0_i32 = arith.constant 0 : i32
    %c0_i32_0 = arith.constant 0 : i32
    %c0_i32_1 = arith.constant 0 : i32
    %c0_i32_2 = arith.constant 0 : i32
    return %c0_i32, %c0_i32_0, %c0_i32_1 : i32, i32, i32
  }
  func.func @transform_13(%arg0: i32) -> (i32, i32) {
    %c0_i32 = arith.constant 0 : i32
    %c0_i32_0 = arith.constant 0 : i32
    %c0_i32_1 = arith.constant 0 : i32
    return %c0_i32, %c0_i32_0 : i32, i32
  }
  func.func @transform_14(%arg0: i32) -> (i32, i32) {
    %c0_i32 = arith.constant 0 : i32
    %c0_i32_0 = arith.constant 0 : i32
    %c0_i32_1 = arith.constant 0 : i32
    return %c0_i32, %c0_i32_0 : i32, i32
  }
  func.func @transform_15(%arg0: i32) -> (i32, i32, i32) {
    %c0_i32 = arith.constant 0 : i32
    %c0_i32_0 = arith.constant 0 : i32
    %c0_i32_1 = arith.constant 0 : i32
    return %arg0, %c0_i32, %c0_i32_0 : i32, i32, i32
  }
}

</mosaic_0001>

<llo_original>
// kernel: tpu_custom_call.1
$region0: #{tpu_custom_call.1}
  #allocation0 [shape = 'u32[]', space=smem, size = 0x4, offset = 0x4, fixed_abs, tag = 'smem constant byte address 0x4 - core index']
  #allocation1 [shape = 'u32[144,128]{1,0:T(1,128)}', space=vmem, size = 0x12000, scoped, tag = 'internal scratch']
  %s0 = inlined_call_operand.hbm [shape: f32[4,8,8], index: 0, kind: input, shape index: {}]
  %s1 = inlined_call_operand.hbm [shape: f32[4,8,8], index: 1, kind: input, shape index: {}]
  %s2 = inlined_call_operand.hbm [shape: f32[4,8,32], index: 2, kind: input, shape index: {}]
  %s3 = inlined_call_operand.hbm [shape: f32[32,32], index: 3, kind: input, shape index: {}]
  %s4 = inlined_call_operand.vmem [shape: f32[1,32], index: 4, kind: input, shape index: {}]
  %s5 = inlined_call_operand.hbm [shape: f32[32,32], index: 5, kind: input, shape index: {}]
  %s6 = inlined_call_operand.vmem [shape: f32[1,32], index: 6, kind: input, shape index: {}]
  %s7 = inlined_call_operand.vmem [shape: f32[1,32], index: 7, kind: input, shape index: {}]
  %s8 = inlined_call_operand.vmem [shape: f32[1,32], index: 8, kind: input, shape index: {}]
  %s9 = inlined_call_operand.hbm [shape: f32[3,32,32], index: 9, kind: input, shape index: {}]
  %s10 = inlined_call_operand.hbm [shape: f32[3,32,32], index: 10, kind: input, shape index: {}]
  %s11 = inlined_call_operand.hbm [shape: f32[3,32,32], index: 11, kind: input, shape index: {}]
  %s12 = inlined_call_operand.vmem [shape: f32[2,1,32], index: 12, kind: input, shape index: {}]
  %s13 = inlined_call_operand.vmem [shape: f32[1,32], index: 13, kind: input, shape index: {}]
  %s14 = inlined_call_operand.vmem [shape: f32[1,32], index: 14, kind: input, shape index: {}]
  %s15 = inlined_call_operand.hbm [shape: f32[4,8,32], index: 15, kind: output, shape index: {}]
  %s16 = sld [smem:[#allocation0]]
  $region102: #{tpu_custom_call.1} parent=0
    _
  %s18 = ssub.s32 1, %s16
  %s19 = scalar_select 0, %s18, %s16
  $region1: #{tpu_custom_call.1} parent=0
    #allocation2 [shape = 'u8[16384]{0}', space=vmem, size = 0x4000, scoped, tag = 'input window, operand 0, single buffered']
    #allocation3 [shape = 's32[1]{0}', space=sflag, size = 0x4, scoped, tag = 'scoped memory for tpu_custom_call.1']
    #allocation4 [shape = 's32[1]{0}', space=sflag, size = 0x4, scoped, tag = 'scoped memory for tpu_custom_call.1']
    #allocation5 [shape = 'u8[16384]{0}', space=vmem, size = 0x4000, scoped, tag = 'input window, operand 1, single buffered']
    #allocation6 [shape = 's32[1]{0}', space=sflag, size = 0x4, scoped, tag = 'scoped memory for tpu_custom_call.1']
    #allocation7 [shape = 'u8[16384]{0}', space=vmem, size = 0x4000, scoped, tag = 'input window, operand 2, single buffered']
    #allocation8 [shape = 'u8[16384]{0}', space=vmem, size = 0x4000, scoped, tag = 'input window, operand 3, single buffered']
    #allocation9 [shape = 's32[1]{0}', space=sflag, size = 0x4, scoped, tag = 'scoped memory for tpu_custom_call.1']
    #allocation10 [shape = 'u8[16384]{0}', space=vmem, size = 0x4000, scoped, tag = 'input window, operand 5, single buffered']
    #allocation11 [shape = 'u8[49152]{0}', space=vmem, size = 0xc000, scoped, tag = 'input window, operand 9, single buffered']
    #allocation12 [shape = 's32[1]{0}', space=sflag, size = 0x4, scoped, tag = 'scoped memory for tpu_custom_call.1']
    #allocation13 [shape = 'u8[49152]{0}', space=vmem, size = 0xc000, scoped, tag = 'input window, operand 10, single buffered']
    #allocation14 [shape = 'u8[49152]{0}', space=vmem, size = 0xc000, scoped, tag = 'input window, operand 11, single buffered']
    #allocation15 [shape = 's32[1]{0}', space=sflag, size = 0x4, scoped, tag = 'scoped memory for tpu_custom_call.1']
    #allocation16 [shape = 'u8[16384]{0}', space=vmem, size = 0x4000, scoped, tag = 'output window, operand 0, single buffered']
    %20 = vsyncpa [#allocation3], 0
    %21 = vsyncpa [#allocation6], 0
    %22 = vsyncpa [#allocation9], 0
    %23 = vsyncpa [#allocation12], 0
    %24 = vsyncpa [#allocation15], 0
    %25 = vsyncpa [#allocation4], 0
    // Predicated region
    $region2: #{tpu_custom_call.1} parent=1 // pred_check
      _
    $region3: #{tpu_custom_call.1} parent=1 // pred_check_branch
      %27 = sbr.rel (0) target = $region5
    $region4: #{tpu_custom_call.1} parent=1 // pred_region
      %s29 = ssub.s32 512, 512
      %30 = vsyncadd [#allocation3], %s29
      %s31 = sshll.u32 [#allocation2], 4
      %s32 = int_to_ptr.vmem [resolvable:$true] %s31
      %37 = dma.hbm_to_vmem [thread:$0]  %s0, 512, %s32, [#allocation3], 128, 128, 8
    $region5: #{tpu_custom_call.1} parent=1 // pred_fallthru
      _
    // Predicated region
    $region6: #{tpu_custom_call.1} parent=1 // pred_check
      _
    $region7: #{tpu_custom_call.1} parent=1 // pred_check_branch
      %39 = sbr.rel (0) target = $region9
    $region8: #{tpu_custom_call.1} parent=1 // pred_region
      %s41 = ssub.s32 512, 512
      %42 = vsyncadd [#allocation6], %s41
      %s43 = sshll.u32 [#allocation5], 4
      %s44 = int_to_ptr.vmem [resolvable:$true] %s43
      %49 = dma.hbm_to_vmem [thread:$0]  %s1, 512, %s44, [#allocation6], 128, 128, 8
    $region9: #{tpu_custom_call.1} parent=1 // pred_fallthru
      _
    // Predicated region
    $region10: #{tpu_custom_call.1} parent=1 // pred_check
      _
    $region11: #{tpu_custom_call.1} parent=1 // pred_check_branch
      %51 = sbr.rel (0) target = $region13
    $region12: #{tpu_custom_call.1} parent=1 // pred_region
      %s53 = ssub.s32 512, 512
      %54 = vsyncadd [#allocation6], %s53
      %s55 = sshll.u32 [#allocation7], 4
      %s56 = int_to_ptr.vmem [resolvable:$true] %s55
      %61 = dma.hbm_to_vmem [thread:$0]  %s2, 512, %s56, [#allocation6], 128, 128, 8
    $region13: #{tpu_custom_call.1} parent=1 // pred_fallthru
      _
    // Predicated region
    $region14: #{tpu_custom_call.1} parent=1 // pred_check
      _
    $region15: #{tpu_custom_call.1} parent=1 // pred_check_branch
      %63 = sbr.rel (0) target = $region17
    $region16: #{tpu_custom_call.1} parent=1 // pred_region
      %s65 = ssub.s32 512, 512
      %66 = vsyncadd [#allocation9], %s65
      %s67 = sshll.u32 [#allocation8], 4
      %s68 = int_to_ptr.vmem [resolvable:$true] %s67
      %73 = dma.hbm_to_vmem [thread:$0]  %s3, 512, %s68, [#allocation9], 128, 128, 8
    $region17: #{tpu_custom_call.1} parent=1 // pred_fallthru
      _
    // Predicated region
    $region18: #{tpu_custom_call.1} parent=1 // pred_check
      _
    $region19: #{tpu_custom_call.1} parent=1 // pred_check_branch
      %75 = sbr.rel (0) target = $region21
    $region20: #{tpu_custom_call.1} parent=1 // pred_region
      _
    $region21: #{tpu_custom_call.1} parent=1 // pred_fallthru
      _
    // Predicated region
    $region22: #{tpu_custom_call.1} parent=1 // pred_check
      _
    $region23: #{tpu_custom_call.1} parent=1 // pred_check_branch
      %77 = sbr.rel (0) target = $region25
    $region24: #{tpu_custom_call.1} parent=1 // pred_region
      %s79 = ssub.s32 512, 512
      %80 = vsyncadd [#allocation9], %s79
      %s81 = sshll.u32 [#allocation10], 4
      %s82 = int_to_ptr.vmem [resolvable:$true] %s81
      %87 = dma.hbm_to_vmem [thread:$0]  %s5, 512, %s82, [#allocation9], 128, 128, 8
    $region25: #{tpu_custom_call.1} parent=1 // pred_fallthru
      _
    // Predicated region
    $region26: #{tpu_custom_call.1} parent=1 // pred_check
      _
    $region27: #{tpu_custom_call.1} parent=1 // pred_check_branch
      %89 = sbr.rel (0) target = $region29
    $region28: #{tpu_custom_call.1} parent=1 // pred_region
      _
    $region29: #{tpu_custom_call.1} parent=1 // pred_fallthru
      _
    // Predicated region
    $region30: #{tpu_custom_call.1} parent=1 // pred_check
      _
    $region31: #{tpu_custom_call.1} parent=1 // pred_check_branch
      %91 = sbr.rel (0) target = $region33
    $region32: #{tpu_custom_call.1} parent=1 // pred_region
      _
    $region33: #{tpu_custom_call.1} parent=1 // pred_fallthru
      _
    // Predicated region
    $region34: #{tpu_custom_call.1} parent=1 // pred_check
      _
    $region35: #{tpu_custom_call.1} parent=1 // pred_check_branch
      %93 = sbr.rel (0) target = $region37
    $region36: #{tpu_custom_call.1} parent=1 // pred_region
      _
    $region37: #{tpu_custom_call.1} parent=1 // pred_fallthru
      _
    // Predicated region
    $region38: #{tpu_custom_call.1} parent=1 // pred_check
      _
    $region39: #{tpu_custom_call.1} parent=1 // pred_check_branch
      %95 = sbr.rel (0) target = $region41
    $region40: #{tpu_custom_call.1} parent=1 // pred_region
      %s97 = ssub.s32 1536, 1536
      %98 = vsyncadd [#allocation12], %s97
      %s99 = sshll.u32 [#allocation11], 4
      %s100 = int_to_ptr.vmem [resolvable:$true] %s99
      %105 = dma.hbm_to_vmem [thread:$0]  %s9, 1536, %s100, [#allocation12], 128, 128, 8
    $region41: #{tpu_custom_call.1} parent=1 // pred_fallthru
      _
    // Predicated region
    $region42: #{tpu_custom_call.1} parent=1 // pred_check
      _
    $region43: #{tpu_custom_call.1} parent=1 // pred_check_branch
      %107 = sbr.rel (0) target = $region45
    $region44: #{tpu_custom_call.1} parent=1 // pred_region
      %s109 = ssub.s32 1536, 1536
      %110 = vsyncadd [#allocation12], %s109
      %s111 = sshll.u32 [#allocation13], 4
      %s112 = int_to_ptr.vmem [resolvable:$true] %s111
      %117 = dma.hbm_to_vmem [thread:$0]  %s10, 1536, %s112, [#allocation12], 128, 128, 8
    $region45: #{tpu_custom_call.1} parent=1 // pred_fallthru
      _
    // Predicated region
    $region46: #{tpu_custom_call.1} parent=1 // pred_check
      _
    $region47: #{tpu_custom_call.1} parent=1 // pred_check_branch
      %119 = sbr.rel (0) target = $region49
    $region48: #{tpu_custom_call.1} parent=1 // pred_region
      %s121 = ssub.s32 1536, 1536
      %122 = vsyncadd [#allocation15], %s121
      %s123 = sshll.u32 [#allocation14], 4
      %s124 = int_to_ptr.vmem [resolvable:$true] %s123
      %129 = dma.hbm_to_vmem [thread:$0]  %s11, 1536, %s124, [#allocation15], 128, 128, 8
    $region49: #{tpu_custom_call.1} parent=1 // pred_fallthru
      _
    // Predicated region
    $region50: #{tpu_custom_call.1} parent=1 // pred_check
      _
    $region51: #{tpu_custom_call.1} parent=1 // pred_check_branch
      %131 = sbr.rel (0) target = $region53
    $region52: #{tpu_custom_call.1} parent=1 // pred_region
      _
    $region53: #{tpu_custom_call.1} parent=1 // pred_fallthru
      _
    // Predicated region
    $region54: #{tpu_custom_call.1} parent=1 // pred_check
      _
    $region55: #{tpu_custom_call.1} parent=1 // pred_check_branch
      %133 = sbr.rel (0) target = $region57
    $region56: #{tpu_custom_call.1} parent=1 // pred_region
      _
    $region57: #{tpu_custom_call.1} parent=1 // pred_fallthru
      _
    // Predicated region
    $region58: #{tpu_custom_call.1} parent=1 // pred_check
      _
    $region59: #{tpu_custom_call.1} parent=1 // pred_check_branch
      %135 = sbr.rel (0) target = $region61
    $region60: #{tpu_custom_call.1} parent=1 // pred_region
      _
    $region61: #{tpu_custom_call.1} parent=1 // pred_fallthru
      _
    // Predicated region
    $region62: #{tpu_custom_call.1} parent=1 // pred_check
      _
    $region63: #{tpu_custom_call.1} parent=1 // pred_check_branch
      %137 = sbr.rel (0) target = $region65
    $region64: #{tpu_custom_call.1} parent=1 // pred_region
      %138 = dma.done [#allocation3], 512
    $region65: #{tpu_custom_call.1} parent=1 // pred_fallthru
      _
    // Predicated region
    $region66: #{tpu_custom_call.1} parent=1 // pred_check
      _
    $region67: #{tpu_custom_call.1} parent=1 // pred_check_branch
      %140 = sbr.rel (0) target = $region69
    $region68: #{tpu_custom_call.1} parent=1 // pred_region
      %141 = dma.done [#allocation6], 512
    $region69: #{tpu_custom_call.1} parent=1 // pred_fallthru
      _
    // Predicated region
    $region70: #{tpu_custom_call.1} parent=1 // pred_check
      _
    $region71: #{tpu_custom_call.1} parent=1 // pred_check_branch
      %143 = sbr.rel (0) target = $region73
    $region72: #{tpu_custom_call.1} parent=1 // pred_region
      %144 = dma.done [#allocation6], 512
    $region73: #{tpu_custom_call.1} parent=1 // pred_fallthru
      _
    // Predicated region
    $region74: #{tpu_custom_call.1} parent=1 // pred_check
      _
    $region75: #{tpu_custom_call.1} parent=1 // pred_check_branch
      %146 = sbr.rel (0) target = $region77
    $region76: #{tpu_custom_call.1} parent=1 // pred_region
      %147 = dma.done [#allocation9], 512
    $region77: #{tpu_custom_call.1} parent=1 // pred_fallthru
      _
    // Predicated region
    $region78: #{tpu_custom_call.1} parent=1 // pred_check
      _
    $region79: #{tpu_custom_call.1} parent=1 // pred_check_branch
      %149 = sbr.rel (0) target = $region81
    $region80: #{tpu_custom_call.1} parent=1 // pred_region
      %150 = dma.done [#allocation9], 512
    $region81: #{tpu_custom_call.1} parent=1 // pred_fallthru
      _
    // Predicated region
    $region82: #{tpu_custom_call.1} parent=1 // pred_check
      _
    $region83: #{tpu_custom_call.1} parent=1 // pred_check_branch
      %152 = sbr.rel (0) target = $region85
    $region84: #{tpu_custom_call.1} parent=1 // pred_region
      %153 = dma.done [#allocation12], 1536
    $region85: #{tpu_custom_call.1} parent=1 // pred_fallthru
      _
    // Predicated region
    $region86: #{tpu_custom_call.1} parent=1 // pred_check
      _
    $region87: #{tpu_custom_call.1} parent=1 // pred_check_branch
      %155 = sbr.rel (0) target = $region89
    $region88: #{tpu_custom_call.1} parent=1 // pred_region
      %156 = dma.done [#allocation12], 1536
    $region89: #{tpu_custom_call.1} parent=1 // pred_fallthru
      _
    // Predicated region
    $region90: #{tpu_custom_call.1} parent=1 // pred_check
      _
    $region91: #{tpu_custom_call.1} parent=1 // pred_check_branch
      %158 = sbr.rel (0) target = $region93
    $region92: #{tpu_custom_call.1} parent=1 // pred_region
      %159 = dma.done [#allocation15], 1536
    $region93: #{tpu_custom_call.1} parent=1 // pred_fallthru
      _
    %v160 = vld [vmem:[#allocation2] sm:$0xff]
    %v161 = vld [vmem:[#allocation2 + $0x8] sm:$0xff]
    %v162 = vld [vmem:[#allocation2 + $0x10] sm:$0xff]
    %v163 = vld [vmem:[#allocation2 + $0x18] sm:$0xff]
    %v164 = vld [vmem:[#allocation5] sm:$0xff]
    %v165 = vld [vmem:[#allocation5 + $0x8] sm:$0xff]
    %v166 = vld [vmem:[#allocation5 + $0x10] sm:$0xff]
    %v167 = vld [vmem:[#allocation5 + $0x18] sm:$0xff]
    %v168 = vld [vmem:[#allocation7] sm:$0xff]
    %v169 = vld [vmem:[#allocation7 + $0x8] sm:$0xff]
    %v170 = vld [vmem:[#allocation7 + $0x10] sm:$0xff]
    %v171 = vld [vmem:[#allocation7 + $0x18] sm:$0xff]
    %v172 = vld [vmem:[#allocation8] sm:$0xff]
    %v173 = vld [vmem:[#allocation8 + $0x8] sm:$0xff]
    %v174 = vld [vmem:[#allocation8 + $0x10] sm:$0xff]
    %v175 = vld [vmem:[#allocation8 + $0x18] sm:$0xff]
    %v176 = vld [vmem:[%s4] sm:$0x1]
    %v178 = vlaneseq
    %v179 = vshrl.u32 %v178, 7
    %v180 = vsub.s32 0, %v179
    %v181 = vrot.slane %v176, %v180
    %vm183 = vcmask 261120
    %v185 = vsel %vm183, %v168, 0
    %v188 = vsel %vm183, %v169, 0
    %v191 = vsel %vm183, %v170, 0
    %v194 = vsel %vm183, %v171, 0
    %196 = vmatprep.subr.mxu0 0.0
    %197 = vmatpush1.msra.mxu0 %v172
    %198 = vmatprep.subr.mxu0 0.0
    %199 = vmatpush1.msra.mxu0 %v173
    %200 = vmatprep.subr.mxu0 0.0
    %201 = vmatpush1.msra.mxu0 %v174
    %202 = vmatprep.subr.mxu0 0.0
    %203 = vmatpush1.msra.mxu0 %v175
    %204 = vmatprep.subr.mxu0 0.0
    %205 = vmatpush1.msra.mxu0 0.0
    %206 = vmatprep.subr.mxu0 0.0
    %207 = vmatpush1.msra.mxu0 0.0
    %208 = vmatprep.subr.mxu0 0.0
    %209 = vmatpush1.msra.mxu0 0.0
    %210 = vmatprep.subr.mxu0 0.0
    %211 = vmatpush1.msra.mxu0 0.0
    %212 = vmatprep.subr.mxu0 0.0
    %213 = vmatpush1.msra.mxu0 0.0
    %214 = vmatprep.subr.mxu0 0.0
    %215 = vmatpush1.msra.mxu0 0.0
    %216 = vmatprep.subr.mxu0 0.0
    %217 = vmatpush1.msra.mxu0 0.0
    %218 = vmatprep.subr.mxu0 0.0
    %219 = vmatpush1.msra.mxu0 0.0
    %220 = vmatprep.subr.mxu0 0.0
    %221 = vmatpush1.msra.mxu0 0.0
    %222 = vmatprep.subr.mxu0 0.0
    %223 = vmatpush1.msra.mxu0 0.0
    %224 = vmatprep.subr.mxu0 0.0
    %225 = vmatpush1.msra.mxu0 0.0
    %226 = vmatprep.subr.mxu0 0.0
    %227 = vmatpush1.msra.mxu0 0.0
    %228 = vmatprep.subr.mxu0 0.0
    %229 = vmatpush1.msra.mxu0 0.0
    %230 = vmatprep.subr.mxu0 0.0
    %231 = vmatpush1.msra.mxu0 0.0
    %232 = vmatprep.subr.mxu0 0.0
    %233 = vmatpush1.msra.mxu0 0.0
    %234 = vmatprep.subr.mxu0 0.0
    %235 = vmatpush1.msra.mxu0 0.0
    %236 = vmatprep.subr.mxu0 0.0
    %237 = vmatpush1.msra.mxu0 0.0
    %238 = vmatprep.subr.mxu0 0.0
    %239 = vmatpush1.msra.mxu0 0.0
    %240 = vmatprep.subr.mxu0 0.0
    %241 = vmatpush1.msra.mxu0 0.0
    %242 = vmatprep.subr.mxu0 0.0
    %243 = vmatpush1.msra.mxu0 0.0
    %244 = vmatprep.subr.mxu0 0.0
    %245 = vmatpush1.msra.mxu0 0.0
    %246 = vmatprep.subr.mxu0 0.0
    %247 = vmatpush1.msra.mxu0 0.0
    %248 = vmatprep.subr.mxu0 0.0
    %249 = vmatpush1.msra.mxu0 0.0
    %250 = vmatprep.subr.mxu0 0.0
    %251 = vmatpush1.msra.mxu0 0.0
    %252 = vmatprep.subr.mxu0 0.0
    %253 = vmatpush1.msra.mxu0 0.0
    %254 = vmatprep.subr.mxu0 0.0
    %255 = vmatpush1.msra.mxu0 0.0
    %256 = vmatprep.subr.mxu0 0.0
    %257 = vmatpush1.msra.mxu0 0.0
    %258 = vmatprep.subr.mxu0 0.0
    %259 = vmatpush1.msra.mxu0 0.0
    %260 = vmatprep.mubr.f32.mxu0 0.0
    %261 = vmatmul.mubr.f32.gmra.mrb[0].mxu0 %v185
    %v262 = vpop.f32.mrb[0].mxu0
    %v263 = vadd.f32 %v181, %v262
    %v264 = vpop.f32.mrb[0].mxu0
    %265 = vmatprep.mubr.f32.mxu0 0.0
    %266 = vmatmul.mubr.f32.gmra.mrb[0].mxu0 %v188
    %v267 = vpop.f32.mrb[0].mxu0
    %v268 = vadd.f32 %v181, %v267
    %v269 = vpop.f32.mrb[0].mxu0
    %270 = vmatprep.mubr.f32.mxu0 0.0
    %271 = vmatmul.mubr.f32.gmra.mrb[0].mxu0 %v191
    %v272 = vpop.f32.mrb[0].mxu0
    %v273 = vadd.f32 %v181, %v272
    %v274 = vpop.f32.mrb[0].mxu0
    %275 = vmatprep.mubr.f32.mxu0 0.0
    %276 = vmatmul.mubr.f32.gmra.mrb[0].mxu0 %v194
    %v277 = vpop.f32.mrb[0].mxu0
    %v278 = vadd.f32 %v181, %v277
    %v279 = vpop.f32.mrb[0].mxu0
    %280 = vdwg.mxu0
    %v281 = vld [vmem:[#allocation10] sm:$0xff]
    %v282 = vld [vmem:[#allocation10 + $0x8] sm:$0xff]
    %v283 = vld [vmem:[#allocation10 + $0x10] sm:$0xff]
    %v284 = vld [vmem:[#allocation10 + $0x18] sm:$0xff]
    %v285 = vld [vmem:[%s6] sm:$0x1]
    %v287 = vlaneseq
    %v288 = vshrl.u32 %v287, 7
    %v289 = vsub.s32 0, %v288
    %v290 = vrot.slane %v285, %v289
    %292 = vmatprep.subr.mxu0 0.0
    %293 = vmatpush1.msra.mxu0 %v281
    %294 = vmatprep.subr.mxu0 0.0
    %295 = vmatpush1.msra.mxu0 %v282
    %296 = vmatprep.subr.mxu0 0.0
    %297 = vmatpush1.msra.mxu0 %v283
    %298 = vmatprep.subr.mxu0 0.0
    %299 = vmatpush1.msra.mxu0 %v284
    %300 = vmatprep.subr.mxu0 0.0
    %301 = vmatpush1.msra.mxu0 0.0
    %302 = vmatprep.subr.mxu0 0.0
    %303 = vmatpush1.msra.mxu0 0.0
    %304 = vmatprep.subr.mxu0 0.0
    %305 = vmatpush1.msra.mxu0 0.0
    %306 = vmatprep.subr.mxu0 0.0
    %307 = vmatpush1.msra.mxu0 0.0
    %308 = vmatprep.subr.mxu0 0.0
    %309 = vmatpush1.msra.mxu0 0.0
    %310 = vmatprep.subr.mxu0 0.0
    %311 = vmatpush1.msra.mxu0 0.0
    %312 = vmatprep.subr.mxu0 0.0
    %313 = vmatpush1.msra.mxu0 0.0
    %314 = vmatprep.subr.mxu0 0.0
    %315 = vmatpush1.msra.mxu0 0.0
    %316 = vmatprep.subr.mxu0 0.0
    %317 = vmatpush1.msra.mxu0 0.0
    %318 = vmatprep.subr.mxu0 0.0
    %319 = vmatpush1.msra.mxu0 0.0
    %320 = vmatprep.subr.mxu0 0.0
    %321 = vmatpush1.msra.mxu0 0.0
    %322 = vmatprep.subr.mxu0 0.0
    %323 = vmatpush1.msra.mxu0 0.0
    %324 = vmatprep.subr.mxu0 0.0
    %325 = vmatpush1.msra.mxu0 0.0
    %326 = vmatprep.subr.mxu0 0.0
    %327 = vmatpush1.msra.mxu0 0.0
    %328 = vmatprep.subr.mxu0 0.0
    %329 = vmatpush1.msra.mxu0 0.0
    %330 = vmatprep.subr.mxu0 0.0
    %331 = vmatpush1.msra.mxu0 0.0
    %332 = vmatprep.subr.mxu0 0.0
    %333 = vmatpush1.msra.mxu0 0.0
    %334 = vmatprep.subr.mxu0 0.0
    %335 = vmatpush1.msra.mxu0 0.0
    %336 = vmatprep.subr.mxu0 0.0
    %337 = vmatpush1.msra.mxu0 0.0
    %338 = vmatprep.subr.mxu0 0.0
    %339 = vmatpush1.msra.mxu0 0.0
    %340 = vmatprep.subr.mxu0 0.0
    %341 = vmatpush1.msra.mxu0 0.0
    %342 = vmatprep.subr.mxu0 0.0
    %343 = vmatpush1.msra.mxu0 0.0
    %344 = vmatprep.subr.mxu0 0.0
    %345 = vmatpush1.msra.mxu0 0.0
    %346 = vmatprep.subr.mxu0 0.0
    %347 = vmatpush1.msra.mxu0 0.0
    %348 = vmatprep.subr.mxu0 0.0
    %349 = vmatpush1.msra.mxu0 0.0
    %350 = vmatprep.subr.mxu0 0.0
    %351 = vmatpush1.msra.mxu0 0.0
    %352 = vmatprep.subr.mxu0 0.0
    %353 = vmatpush1.msra.mxu0 0.0
    %354 = vmatprep.subr.mxu0 0.0
    %355 = vmatpush1.msra.mxu0 0.0
    %356 = vmatprep.mubr.f32.mxu0 0.0
    %357 = vmatmul.mubr.f32.gmra.mrb[0].mxu0 %v185
    %v358 = vpop.f32.mrb[0].mxu0
    %v359 = vadd.f32 %v290, %v358
    %v360 = vpop.f32.mrb[0].mxu0
    %361 = vmatprep.mubr.f32.mxu0 0.0
    %362 = vmatmul.mubr.f32.gmra.mrb[0].mxu0 %v188
    %v363 = vpop.f32.mrb[0].mxu0
    %v364 = vadd.f32 %v290, %v363
    %v365 = vpop.f32.mrb[0].mxu0
    %366 = vmatprep.mubr.f32.mxu0 0.0
    %367 = vmatmul.mubr.f32.gmra.mrb[0].mxu0 %v191
    %v368 = vpop.f32.mrb[0].mxu0
    %v369 = vadd.f32 %v290, %v368
    %v370 = vpop.f32.mrb[0].mxu0
    %371 = vmatprep.mubr.f32.mxu0 0.0
    %372 = vmatmul.mubr.f32.gmra.mrb[0].mxu0 %v194
    %v373 = vpop.f32.mrb[0].mxu0
    %v374 = vadd.f32 %v290, %v373
    %v375 = vpop.f32.mrb[0].mxu0
    %376 = vdwg.mxu0
    %vm377 = vcmask 64512
    %v379 = vsel %vm377, %v160, 0
    %381 = vmatprep.subr.mxu0 0.0
    %382 = vmatpush1.msra.mxu0 %v263
    %383 = vmatprep.subr.mxu0 0.0
    %384 = vmatpush1.msra.mxu0 0.0
    %385 = vmatprep.subr.mxu0 0.0
    %386 = vmatpush1.msra.mxu0 0.0
    %387 = vmatprep.subr.mxu0 0.0
    %388 = vmatpush1.msra.mxu0 0.0
    %389 = vmatprep.subr.mxu0 0.0
    %390 = vmatpush1.msra.mxu0 0.0
    %391 = vmatprep.subr.mxu0 0.0
    %392 = vmatpush1.msra.mxu0 0.0
    %393 = vmatprep.subr.mxu0 0.0
    %394 = vmatpush1.msra.mxu0 0.0
    %395 = vmatprep.subr.mxu0 0.0
    %396 = vmatpush1.msra.mxu0 0.0
    %397 = vmatprep.subr.mxu0 0.0
    %398 = vmatpush1.msra.mxu0 0.0
    %399 = vmatprep.subr.mxu0 0.0
    %400 = vmatpush1.msra.mxu0 0.0
    %401 = vmatprep.subr.mxu0 0.0
    %402 = vmatpush1.msra.mxu0 0.0
    %403 = vmatprep.subr.mxu0 0.0
    %404 = vmatpush1.msra.mxu0 0.0
    %405 = vmatprep.subr.mxu0 0.0
    %406 = vmatpush1.msra.mxu0 0.0
    %407 = vmatprep.subr.mxu0 0.0
    %408 = vmatpush1.msra.mxu0 0.0
    %409 = vmatprep.subr.mxu0 0.0
    %410 = vmatpush1.msra.mxu0 0.0
    %411 = vmatprep.subr.mxu0 0.0
    %412 = vmatpush1.msra.mxu0 0.0
    %413 = vmatprep.subr.mxu0 0.0
    %414 = vmatpush1.msra.mxu0 0.0
    %415 = vmatprep.subr.mxu0 0.0
    %416 = vmatpush1.msra.mxu0 0.0
    %417 = vmatprep.subr.mxu0 0.0
    %418 = vmatpush1.msra.mxu0 0.0
    %419 = vmatprep.subr.mxu0 0.0
    %420 = vmatpush1.msra.mxu0 0.0
    %421 = vmatprep.subr.mxu0 0.0
    %422 = vmatpush1.msra.mxu0 0.0
    %423 = vmatprep.subr.mxu0 0.0
    %424 = vmatpush1.msra.mxu0 0.0
    %425 = vmatprep.subr.mxu0 0.0
    %426 = vmatpush1.msra.mxu0 0.0
    %427 = vmatprep.subr.mxu0 0.0
    %428 = vmatpush1.msra.mxu0 0.0
    %429 = vmatprep.subr.mxu0 0.0
    %430 = vmatpush1.msra.mxu0 0.0
    %431 = vmatprep.subr.mxu0 0.0
    %432 = vmatpush1.msra.mxu0 0.0
    %433 = vmatprep.subr.mxu0 0.0
    %434 = vmatpush1.msra.mxu0 0.0
    %435 = vmatprep.subr.mxu0 0.0
    %436 = vmatpush1.msra.mxu0 0.0
    %437 = vmatprep.subr.mxu0 0.0
    %438 = vmatpush1.msra.mxu0 0.0
    %439 = vmatprep.subr.mxu0 0.0
    %440 = vmatpush1.msra.mxu0 0.0
    %441 = vmatprep.subr.mxu0 0.0
    %442 = vmatpush1.msra.mxu0 0.0
    %443 = vmatprep.subr.mxu0 0.0
    %444 = vmatpush1.msra.mxu0 0.0
    %445 = vmatprep.mubr.f32.mxu0 0.0
    %446 = vmatmul.mubr.f32.gmra.mrb[0].mxu0 %v379
    %v447 = vpop.f32.mrb[0].mxu0
    %v448 = vadd.f32 0.0, %v447
    %v449 = vpop.f32.mrb[0].mxu0
    %450 = vdwg.mxu0
    %v452 = vsel %vm377, %v161, 0
    %454 = vmatprep.subr.mxu0 0.0
    %455 = vmatpush1.msra.mxu0 %v268
    %456 = vmatprep.subr.mxu0 0.0
    %457 = vmatpush1.msra.mxu0 0.0
    %458 = vmatprep.subr.mxu0 0.0
    %459 = vmatpush1.msra.mxu0 0.0
    %460 = vmatprep.subr.mxu0 0.0
    %461 = vmatpush1.msra.mxu0 0.0
    %462 = vmatprep.subr.mxu0 0.0
    %463 = vmatpush1.msra.mxu0 0.0
    %464 = vmatprep.subr.mxu0 0.0
    %465 = vmatpush1.msra.mxu0 0.0
    %466 = vmatprep.subr.mxu0 0.0
    %467 = vmatpush1.msra.mxu0 0.0
    %468 = vmatprep.subr.mxu0 0.0
    %469 = vmatpush1.msra.mxu0 0.0
    %470 = vmatprep.subr.mxu0 0.0
    %471 = vmatpush1.msra.mxu0 0.0
    %472 = vmatprep.subr.mxu0 0.0
    %473 = vmatpush1.msra.mxu0 0.0
    %474 = vmatprep.subr.mxu0 0.0
    %475 = vmatpush1.msra.mxu0 0.0
    %476 = vmatprep.subr.mxu0 0.0
    %477 = vmatpush1.msra.mxu0 0.0
    %478 = vmatprep.subr.mxu0 0.0
    %479 = vmatpush1.msra.mxu0 0.0
    %480 = vmatprep.subr.mxu0 0.0
    %481 = vmatpush1.msra.mxu0 0.0
    %482 = vmatprep.subr.mxu0 0.0
    %483 = vmatpush1.msra.mxu0 0.0
    %484 = vmatprep.subr.mxu0 0.0
    %485 = vmatpush1.msra.mxu0 0.0
    %486 = vmatprep.subr.mxu0 0.0
    %487 = vmatpush1.msra.mxu0 0.0
    %488 = vmatprep.subr.mxu0 0.0
    %489 = vmatpush1.msra.mxu0 0.0
    %490 = vmatprep.subr.mxu0 0.0
    %491 = vmatpush1.msra.mxu0 0.0
    %492 = vmatprep.subr.mxu0 0.0
    %493 = vmatpush1.msra.mxu0 0.0
    %494 = vmatprep.subr.mxu0 0.0
    %495 = vmatpush1.msra.mxu0 0.0
    %496 = vmatprep.subr.mxu0 0.0
    %497 = vmatpush1.msra.mxu0 0.0
    %498 = vmatprep.subr.mxu0 0.0
    %499 = vmatpush1.msra.mxu0 0.0
    %500 = vmatprep.subr.mxu0 0.0
    %501 = vmatpush1.msra.mxu0 0.0
    %502 = vmatprep.subr.mxu0 0.0
    %503 = vmatpush1.msra.mxu0 0.0
    %504 = vmatprep.subr.mxu0 0.0
    %505 = vmatpush1.msra.mxu0 0.0
    %506 = vmatprep.subr.mxu0 0.0
    %507 = vmatpush1.msra.mxu0 0.0
    %508 = vmatprep.subr.mxu0 0.0
    %509 = vmatpush1.msra.mxu0 0.0
    %510 = vmatprep.subr.mxu0 0.0
    %511 = vmatpush1.msra.mxu0 0.0
    %512 = vmatprep.subr.mxu0 0.0
    %513 = vmatpush1.msra.mxu0 0.0
    %514 = vmatprep.subr.mxu0 0.0
    %515 = vmatpush1.msra.mxu0 0.0
    %516 = vmatprep.subr.mxu0 0.0
    %517 = vmatpush1.msra.mxu0 0.0
    %518 = vmatprep.mubr.f32.mxu0 0.0
    %519 = vmatmul.mubr.f32.gmra.mrb[0].mxu0 %v452
    %v520 = vpop.f32.mrb[0].mxu0
    %v521 = vadd.f32 0.0, %v520
    %v522 = vpop.f32.mrb[0].mxu0
    %523 = vdwg.mxu0
    %v525 = vsel %vm377, %v162, 0
    %527 = vmatprep.subr.mxu0 0.0
    %528 = vmatpush1.msra.mxu0 %v273
    %529 = vmatprep.subr.mxu0 0.0
    %530 = vmatpush1.msra.mxu0 0.0
    %531 = vmatprep.subr.mxu0 0.0
    %532 = vmatpush1.msra.mxu0 0.0
    %533 = vmatprep.subr.mxu0 0.0
    %534 = vmatpush1.msra.mxu0 0.0
    %535 = vmatprep.subr.mxu0 0.0
    %536 = vmatpush1.msra.mxu0 0.0
    %537 = vmatprep.subr.mxu0 0.0
    %538 = vmatpush1.msra.mxu0 0.0
    %539 = vmatprep.subr.mxu0 0.0
    %540 = vmatpush1.msra.mxu0 0.0
    %541 = vmatprep.subr.mxu0 0.0
    %542 = vmatpush1.msra.mxu0 0.0
    %543 = vmatprep.subr.mxu0 0.0
    %544 = vmatpush1.msra.mxu0 0.0
    %545 = vmatprep.subr.mxu0 0.0
    %546 = vmatpush1.msra.mxu0 0.0
    %547 = vmatprep.subr.mxu0 0.0
    %548 = vmatpush1.msra.mxu0 0.0
    %549 = vmatprep.subr.mxu0 0.0
    %550 = vmatpush1.msra.mxu0 0.0
    %551 = vmatprep.subr.mxu0 0.0
    %552 = vmatpush1.msra.mxu0 0.0
    %553 = vmatprep.subr.mxu0 0.0
    %554 = vmatpush1.msra.mxu0 0.0
    %555 = vmatprep.subr.mxu0 0.0
    %556 = vmatpush1.msra.mxu0 0.0
    %557 = vmatprep.subr.mxu0 0.0
    %558 = vmatpush1.msra.mxu0 0.0
    %559 = vmatprep.subr.mxu0 0.0
    %560 = vmatpush1.msra.mxu0 0.0
    %561 = vmatprep.subr.mxu0 0.0
    %562 = vmatpush1.msra.mxu0 0.0
    %563 = vmatprep.subr.mxu0 0.0
    %564 = vmatpush1.msra.mxu0 0.0
    %565 = vmatprep.subr.mxu0 0.0
    %566 = vmatpush1.msra.mxu0 0.0
    %567 = vmatprep.subr.mxu0 0.0
    %568 = vmatpush1.msra.mxu0 0.0
    %569 = vmatprep.subr.mxu0 0.0
    %570 = vmatpush1.msra.mxu0 0.0
    %571 = vmatprep.subr.mxu0 0.0
    %572 = vmatpush1.msra.mxu0 0.0
    %573 = vmatprep.subr.mxu0 0.0
    %574 = vmatpush1.msra.mxu0 0.0
    %575 = vmatprep.subr.mxu0 0.0
    %576 = vmatpush1.msra.mxu0 0.0
    %577 = vmatprep.subr.mxu0 0.0
    %578 = vmatpush1.msra.mxu0 0.0
    %579 = vmatprep.subr.mxu0 0.0
    %580 = vmatpush1.msra.mxu0 0.0
    %581 = vmatprep.subr.mxu0 0.0
    %582 = vmatpush1.msra.mxu0 0.0
    %583 = vmatprep.subr.mxu0 0.0
    %584 = vmatpush1.msra.mxu0 0.0
    %585 = vmatprep.subr.mxu0 0.0
    %586 = vmatpush1.msra.mxu0 0.0
    %587 = vmatprep.subr.mxu0 0.0
    %588 = vmatpush1.msra.mxu0 0.0
    %589 = vmatprep.subr.mxu0 0.0
    %590 = vmatpush1.msra.mxu0 0.0
    %591 = vmatprep.mubr.f32.mxu0 0.0
    %592 = vmatmul.mubr.f32.gmra.mrb[0].mxu0 %v525
    %v593 = vpop.f32.mrb[0].mxu0
    %v594 = vadd.f32 0.0, %v593
    %v595 = vpop.f32.mrb[0].mxu0
    %596 = vdwg.mxu0
    %v598 = vsel %vm377, %v163, 0
    %600 = vmatprep.subr.mxu0 0.0
    %601 = vmatpush1.msra.mxu0 %v278
    %602 = vmatprep.subr.mxu0 0.0
    %603 = vmatpush1.msra.mxu0 0.0
    %604 = vmatprep.subr.mxu0 0.0
    %605 = vmatpush1.msra.mxu0 0.0
    %606 = vmatprep.subr.mxu0 0.0
    %607 = vmatpush1.msra.mxu0 0.0
    %608 = vmatprep.subr.mxu0 0.0
    %609 = vmatpush1.msra.mxu0 0.0
    %610 = vmatprep.subr.mxu0 0.0
    %611 = vmatpush1.msra.mxu0 0.0
    %612 = vmatprep.subr.mxu0 0.0
    %613 = vmatpush1.msra.mxu0 0.0
    %614 = vmatprep.subr.mxu0 0.0
    %615 = vmatpush1.msra.mxu0 0.0
    %616 = vmatprep.subr.mxu0 0.0
    %617 = vmatpush1.msra.mxu0 0.0
    %618 = vmatprep.subr.mxu0 0.0
    %619 = vmatpush1.msra.mxu0 0.0
    %620 = vmatprep.subr.mxu0 0.0
    %621 = vmatpush1.msra.mxu0 0.0
    %622 = vmatprep.subr.mxu0 0.0
    %623 = vmatpush1.msra.mxu0 0.0
    %624 = vmatprep.subr.mxu0 0.0
    %625 = vmatpush1.msra.mxu0 0.0
    %626 = vmatprep.subr.mxu0 0.0
    %627 = vmatpush1.msra.mxu0 0.0
    %628 = vmatprep.subr.mxu0 0.0
    %629 = vmatpush1.msra.mxu0 0.0
    %630 = vmatprep.subr.mxu0 0.0
    %631 = vmatpush1.msra.mxu0 0.0
    %632 = vmatprep.subr.mxu0 0.0
    %633 = vmatpush1.msra.mxu0 0.0
    %634 = vmatprep.subr.mxu0 0.0
    %635 = vmatpush1.msra.mxu0 0.0
    %636 = vmatprep.subr.mxu0 0.0
    %637 = vmatpush1.msra.mxu0 0.0
    %638 = vmatprep.subr.mxu0 0.0
    %639 = vmatpush1.msra.mxu0 0.0
    %640 = vmatprep.subr.mxu0 0.0
    %641 = vmatpush1.msra.mxu0 0.0
    %642 = vmatprep.subr.mxu0 0.0
    %643 = vmatpush1.msra.mxu0 0.0
    %644 = vmatprep.subr.mxu0 0.0
    %645 = vmatpush1.msra.mxu0 0.0
    %646 = vmatprep.subr.mxu0 0.0
    %647 = vmatpush1.msra.mxu0 0.0
    %648 = vmatprep.subr.mxu0 0.0
    %649 = vmatpush1.msra.mxu0 0.0
    %650 = vmatprep.subr.mxu0 0.0
    %651 = vmatpush1.msra.mxu0 0.0
    %652 = vmatprep.subr.mxu0 0.0
    %653 = vmatpush1.msra.mxu0 0.0
    %654 = vmatprep.subr.mxu0 0.0
    %655 = vmatpush1.msra.mxu0 0.0
    %656 = vmatprep.subr.mxu0 0.0
    %657 = vmatpush1.msra.mxu0 0.0
    %658 = vmatprep.subr.mxu0 0.0
    %659 = vmatpush1.msra.mxu0 0.0
    %660 = vmatprep.subr.mxu0 0.0
    %661 = vmatpush1.msra.mxu0 0.0
    %662 = vmatprep.subr.mxu0 0.0
    %663 = vmatpush1.msra.mxu0 0.0
    %664 = vmatprep.mubr.f32.mxu0 0.0
    %665 = vmatmul.mubr.f32.gmra.mrb[0].mxu0 %v598
    %v666 = vpop.f32.mrb[0].mxu0
    %v667 = vadd.f32 0.0, %v666
    %v668 = vpop.f32.mrb[0].mxu0
    %669 = vdwg.mxu0
    %v670 = vld [vmem:[%s7] sm:$0x1]
    %v672 = vlaneseq
    %v673 = vshrl.u32 %v672, 7
    %v674 = vsub.s32 0, %v673
    %v675 = vrot.slane %v670, %v674
    %v677 = vadd.f32 %v448, %v675
    %v678 = vadd.f32 %v521, %v675
    %v679 = vadd.f32 %v594, %v675
    %v680 = vadd.f32 %v667, %v675
    %v682 = vsel %vm377, %v164, 0
    %684 = vmatprep.subr.mxu0 0.0
    %685 = vmatpush1.msra.mxu0 %v359
    %686 = vmatprep.subr.mxu0 0.0
    %687 = vmatpush1.msra.mxu0 0.0
    %688 = vmatprep.subr.mxu0 0.0
    %689 = vmatpush1.msra.mxu0 0.0
    %690 = vmatprep.subr.mxu0 0.0
    %691 = vmatpush1.msra.mxu0 0.0
    %692 = vmatprep.subr.mxu0 0.0
    %693 = vmatpush1.msra.mxu0 0.0
    %694 = vmatprep.subr.mxu0 0.0
    %695 = vmatpush1.msra.mxu0 0.0
    %696 = vmatprep.subr.mxu0 0.0
    %697 = vmatpush1.msra.mxu0 0.0
    %698 = vmatprep.subr.mxu0 0.0
    %699 = vmatpush1.msra.mxu0 0.0
    %700 = vmatprep.subr.mxu0 0.0
    %701 = vmatpush1.msra.mxu0 0.0
    %702 = vmatprep.subr.mxu0 0.0
    %703 = vmatpush1.msra.mxu0 0.0
    %704 = vmatprep.subr.mxu0 0.0
    %705 = vmatpush1.msra.mxu0 0.0
    %706 = vmatprep.subr.mxu0 0.0
    %707 = vmatpush1.msra.mxu0 0.0
    %708 = vmatprep.subr.mxu0 0.0
    %709 = vmatpush1.msra.mxu0 0.0
    %710 = vmatprep.subr.mxu0 0.0
    %711 = vmatpush1.msra.mxu0 0.0
    %712 = vmatprep.subr.mxu0 0.0
    %713 = vmatpush1.msra.mxu0 0.0
    %714 = vmatprep.subr.mxu0 0.0
    %715 = vmatpush1.msra.mxu0 0.0
    %716 = vmatprep.subr.mxu0 0.0
    %717 = vmatpush1.msra.mxu0 0.0
    %718 = vmatprep.subr.mxu0 0.0
    %719 = vmatpush1.msra.mxu0 0.0
    %720 = vmatprep.subr.mxu0 0.0
    %721 = vmatpush1.msra.mxu0 0.0
    %722 = vmatprep.subr.mxu0 0.0
    %723 = vmatpush1.msra.mxu0 0.0
    %724 = vmatprep.subr.mxu0 0.0
    %725 = vmatpush1.msra.mxu0 0.0
    %726 = vmatprep.subr.mxu0 0.0
    %727 = vmatpush1.msra.mxu0 0.0
    %728 = vmatprep.subr.mxu0 0.0
    %729 = vmatpush1.msra.mxu0 0.0
    %730 = vmatprep.subr.mxu0 0.0
    %731 = vmatpush1.msra.mxu0 0.0
    %732 = vmatprep.subr.mxu0 0.0
    %733 = vmatpush1.msra.mxu0 0.0
    %734 = vmatprep.subr.mxu0 0.0
    %735 = vmatpush1.msra.mxu0 0.0
    %736 = vmatprep.subr.mxu0 0.0
    %737 = vmatpush1.msra.mxu0 0.0
    %738 = vmatprep.subr.mxu0 0.0
    %739 = vmatpush1.msra.mxu0 0.0
    %740 = vmatprep.subr.mxu0 0.0
    %741 = vmatpush1.msra.mxu0 0.0
    %742 = vmatprep.subr.mxu0 0.0
    %743 = vmatpush1.msra.mxu0 0.0
    %744 = vmatprep.subr.mxu0 0.0
    %745 = vmatpush1.msra.mxu0 0.0
    %746 = vmatprep.subr.mxu0 0.0
    %747 = vmatpush1.msra.mxu0 0.0
    %748 = vmatprep.mubr.f32.mxu0 0.0
    %749 = vmatmul.mubr.f32.gmra.mrb[0].mxu0 %v682
    %v750 = vpop.f32.mrb[0].mxu0
    %v751 = vadd.f32 0.0, %v750
    %v752 = vpop.f32.mrb[0].mxu0
    %753 = vdwg.mxu0
    %v755 = vsel %vm377, %v165, 0
    %757 = vmatprep.subr.mxu0 0.0
    %758 = vmatpush1.msra.mxu0 %v364
    %759 = vmatprep.subr.mxu0 0.0
    %760 = vmatpush1.msra.mxu0 0.0
    %761 = vmatprep.subr.mxu0 0.0
    %762 = vmatpush1.msra.mxu0 0.0
    %763 = vmatprep.subr.mxu0 0.0
    %764 = vmatpush1.msra.mxu0 0.0
    %765 = vmatprep.subr.mxu0 0.0
    %766 = vmatpush1.msra.mxu0 0.0
    %767 = vmatprep.subr.mxu0 0.0
    %768 = vmatpush1.msra.mxu0 0.0
    %769 = vmatprep.subr.mxu0 0.0
    %770 = vmatpush1.msra.mxu0 0.0
    %771 = vmatprep.subr.mxu0 0.0
    %772 = vmatpush1.msra.mxu0 0.0
    %773 = vmatprep.subr.mxu0 0.0
    %774 = vmatpush1.msra.mxu0 0.0
    %775 = vmatprep.subr.mxu0 0.0
    %776 = vmatpush1.msra.mxu0 0.0
    %777 = vmatprep.subr.mxu0 0.0
    %778 = vmatpush1.msra.mxu0 0.0
    %779 = vmatprep.subr.mxu0 0.0
    %780 = vmatpush1.msra.mxu0 0.0
    %781 = vmatprep.subr.mxu0 0.0
    %782 = vmatpush1.msra.mxu0 0.0
    %783 = vmatprep.subr.mxu0 0.0
    %784 = vmatpush1.msra.mxu0 0.0
    %785 = vmatprep.subr.mxu0 0.0
    %786 = vmatpush1.msra.mxu0 0.0
    %787 = vmatprep.subr.mxu0 0.0
    %788 = vmatpush1.msra.mxu0 0.0
    %789 = vmatprep.subr.mxu0 0.0
    %790 = vmatpush1.msra.mxu0 0.0
    %791 = vmatprep.subr.mxu0 0.0
    %792 = vmatpush1.msra.mxu0 0.0
    %793 = vmatprep.subr.mxu0 0.0
    %794 = vmatpush1.msra.mxu0 0.0
    %795 = vmatprep.subr.mxu0 0.0
    %796 = vmatpush1.msra.mxu0 0.0
    %797 = vmatprep.subr.mxu0 0.0
    %798 = vmatpush1.msra.mxu0 0.0
    %799 = vmatprep.subr.mxu0 0.0
    %800 = vmatpush1.msra.mxu0 0.0
    %801 = vmatprep.subr.mxu0 0.0
    %802 = vmatpush1.msra.mxu0 0.0
    %803 = vmatprep.subr.mxu0 0.0
    %804 = vmatpush1.msra.mxu0 0.0
    %805 = vmatprep.subr.mxu0 0.0
    %806 = vmatpush1.msra.mxu0 0.0
    %807 = vmatprep.subr.mxu0 0.0
    %808 = vmatpush1.msra.mxu0 0.0
    %809 = vmatprep.subr.mxu0 0.0
    %810 = vmatpush1.msra.mxu0 0.0
    %811 = vmatprep.subr.mxu0 0.0
    %812 = vmatpush1.msra.mxu0 0.0
    %813 = vmatprep.subr.mxu0 0.0
    %814 = vmatpush1.msra.mxu0 0.0
    %815 = vmatprep.subr.mxu0 0.0
    %816 = vmatpush1.msra.mxu0 0.0
    %817 = vmatprep.subr.mxu0 0.0
    %818 = vmatpush1.msra.mxu0 0.0
    %819 = vmatprep.subr.mxu0 0.0
    %820 = vmatpush1.msra.mxu0 0.0
    %821 = vmatprep.mubr.f32.mxu0 0.0
    %822 = vmatmul.mubr.f32.gmra.mrb[0].mxu0 %v755
    %v823 = vpop.f32.mrb[0].mxu0
    %v824 = vadd.f32 0.0, %v823
    %v825 = vpop.f32.mrb[0].mxu0
    %826 = vdwg.mxu0
    %v828 = vsel %vm377, %v166, 0
    %830 = vmatprep.subr.mxu0 0.0
    %831 = vmatpush1.msra.mxu0 %v369
    %832 = vmatprep.subr.mxu0 0.0
    %833 = vmatpush1.msra.mxu0 0.0
    %834 = vmatprep.subr.mxu0 0.0
    %835 = vmatpush1.msra.mxu0 0.0
    %836 = vmatprep.subr.mxu0 0.0
    %837 = vmatpush1.msra.mxu0 0.0
    %838 = vmatprep.subr.mxu0 0.0
    %839 = vmatpush1.msra.mxu0 0.0
    %840 = vmatprep.subr.mxu0 0.0
    %841 = vmatpush1.msra.mxu0 0.0
    %842 = vmatprep.subr.mxu0 0.0
    %843 = vmatpush1.msra.mxu0 0.0
    %844 = vmatprep.subr.mxu0 0.0
    %845 = vmatpush1.msra.mxu0 0.0
    %846 = vmatprep.subr.mxu0 0.0
    %847 = vmatpush1.msra.mxu0 0.0
    %848 = vmatprep.subr.mxu0 0.0
    %849 = vmatpush1.msra.mxu0 0.0
    %850 = vmatprep.subr.mxu0 0.0
    %851 = vmatpush1.msra.mxu0 0.0
    %852 = vmatprep.subr.mxu0 0.0
    %853 = vmatpush1.msra.mxu0 0.0
    %854 = vmatprep.subr.mxu0 0.0
    %855 = vmatpush1.msra.mxu0 0.0
    %856 = vmatprep.subr.mxu0 0.0
    %857 = vmatpush1.msra.mxu0 0.0
    %858 = vmatprep.subr.mxu0 0.0
    %859 = vmatpush1.msra.mxu0 0.0
    %860 = vmatprep.subr.mxu0 0.0
    %861 = vmatpush1.msra.mxu0 0.0
    %862 = vmatprep.subr.mxu0 0.0
    %863 = vmatpush1.msra.mxu0 0.0
    %864 = vmatprep.subr.mxu0 0.0
    %865 = vmatpush1.msra.mxu0 0.0
    %866 = vmatprep.subr.mxu0 0.0
    %867 = vmatpush1.msra.mxu0 0.0
    %868 = vmatprep.subr.mxu0 0.0
    %869 = vmatpush1.msra.mxu0 0.0
    %870 = vmatprep.subr.mxu0 0.0
    %871 = vmatpush1.msra.mxu0 0.0
    %872 = vmatprep.subr.mxu0 0.0
    %873 = vmatpush1.msra.mxu0 0.0
    %874 = vmatprep.subr.mxu0 0.0
    %875 = vmatpush1.msra.mxu0 0.0
    %876 = vmatprep.subr.mxu0 0.0
    %877 = vmatpush1.msra.mxu0 0.0
    %878 = vmatprep.subr.mxu0 0.0
    %879 = vmatpush1.msra.mxu0 0.0
    %880 = vmatprep.subr.mxu0 0.0
    %881 = vmatpush1.msra.mxu0 0.0
    %882 = vmatprep.subr.mxu0 0.0
    %883 = vmatpush1.msra.mxu0 0.0
    %884 = vmatprep.subr.mxu0 0.0
    %885 = vmatpush1.msra.mxu0 0.0
    %886 = vmatprep.subr.mxu0 0.0
    %887 = vmatpush1.msra.mxu0 0.0
    %888 = vmatprep.subr.mxu0 0.0
    %889 = vmatpush1.msra.mxu0 0.0
    %890 = vmatprep.subr.mxu0 0.0
    %891 = vmatpush1.msra.mxu0 0.0
    %892 = vmatprep.subr.mxu0 0.0
    %893 = vmatpush1.msra.mxu0 0.0
    %894 = vmatprep.mubr.f32.mxu0 0.0
    %895 = vmatmul.mubr.f32.gmra.mrb[0].mxu0 %v828
    %v896 = vpop.f32.mrb[0].mxu0
    %v897 = vadd.f32 0.0, %v896
    %v898 = vpop.f32.mrb[0].mxu0
    %899 = vdwg.mxu0
    %v901 = vsel %vm377, %v167, 0
    %903 = vmatprep.subr.mxu0 0.0
    %904 = vmatpush1.msra.mxu0 %v374
    %905 = vmatprep.subr.mxu0 0.0
    %906 = vmatpush1.msra.mxu0 0.0
    %907 = vmatprep.subr.mxu0 0.0
    %908 = vmatpush1.msra.mxu0 0.0
    %909 = vmatprep.subr.mxu0 0.0
    %910 = vmatpush1.msra.mxu0 0.0
    %911 = vmatprep.subr.mxu0 0.0
    %912 = vmatpush1.msra.mxu0 0.0
    %913 = vmatprep.subr.mxu0 0.0
    %914 = vmatpush1.msra.mxu0 0.0
    %915 = vmatprep.subr.mxu0 0.0
    %916 = vmatpush1.msra.mxu0 0.0
    %917 = vmatprep.subr.mxu0 0.0
    %918 = vmatpush1.msra.mxu0 0.0
    %919 = vmatprep.subr.mxu0 0.0
    %920 = vmatpush1.msra.mxu0 0.0
    %921 = vmatprep.subr.mxu0 0.0
    %922 = vmatpush1.msra.mxu0 0.0
    %923 = vmatprep.subr.mxu0 0.0
    %924 = vmatpush1.msra.mxu0 0.0
    %925 = vmatprep.subr.mxu0 0.0
    %926 = vmatpush1.msra.mxu0 0.0
    %927 = vmatprep.subr.mxu0 0.0
    %928 = vmatpush1.msra.mxu0 0.0
    %929 = vmatprep.subr.mxu0 0.0
    %930 = vmatpush1.msra.mxu0 0.0
    %931 = vmatprep.subr.mxu0 0.0
    %932 = vmatpush1.msra.mxu0 0.0
    %933 = vmatprep.subr.mxu0 0.0
    %934 = vmatpush1.msra.mxu0 0.0
    %935 = vmatprep.subr.mxu0 0.0
    %936 = vmatpush1.msra.mxu0 0.0
    %937 = vmatprep.subr.mxu0 0.0
    %938 = vmatpush1.msra.mxu0 0.0
    %939 = vmatprep.subr.mxu0 0.0
    %940 = vmatpush1.msra.mxu0 0.0
    %941 = vmatprep.subr.mxu0 0.0
    %942 = vmatpush1.msra.mxu0 0.0
    %943 = vmatprep.subr.mxu0 0.0
    %944 = vmatpush1.msra.mxu0 0.0
    %945 = vmatprep.subr.mxu0 0.0
    %946 = vmatpush1.msra.mxu0 0.0
    %947 = vmatprep.subr.mxu0 0.0
    %948 = vmatpush1.msra.mxu0 0.0
    %949 = vmatprep.subr.mxu0 0.0
    %950 = vmatpush1.msra.mxu0 0.0
    %951 = vmatprep.subr.mxu0 0.0
    %952 = vmatpush1.msra.mxu0 0.0
    %953 = vmatprep.subr.mxu0 0.0
    %954 = vmatpush1.msra.mxu0 0.0
    %955 = vmatprep.subr.mxu0 0.0
    %956 = vmatpush1.msra.mxu0 0.0
    %957 = vmatprep.subr.mxu0 0.0
    %958 = vmatpush1.msra.mxu0 0.0
    %959 = vmatprep.subr.mxu0 0.0
    %960 = vmatpush1.msra.mxu0 0.0
    %961 = vmatprep.subr.mxu0 0.0
    %962 = vmatpush1.msra.mxu0 0.0
    %963 = vmatprep.subr.mxu0 0.0
    %964 = vmatpush1.msra.mxu0 0.0
    %965 = vmatprep.subr.mxu0 0.0
    %966 = vmatpush1.msra.mxu0 0.0
    %967 = vmatprep.mubr.f32.mxu0 0.0
    %968 = vmatmul.mubr.f32.gmra.mrb[0].mxu0 %v901
    %v969 = vpop.f32.mrb[0].mxu0
    %v970 = vadd.f32 0.0, %v969
    %v971 = vpop.f32.mrb[0].mxu0
    %972 = vdwg.mxu0
    %v973 = vld [vmem:[%s8] sm:$0x1]
    %v975 = vlaneseq
    %v976 = vshrl.u32 %v975, 7
    %v977 = vsub.s32 0, %v976
    %v978 = vrot.slane %v973, %v977
    %v980 = vadd.f32 %v751, %v978
    %v981 = vadd.f32 %v824, %v978
    %v982 = vadd.f32 %v897, %v978
    %v983 = vadd.f32 %v970, %v978
    %v984 = vld [vmem:[#allocation11] sm:$0xff]
    %v985 = vld [vmem:[#allocation11 + $0x8] sm:$0xff]
    %v986 = vld [vmem:[#allocation11 + $0x10] sm:$0xff]
    %v987 = vld [vmem:[#allocation11 + $0x18] sm:$0xff]
    %v988 = vld [vmem:[#allocation13] sm:$0xff]
    %v989 = vld [vmem:[#allocation13 + $0x8] sm:$0xff]
    %v990 = vld [vmem:[#allocation13 + $0x10] sm:$0xff]
    %v991 = vld [vmem:[#allocation13 + $0x18] sm:$0xff]
    %v993 = vsel %vm183, %v980, 0
    %v996 = vsel %vm183, %v981, 0
    %v999 = vsel %vm183, %v982, 0
    %v1002 = vsel %vm183, %v983, 0
    %1004 = vmatprep.subr.mxu0 0.0
    %1005 = vmatpush1.msra.mxu0 %v988
    %1006 = vmatprep.subr.mxu0 0.0
    %1007 = vmatpush1.msra.mxu0 %v989
    %1008 = vmatprep.subr.mxu0 0.0
    %1009 = vmatpush1.msra.mxu0 %v990
    %1010 = vmatprep.subr.mxu0 0.0
    %1011 = vmatpush1.msra.mxu0 %v991
    %1012 = vmatprep.subr.mxu0 0.0
    %1013 = vmatpush1.msra.mxu0 0.0
    %1014 = vmatprep.subr.mxu0 0.0
    %1015 = vmatpush1.msra.mxu0 0.0
    %1016 = vmatprep.subr.mxu0 0.0
    %1017 = vmatpush1.msra.mxu0 0.0
    %1018 = vmatprep.subr.mxu0 0.0
    %1019 = vmatpush1.msra.mxu0 0.0
    %1020 = vmatprep.subr.mxu0 0.0
    %1021 = vmatpush1.msra.mxu0 0.0
    %1022 = vmatprep.subr.mxu0 0.0
    %1023 = vmatpush1.msra.mxu0 0.0
    %1024 = vmatprep.subr.mxu0 0.0
    %1025 = vmatpush1.msra.mxu0 0.0
    %1026 = vmatprep.subr.mxu0 0.0
    %1027 = vmatpush1.msra.mxu0 0.0
    %1028 = vmatprep.subr.mxu0 0.0
    %1029 = vmatpush1.msra.mxu0 0.0
    %1030 = vmatprep.subr.mxu0 0.0
    %1031 = vmatpush1.msra.mxu0 0.0
    %1032 = vmatprep.subr.mxu0 0.0
    %1033 = vmatpush1.msra.mxu0 0.0
    %1034 = vmatprep.subr.mxu0 0.0
    %1035 = vmatpush1.msra.mxu0 0.0
    %1036 = vmatprep.subr.mxu0 0.0
    %1037 = vmatpush1.msra.mxu0 0.0
    %1038 = vmatprep.subr.mxu0 0.0
    %1039 = vmatpush1.msra.mxu0 0.0
    %1040 = vmatprep.subr.mxu0 0.0
    %1041 = vmatpush1.msra.mxu0 0.0
    %1042 = vmatprep.subr.mxu0 0.0
    %1043 = vmatpush1.msra.mxu0 0.0
    %1044 = vmatprep.subr.mxu0 0.0
    %1045 = vmatpush1.msra.mxu0 0.0
    %1046 = vmatprep.subr.mxu0 0.0
    %1047 = vmatpush1.msra.mxu0 0.0
    %1048 = vmatprep.subr.mxu0 0.0
    %1049 = vmatpush1.msra.mxu0 0.0
    %1050 = vmatprep.subr.mxu0 0.0
    %1051 = vmatpush1.msra.mxu0 0.0
    %1052 = vmatprep.subr.mxu0 0.0
    %1053 = vmatpush1.msra.mxu0 0.0
    %1054 = vmatprep.subr.mxu0 0.0
    %1055 = vmatpush1.msra.mxu0 0.0
    %1056 = vmatprep.subr.mxu0 0.0
    %1057 = vmatpush1.msra.mxu0 0.0
    %1058 = vmatprep.subr.mxu0 0.0
    %1059 = vmatpush1.msra.mxu0 0.0
    %1060 = vmatprep.subr.mxu0 0.0
    %1061 = vmatpush1.msra.mxu0 0.0
    %1062 = vmatprep.subr.mxu0 0.0
    %1063 = vmatpush1.msra.mxu0 0.0
    %1064 = vmatprep.subr.mxu0 0.0
    %1065 = vmatpush1.msra.mxu0 0.0
    %1066 = vmatprep.subr.mxu0 0.0
    %1067 = vmatpush1.msra.mxu0 0.0
    %1068 = vmatprep.mubr.f32.mxu0 0.0
    %1069 = vmatmul.mubr.f32.gmra.mrb[0].mxu0 %v993
    %v1070 = vpop.f32.mrb[0].mxu0
    %v1071 = vadd.f32 0.0, %v1070
    %v1072 = vpop.f32.mrb[0].mxu0
    %1073 = vmatprep.mubr.f32.mxu0 0.0
    %1074 = vmatmul.mubr.f32.gmra.mrb[0].mxu0 %v996
    %v1075 = vpop.f32.mrb[0].mxu0
    %v1076 = vadd.f32 0.0, %v1075
    %v1077 = vpop.f32.mrb[0].mxu0
    %1078 = vmatprep.mubr.f32.mxu0 0.0
    %1079 = vmatmul.mubr.f32.gmra.mrb[0].mxu0 %v999
    %v1080 = vpop.f32.mrb[0].mxu0
    %v1081 = vadd.f32 0.0, %v1080
    %v1082 = vpop.f32.mrb[0].mxu0
    %1083 = vmatprep.mubr.f32.mxu0 0.0
    %1084 = vmatmul.mubr.f32.gmra.mrb[0].mxu0 %v1002
    %v1085 = vpop.f32.mrb[0].mxu0
    %v1086 = vadd.f32 0.0, %v1085
    %v1087 = vpop.f32.mrb[0].mxu0
    %1088 = vdwg.mxu0
    %v1090 = vsel %vm183, %v677, 0
    %v1093 = vsel %vm183, %v678, 0
    %v1096 = vsel %vm183, %v679, 0
    %v1099 = vsel %vm183, %v680, 0
    %1101 = vmatprep.subr.mxu0 0.0
    %1102 = vmatpush1.msra.mxu0 %v984
    %1103 = vmatprep.subr.mxu0 0.0
    %1104 = vmatpush1.msra.mxu0 %v985
    %1105 = vmatprep.subr.mxu0 0.0
    %1106 = vmatpush1.msra.mxu0 %v986
    %1107 = vmatprep.subr.mxu0 0.0
    %1108 = vmatpush1.msra.mxu0 %v987
    %1109 = vmatprep.subr.mxu0 0.0
    %1110 = vmatpush1.msra.mxu0 0.0
    %1111 = vmatprep.subr.mxu0 0.0
    %1112 = vmatpush1.msra.mxu0 0.0
    %1113 = vmatprep.subr.mxu0 0.0
    %1114 = vmatpush1.msra.mxu0 0.0
    %1115 = vmatprep.subr.mxu0 0.0
    %1116 = vmatpush1.msra.mxu0 0.0
    %1117 = vmatprep.subr.mxu0 0.0
    %1118 = vmatpush1.msra.mxu0 0.0
    %1119 = vmatprep.subr.mxu0 0.0
    %1120 = vmatpush1.msra.mxu0 0.0
    %1121 = vmatprep.subr.mxu0 0.0
    %1122 = vmatpush1.msra.mxu0 0.0
    %1123 = vmatprep.subr.mxu0 0.0
    %1124 = vmatpush1.msra.mxu0 0.0
    %1125 = vmatprep.subr.mxu0 0.0
    %1126 = vmatpush1.msra.mxu0 0.0
    %1127 = vmatprep.subr.mxu0 0.0
    %1128 = vmatpush1.msra.mxu0 0.0
    %1129 = vmatprep.subr.mxu0 0.0
    %1130 = vmatpush1.msra.mxu0 0.0
    %1131 = vmatprep.subr.mxu0 0.0
    %1132 = vmatpush1.msra.mxu0 0.0
    %1133 = vmatprep.subr.mxu0 0.0
    %1134 = vmatpush1.msra.mxu0 0.0
    %1135 = vmatprep.subr.mxu0 0.0
    %1136 = vmatpush1.msra.mxu0 0.0
    %1137 = vmatprep.subr.mxu0 0.0
    %1138 = vmatpush1.msra.mxu0 0.0
    %1139 = vmatprep.subr.mxu0 0.0
    %1140 = vmatpush1.msra.mxu0 0.0
    %1141 = vmatprep.subr.mxu0 0.0
    %1142 = vmatpush1.msra.mxu0 0.0
    %1143 = vmatprep.subr.mxu0 0.0
    %1144 = vmatpush1.msra.mxu0 0.0
    %1145 = vmatprep.subr.mxu0 0.0
    %1146 = vmatpush1.msra.mxu0 0.0
    %1147 = vmatprep.subr.mxu0 0.0
    %1148 = vmatpush1.msra.mxu0 0.0
    %1149 = vmatprep.subr.mxu0 0.0
    %1150 = vmatpush1.msra.mxu0 0.0
    %1151 = vmatprep.subr.mxu0 0.0
    %1152 = vmatpush1.msra.mxu0 0.0
    %1153 = vmatprep.subr.mxu0 0.0
    %1154 = vmatpush1.msra.mxu0 0.0
    %1155 = vmatprep.subr.mxu0 0.0
    %1156 = vmatpush1.msra.mxu0 0.0
    %1157 = vmatprep.subr.mxu0 0.0
    %1158 = vmatpush1.msra.mxu0 0.0
    %1159 = vmatprep.subr.mxu0 0.0
    %1160 = vmatpush1.msra.mxu0 0.0
    %1161 = vmatprep.subr.mxu0 0.0
    %1162 = vmatpush1.msra.mxu0 0.0
    %1163 = vmatprep.subr.mxu0 0.0
    %1164 = vmatpush1.msra.mxu0 0.0
    %1165 = vmatprep.mubr.f32.mxu0 0.0
    %1166 = vmatmul.mubr.f32.gmra.mrb[0].mxu0 %v1090
    %v1167 = vpop.f32.mrb[0].mxu0
    %v1168 = vadd.f32 %v1071, %v1167
    %v1169 = vpop.f32.mrb[0].mxu0
    %1170 = vmatprep.mubr.f32.mxu0 0.0
    %1171 = vmatmul.mubr.f32.gmra.mrb[0].mxu0 %v1093
    %v1172 = vpop.f32.mrb[0].mxu0
    %v1173 = vadd.f32 %v1076, %v1172
    %v1174 = vpop.f32.mrb[0].mxu0
    %1175 = vmatprep.mubr.f32.mxu0 0.0
    %1176 = vmatmul.mubr.f32.gmra.mrb[0].mxu0 %v1096
    %v1177 = vpop.f32.mrb[0].mxu0
    %v1178 = vadd.f32 %v1081, %v1177
    %v1179 = vpop.f32.mrb[0].mxu0
    %1180 = vmatprep.mubr.f32.mxu0 0.0
    %1181 = vmatmul.mubr.f32.gmra.mrb[0].mxu0 %v1099
    %v1182 = vpop.f32.mrb[0].mxu0
    %v1183 = vadd.f32 %v1086, %v1182
    %v1184 = vpop.f32.mrb[0].mxu0
    %1185 = vdwg.mxu0
    %v1186 = vld [vmem:[#allocation14] sm:$0xff]
    %v1187 = vld [vmem:[#allocation14 + $0x8] sm:$0xff]
    %v1188 = vld [vmem:[#allocation14 + $0x10] sm:$0xff]
    %v1189 = vld [vmem:[#allocation14 + $0x18] sm:$0xff]
    %1190 = vmatprep.subr.mxu0 0.0
    %1191 = vmatpush1.msra.mxu0 %v1186
    %1192 = vmatprep.subr.mxu0 0.0
    %1193 = vmatpush1.msra.mxu0 %v1187
    %1194 = vmatprep.subr.mxu0 0.0
    %1195 = vmatpush1.msra.mxu0 %v1188
    %1196 = vmatprep.subr.mxu0 0.0
    %1197 = vmatpush1.msra.mxu0 %v1189
    %1198 = vmatprep.subr.mxu0 0.0
    %1199 = vmatpush1.msra.mxu0 0.0
    %1200 = vmatprep.subr.mxu0 0.0
    %1201 = vmatpush1.msra.mxu0 0.0
    %1202 = vmatprep.subr.mxu0 0.0
    %1203 = vmatpush1.msra.mxu0 0.0
    %1204 = vmatprep.subr.mxu0 0.0
    %1205 = vmatpush1.msra.mxu0 0.0
    %1206 = vmatprep.subr.mxu0 0.0
    %1207 = vmatpush1.msra.mxu0 0.0
    %1208 = vmatprep.subr.mxu0 0.0
    %1209 = vmatpush1.msra.mxu0 0.0
    %1210 = vmatprep.subr.mxu0 0.0
    %1211 = vmatpush1.msra.mxu0 0.0
    %1212 = vmatprep.subr.mxu0 0.0
    %1213 = vmatpush1.msra.mxu0 0.0
    %1214 = vmatprep.subr.mxu0 0.0
    %1215 = vmatpush1.msra.mxu0 0.0
    %1216 = vmatprep.subr.mxu0 0.0
    %1217 = vmatpush1.msra.mxu0 0.0
    %1218 = vmatprep.subr.mxu0 0.0
    %1219 = vmatpush1.msra.mxu0 0.0
    %1220 = vmatprep.subr.mxu0 0.0
    %1221 = vmatpush1.msra.mxu0 0.0
    %1222 = vmatprep.subr.mxu0 0.0
    %1223 = vmatpush1.msra.mxu0 0.0
    %1224 = vmatprep.subr.mxu0 0.0
    %1225 = vmatpush1.msra.mxu0 0.0
    %1226 = vmatprep.subr.mxu0 0.0
    %1227 = vmatpush1.msra.mxu0 0.0
    %1228 = vmatprep.subr.mxu0 0.0
    %1229 = vmatpush1.msra.mxu0 0.0
    %1230 = vmatprep.subr.mxu0 0.0
    %1231 = vmatpush1.msra.mxu0 0.0
    %1232 = vmatprep.subr.mxu0 0.0
    %1233 = vmatpush1.msra.mxu0 0.0
    %1234 = vmatprep.subr.mxu0 0.0
    %1235 = vmatpush1.msra.mxu0 0.0
    %1236 = vmatprep.subr.mxu0 0.0
    %1237 = vmatpush1.msra.mxu0 0.0
    %1238 = vmatprep.subr.mxu0 0.0
    %1239 = vmatpush1.msra.mxu0 0.0
    %1240 = vmatprep.subr.mxu0 0.0
    %1241 = vmatpush1.msra.mxu0 0.0
    %1242 = vmatprep.subr.mxu0 0.0
    %1243 = vmatpush1.msra.mxu0 0.0
    %1244 = vmatprep.subr.mxu0 0.0
    %1245 = vmatpush1.msra.mxu0 0.0
    %1246 = vmatprep.subr.mxu0 0.0
    %1247 = vmatpush1.msra.mxu0 0.0
    %1248 = vmatprep.subr.mxu0 0.0
    %1249 = vmatpush1.msra.mxu0 0.0
    %1250 = vmatprep.subr.mxu0 0.0
    %1251 = vmatpush1.msra.mxu0 0.0
    %1252 = vmatprep.subr.mxu0 0.0
    %1253 = vmatpush1.msra.mxu0 0.0
    %1254 = vmatprep.mubr.f32.mxu0 0.0
    %1255 = vmatmul.mubr.f32.gmra.mrb[0].mxu0 %v185
    %v1256 = vpop.f32.mrb[0].mxu0
    %v1257 = vadd.f32 0.0, %v1256
    %v1258 = vpop.f32.mrb[0].mxu0
    %1259 = vmatprep.mubr.f32.mxu0 0.0
    %1260 = vmatmul.mubr.f32.gmra.mrb[0].mxu0 %v188
    %v1261 = vpop.f32.mrb[0].mxu0
    %v1262 = vadd.f32 0.0, %v1261
    %v1263 = vpop.f32.mrb[0].mxu0
    %1264 = vmatprep.mubr.f32.mxu0 0.0
    %1265 = vmatmul.mubr.f32.gmra.mrb[0].mxu0 %v191
    %v1266 = vpop.f32.mrb[0].mxu0
    %v1267 = vadd.f32 0.0, %v1266
    %v1268 = vpop.f32.mrb[0].mxu0
    %1269 = vmatprep.mubr.f32.mxu0 0.0
    %1270 = vmatmul.mubr.f32.gmra.mrb[0].mxu0 %v194
    %v1271 = vpop.f32.mrb[0].mxu0
    %v1272 = vadd.f32 0.0, %v1271
    %v1273 = vpop.f32.mrb[0].mxu0
    %1274 = vdwg.mxu0
    %v1275 = vadd.f32 %v1168, %v1257
    %v1276 = vadd.f32 %v1173, %v1262
    %v1277 = vadd.f32 %v1178, %v1267
    %v1278 = vadd.f32 %v1183, %v1272
    %v1279 = vld [vmem:[%s12] sm:$0x1]
    %v1281 = vlaneseq
    %v1282 = vshrl.u32 %v1281, 7
    %v1283 = vsub.s32 0, %v1282
    %v1284 = vrot.slane %v1279, %v1283
    %v1286 = vadd.f32 %v1275, %v1284
    %v1287 = vadd.f32 %v1276, %v1284
    %v1288 = vadd.f32 %v1277, %v1284
    %v1289 = vadd.f32 %v1278, %v1284
    %s1290 = scalar_lea.vmem [#allocation11], 32
    %v1291 = vld [vmem:[%s1290] sm:$0xff]
    %v1292 = vld [vmem:[%s1290 + $0x8] sm:$0xff]
    %v1293 = vld [vmem:[%s1290 + $0x10] sm:$0xff]
    %v1294 = vld [vmem:[%s1290 + $0x18] sm:$0xff]
    %s1295 = scalar_lea.vmem [#allocation13], 32
    %v1296 = vld [vmem:[%s1295] sm:$0xff]
    %v1297 = vld [vmem:[%s1295 + $0x8] sm:$0xff]
    %v1298 = vld [vmem:[%s1295 + $0x10] sm:$0xff]
    %v1299 = vld [vmem:[%s1295 + $0x18] sm:$0xff]
    %1300 = vmatprep.subr.mxu0 0.0
    %1301 = vmatpush1.msra.mxu0 %v1296
    %1302 = vmatprep.subr.mxu0 0.0
    %1303 = vmatpush1.msra.mxu0 %v1297
    %1304 = vmatprep.subr.mxu0 0.0
    %1305 = vmatpush1.msra.mxu0 %v1298
    %1306 = vmatprep.subr.mxu0 0.0
    %1307 = vmatpush1.msra.mxu0 %v1299
    %1308 = vmatprep.subr.mxu0 0.0
    %1309 = vmatpush1.msra.mxu0 0.0
    %1310 = vmatprep.subr.mxu0 0.0
    %1311 = vmatpush1.msra.mxu0 0.0
    %1312 = vmatprep.subr.mxu0 0.0
    %1313 = vmatpush1.msra.mxu0 0.0
    %1314 = vmatprep.subr.mxu0 0.0
    %1315 = vmatpush1.msra.mxu0 0.0
    %1316 = vmatprep.subr.mxu0 0.0
    %1317 = vmatpush1.msra.mxu0 0.0
    %1318 = vmatprep.subr.mxu0 0.0
    %1319 = vmatpush1.msra.mxu0 0.0
    %1320 = vmatprep.subr.mxu0 0.0
    %1321 = vmatpush1.msra.mxu0 0.0
    %1322 = vmatprep.subr.mxu0 0.0
    %1323 = vmatpush1.msra.mxu0 0.0
    %1324 = vmatprep.subr.mxu0 0.0
    %1325 = vmatpush1.msra.mxu0 0.0
    %1326 = vmatprep.subr.mxu0 0.0
    %1327 = vmatpush1.msra.mxu0 0.0
    %1328 = vmatprep.subr.mxu0 0.0
    %1329 = vmatpush1.msra.mxu0 0.0
    %1330 = vmatprep.subr.mxu0 0.0
    %1331 = vmatpush1.msra.mxu0 0.0
    %1332 = vmatprep.subr.mxu0 0.0
    %1333 = vmatpush1.msra.mxu0 0.0
    %1334 = vmatprep.subr.mxu0 0.0
    %1335 = vmatpush1.msra.mxu0 0.0
    %1336 = vmatprep.subr.mxu0 0.0
    %1337 = vmatpush1.msra.mxu0 0.0
    %1338 = vmatprep.subr.mxu0 0.0
    %1339 = vmatpush1.msra.mxu0 0.0
    %1340 = vmatprep.subr.mxu0 0.0
    %1341 = vmatpush1.msra.mxu0 0.0
    %1342 = vmatprep.subr.mxu0 0.0
    %1343 = vmatpush1.msra.mxu0 0.0
    %1344 = vmatprep.subr.mxu0 0.0
    %1345 = vmatpush1.msra.mxu0 0.0
    %1346 = vmatprep.subr.mxu0 0.0
    %1347 = vmatpush1.msra.mxu0 0.0
    %1348 = vmatprep.subr.mxu0 0.0
    %1349 = vmatpush1.msra.mxu0 0.0
    %1350 = vmatprep.subr.mxu0 0.0
    %1351 = vmatpush1.msra.mxu0 0.0
    %1352 = vmatprep.subr.mxu0 0.0
    %1353 = vmatpush1.msra.mxu0 0.0
    %1354 = vmatprep.subr.mxu0 0.0
    %1355 = vmatpush1.msra.mxu0 0.0
    %1356 = vmatprep.subr.mxu0 0.0
    %1357 = vmatpush1.msra.mxu0 0.0
    %1358 = vmatprep.subr.mxu0 0.0
    %1359 = vmatpush1.msra.mxu0 0.0
    %1360 = vmatprep.subr.mxu0 0.0
    %1361 = vmatpush1.msra.mxu0 0.0
    %1362 = vmatprep.subr.mxu0 0.0
    %1363 = vmatpush1.msra.mxu0 0.0
    %1364 = vmatprep.mubr.f32.mxu0 0.0
    %1365 = vmatmul.mubr.f32.gmra.mrb[0].mxu0 %v993
    %v1366 = vpop.f32.mrb[0].mxu0
    %v1367 = vadd.f32 0.0, %v1366
    %v1368 = vpop.f32.mrb[0].mxu0
    %1369 = vmatprep.mubr.f32.mxu0 0.0
    %1370 = vmatmul.mubr.f32.gmra.mrb[0].mxu0 %v996
    %v1371 = vpop.f32.mrb[0].mxu0
    %v1372 = vadd.f32 0.0, %v1371
    %v1373 = vpop.f32.mrb[0].mxu0
    %1374 = vmatprep.mubr.f32.mxu0 0.0
    %1375 = vmatmul.mubr.f32.gmra.mrb[0].mxu0 %v999
    %v1376 = vpop.f32.mrb[0].mxu0
    %v1377 = vadd.f32 0.0, %v1376
    %v1378 = vpop.f32.mrb[0].mxu0
    %1379 = vmatprep.mubr.f32.mxu0 0.0
    %1380 = vmatmul.mubr.f32.gmra.mrb[0].mxu0 %v1002
    %v1381 = vpop.f32.mrb[0].mxu0
    %v1382 = vadd.f32 0.0, %v1381
    %v1383 = vpop.f32.mrb[0].mxu0
    %1384 = vdwg.mxu0
    %1385 = vmatprep.subr.mxu0 0.0
    %1386 = vmatpush1.msra.mxu0 %v1291
    %1387 = vmatprep.subr.mxu0 0.0
    %1388 = vmatpush1.msra.mxu0 %v1292
    %1389 = vmatprep.subr.mxu0 0.0
    %1390 = vmatpush1.msra.mxu0 %v1293
    %1391 = vmatprep.subr.mxu0 0.0
    %1392 = vmatpush1.msra.mxu0 %v1294
    %1393 = vmatprep.subr.mxu0 0.0
    %1394 = vmatpush1.msra.mxu0 0.0
    %1395 = vmatprep.subr.mxu0 0.0
    %1396 = vmatpush1.msra.mxu0 0.0
    %1397 = vmatprep.subr.mxu0 0.0
    %1398 = vmatpush1.msra.mxu0 0.0
    %1399 = vmatprep.subr.mxu0 0.0
    %1400 = vmatpush1.msra.mxu0 0.0
    %1401 = vmatprep.subr.mxu0 0.0
    %1402 = vmatpush1.msra.mxu0 0.0
    %1403 = vmatprep.subr.mxu0 0.0
    %1404 = vmatpush1.msra.mxu0 0.0
    %1405 = vmatprep.subr.mxu0 0.0
    %1406 = vmatpush1.msra.mxu0 0.0
    %1407 = vmatprep.subr.mxu0 0.0
    %1408 = vmatpush1.msra.mxu0 0.0
    %1409 = vmatprep.subr.mxu0 0.0
    %1410 = vmatpush1.msra.mxu0 0.0
    %1411 = vmatprep.subr.mxu0 0.0
    %1412 = vmatpush1.msra.mxu0 0.0
    %1413 = vmatprep.subr.mxu0 0.0
    %1414 = vmatpush1.msra.mxu0 0.0
    %1415 = vmatprep.subr.mxu0 0.0
    %1416 = vmatpush1.msra.mxu0 0.0
    %1417 = vmatprep.subr.mxu0 0.0
    %1418 = vmatpush1.msra.mxu0 0.0
    %1419 = vmatprep.subr.mxu0 0.0
    %1420 = vmatpush1.msra.mxu0 0.0
    %1421 = vmatprep.subr.mxu0 0.0
    %1422 = vmatpush1.msra.mxu0 0.0
    %1423 = vmatprep.subr.mxu0 0.0
    %1424 = vmatpush1.msra.mxu0 0.0
    %1425 = vmatprep.subr.mxu0 0.0
    %1426 = vmatpush1.msra.mxu0 0.0
    %1427 = vmatprep.subr.mxu0 0.0
    %1428 = vmatpush1.msra.mxu0 0.0
    %1429 = vmatprep.subr.mxu0 0.0
    %1430 = vmatpush1.msra.mxu0 0.0
    %1431 = vmatprep.subr.mxu0 0.0
    %1432 = vmatpush1.msra.mxu0 0.0
    %1433 = vmatprep.subr.mxu0 0.0
    %1434 = vmatpush1.msra.mxu0 0.0
    %1435 = vmatprep.subr.mxu0 0.0
    %1436 = vmatpush1.msra.mxu0 0.0
    %1437 = vmatprep.subr.mxu0 0.0
    %1438 = vmatpush1.msra.mxu0 0.0
    %1439 = vmatprep.subr.mxu0 0.0
    %1440 = vmatpush1.msra.mxu0 0.0
    %1441 = vmatprep.subr.mxu0 0.0
    %1442 = vmatpush1.msra.mxu0 0.0
    %1443 = vmatprep.subr.mxu0 0.0
    %1444 = vmatpush1.msra.mxu0 0.0
    %1445 = vmatprep.subr.mxu0 0.0
    %1446 = vmatpush1.msra.mxu0 0.0
    %1447 = vmatprep.subr.mxu0 0.0
    %1448 = vmatpush1.msra.mxu0 0.0
    %1449 = vmatprep.mubr.f32.mxu0 0.0
    %1450 = vmatmul.mubr.f32.gmra.mrb[0].mxu0 %v1090
    %v1451 = vpop.f32.mrb[0].mxu0
    %v1452 = vadd.f32 %v1367, %v1451
    %v1453 = vpop.f32.mrb[0].mxu0
    %1454 = vmatprep.mubr.f32.mxu0 0.0
    %1455 = vmatmul.mubr.f32.gmra.mrb[0].mxu0 %v1093
    %v1456 = vpop.f32.mrb[0].mxu0
    %v1457 = vadd.f32 %v1372, %v1456
    %v1458 = vpop.f32.mrb[0].mxu0
    %1459 = vmatprep.mubr.f32.mxu0 0.0
    %1460 = vmatmul.mubr.f32.gmra.mrb[0].mxu0 %v1096
    %v1461 = vpop.f32.mrb[0].mxu0
    %v1462 = vadd.f32 %v1377, %v1461
    %v1463 = vpop.f32.mrb[0].mxu0
    %1464 = vmatprep.mubr.f32.mxu0 0.0
    %1465 = vmatmul.mubr.f32.gmra.mrb[0].mxu0 %v1099
    %v1466 = vpop.f32.mrb[0].mxu0
    %v1467 = vadd.f32 %v1382, %v1466
    %v1468 = vpop.f32.mrb[0].mxu0
    %1469 = vdwg.mxu0
    %s1470 = scalar_lea.vmem [#allocation14], 32
    %v1471 = vld [vmem:[%s1470] sm:$0xff]
    %v1472 = vld [vmem:[%s1470 + $0x8] sm:$0xff]
    %v1473 = vld [vmem:[%s1470 + $0x10] sm:$0xff]
    %v1474 = vld [vmem:[%s1470 + $0x18] sm:$0xff]
    %1475 = vmatprep.subr.mxu0 0.0
    %1476 = vmatpush1.msra.mxu0 %v1471
    %1477 = vmatprep.subr.mxu0 0.0
    %1478 = vmatpush1.msra.mxu0 %v1472
    %1479 = vmatprep.subr.mxu0 0.0
    %1480 = vmatpush1.msra.mxu0 %v1473
    %1481 = vmatprep.subr.mxu0 0.0
    %1482 = vmatpush1.msra.mxu0 %v1474
    %1483 = vmatprep.subr.mxu0 0.0
    %1484 = vmatpush1.msra.mxu0 0.0
    %1485 = vmatprep.subr.mxu0 0.0
    %1486 = vmatpush1.msra.mxu0 0.0
    %1487 = vmatprep.subr.mxu0 0.0
    %1488 = vmatpush1.msra.mxu0 0.0
    %1489 = vmatprep.subr.mxu0 0.0
    %1490 = vmatpush1.msra.mxu0 0.0
    %1491 = vmatprep.subr.mxu0 0.0
    %1492 = vmatpush1.msra.mxu0 0.0
    %1493 = vmatprep.subr.mxu0 0.0
    %1494 = vmatpush1.msra.mxu0 0.0
    %1495 = vmatprep.subr.mxu0 0.0
    %1496 = vmatpush1.msra.mxu0 0.0
    %1497 = vmatprep.subr.mxu0 0.0
    %1498 = vmatpush1.msra.mxu0 0.0
    %1499 = vmatprep.subr.mxu0 0.0
    %1500 = vmatpush1.msra.mxu0 0.0
    %1501 = vmatprep.subr.mxu0 0.0
    %1502 = vmatpush1.msra.mxu0 0.0
    %1503 = vmatprep.subr.mxu0 0.0
    %1504 = vmatpush1.msra.mxu0 0.0
    %1505 = vmatprep.subr.mxu0 0.0
    %1506 = vmatpush1.msra.mxu0 0.0
    %1507 = vmatprep.subr.mxu0 0.0
    %1508 = vmatpush1.msra.mxu0 0.0
    %1509 = vmatprep.subr.mxu0 0.0
    %1510 = vmatpush1.msra.mxu0 0.0
    %1511 = vmatprep.subr.mxu0 0.0
    %1512 = vmatpush1.msra.mxu0 0.0
    %1513 = vmatprep.subr.mxu0 0.0
    %1514 = vmatpush1.msra.mxu0 0.0
    %1515 = vmatprep.subr.mxu0 0.0
    %1516 = vmatpush1.msra.mxu0 0.0
    %1517 = vmatprep.subr.mxu0 0.0
    %1518 = vmatpush1.msra.mxu0 0.0
    %1519 = vmatprep.subr.mxu0 0.0
    %1520 = vmatpush1.msra.mxu0 0.0
    %1521 = vmatprep.subr.mxu0 0.0
    %1522 = vmatpush1.msra.mxu0 0.0
    %1523 = vmatprep.subr.mxu0 0.0
    %1524 = vmatpush1.msra.mxu0 0.0
    %1525 = vmatprep.subr.mxu0 0.0
    %1526 = vmatpush1.msra.mxu0 0.0
    %1527 = vmatprep.subr.mxu0 0.0
    %1528 = vmatpush1.msra.mxu0 0.0
    %1529 = vmatprep.subr.mxu0 0.0
    %1530 = vmatpush1.msra.mxu0 0.0
    %1531 = vmatprep.subr.mxu0 0.0
    %1532 = vmatpush1.msra.mxu0 0.0
    %1533 = vmatprep.subr.mxu0 0.0
    %1534 = vmatpush1.msra.mxu0 0.0
    %1535 = vmatprep.subr.mxu0 0.0
    %1536 = vmatpush1.msra.mxu0 0.0
    %1537 = vmatprep.subr.mxu0 0.0
    %1538 = vmatpush1.msra.mxu0 0.0
    %1539 = vmatprep.mubr.f32.mxu0 0.0
    %1540 = vmatmul.mubr.f32.gmra.mrb[0].mxu0 %v185
    %v1541 = vpop.f32.mrb[0].mxu0
    %v1542 = vadd.f32 0.0, %v1541
    %v1543 = vpop.f32.mrb[0].mxu0
    %1544 = vmatprep.mubr.f32.mxu0 0.0
    %1545 = vmatmul.mubr.f32.gmra.mrb[0].mxu0 %v188
    %v1546 = vpop.f32.mrb[0].mxu0
    %v1547 = vadd.f32 0.0, %v1546
    %v1548 = vpop.f32.mrb[0].mxu0
    %1549 = vmatprep.mubr.f32.mxu0 0.0
    %1550 = vmatmul.mubr.f32.gmra.mrb[0].mxu0 %v191
    %v1551 = vpop.f32.mrb[0].mxu0
    %v1552 = vadd.f32 0.0, %v1551
    %v1553 = vpop.f32.mrb[0].mxu0
    %1554 = vmatprep.mubr.f32.mxu0 0.0
    %1555 = vmatmul.mubr.f32.gmra.mrb[0].mxu0 %v194
    %v1556 = vpop.f32.mrb[0].mxu0
    %v1557 = vadd.f32 0.0, %v1556
    %v1558 = vpop.f32.mrb[0].mxu0
    %1559 = vdwg.mxu0
    %v1560 = vadd.f32 %v1452, %v1542
    %v1561 = vadd.f32 %v1457, %v1547
    %v1562 = vadd.f32 %v1462, %v1552
    %v1563 = vadd.f32 %v1467, %v1557
    %s1564 = scalar_lea.vmem %s12, 1
    %v1565 = vld [vmem:[%s1564] sm:$0x1]
    %v1567 = vlaneseq
    %v1568 = vshrl.u32 %v1567, 7
    %v1569 = vsub.s32 0, %v1568
    %v1570 = vrot.slane %v1565, %v1569
    %v1572 = vadd.f32 %v1560, %v1570
    %v1573 = vadd.f32 %v1561, %v1570
    %v1574 = vadd.f32 %v1562, %v1570
    %v1575 = vadd.f32 %v1563, %v1570
    %s1576 = scalar_lea.vmem [#allocation11], 64
    %v1577 = vld [vmem:[%s1576] sm:$0xff]
    %v1578 = vld [vmem:[%s1576 + $0x8] sm:$0xff]
    %v1579 = vld [vmem:[%s1576 + $0x10] sm:$0xff]
    %v1580 = vld [vmem:[%s1576 + $0x18] sm:$0xff]
    %s1581 = scalar_lea.vmem [#allocation13], 64
    %v1582 = vld [vmem:[%s1581] sm:$0xff]
    %v1583 = vld [vmem:[%s1581 + $0x8] sm:$0xff]
    %v1584 = vld [vmem:[%s1581 + $0x10] sm:$0xff]
    %v1585 = vld [vmem:[%s1581 + $0x18] sm:$0xff]
    %1586 = vmatprep.subr.mxu0 0.0
    %1587 = vmatpush1.msra.mxu0 %v1582
    %1588 = vmatprep.subr.mxu0 0.0
    %1589 = vmatpush1.msra.mxu0 %v1583
    %1590 = vmatprep.subr.mxu0 0.0
    %1591 = vmatpush1.msra.mxu0 %v1584
    %1592 = vmatprep.subr.mxu0 0.0
    %1593 = vmatpush1.msra.mxu0 %v1585
    %1594 = vmatprep.subr.mxu0 0.0
    %1595 = vmatpush1.msra.mxu0 0.0
    %1596 = vmatprep.subr.mxu0 0.0
    %1597 = vmatpush1.msra.mxu0 0.0
    %1598 = vmatprep.subr.mxu0 0.0
    %1599 = vmatpush1.msra.mxu0 0.0
    %1600 = vmatprep.subr.mxu0 0.0
    %1601 = vmatpush1.msra.mxu0 0.0
    %1602 = vmatprep.subr.mxu0 0.0
    %1603 = vmatpush1.msra.mxu0 0.0
    %1604 = vmatprep.subr.mxu0 0.0
    %1605 = vmatpush1.msra.mxu0 0.0
    %1606 = vmatprep.subr.mxu0 0.0
    %1607 = vmatpush1.msra.mxu0 0.0
    %1608 = vmatprep.subr.mxu0 0.0
    %1609 = vmatpush1.msra.mxu0 0.0
    %1610 = vmatprep.subr.mxu0 0.0
    %1611 = vmatpush1.msra.mxu0 0.0
    %1612 = vmatprep.subr.mxu0 0.0
    %1613 = vmatpush1.msra.mxu0 0.0
    %1614 = vmatprep.subr.mxu0 0.0
    %1615 = vmatpush1.msra.mxu0 0.0
    %1616 = vmatprep.subr.mxu0 0.0
    %1617 = vmatpush1.msra.mxu0 0.0
    %1618 = vmatprep.subr.mxu0 0.0
    %1619 = vmatpush1.msra.mxu0 0.0
    %1620 = vmatprep.subr.mxu0 0.0
    %1621 = vmatpush1.msra.mxu0 0.0
    %1622 = vmatprep.subr.mxu0 0.0
    %1623 = vmatpush1.msra.mxu0 0.0
    %1624 = vmatprep.subr.mxu0 0.0
    %1625 = vmatpush1.msra.mxu0 0.0
    %1626 = vmatprep.subr.mxu0 0.0
    %1627 = vmatpush1.msra.mxu0 0.0
    %1628 = vmatprep.subr.mxu0 0.0
    %1629 = vmatpush1.msra.mxu0 0.0
    %1630 = vmatprep.subr.mxu0 0.0
    %1631 = vmatpush1.msra.mxu0 0.0
    %1632 = vmatprep.subr.mxu0 0.0
    %1633 = vmatpush1.msra.mxu0 0.0
    %1634 = vmatprep.subr.mxu0 0.0
    %1635 = vmatpush1.msra.mxu0 0.0
    %1636 = vmatprep.subr.mxu0 0.0
    %1637 = vmatpush1.msra.mxu0 0.0
    %1638 = vmatprep.subr.mxu0 0.0
    %1639 = vmatpush1.msra.mxu0 0.0
    %1640 = vmatprep.subr.mxu0 0.0
    %1641 = vmatpush1.msra.mxu0 0.0
    %1642 = vmatprep.subr.mxu0 0.0
    %1643 = vmatpush1.msra.mxu0 0.0
    %1644 = vmatprep.subr.mxu0 0.0
    %1645 = vmatpush1.msra.mxu0 0.0
    %1646 = vmatprep.subr.mxu0 0.0
    %1647 = vmatpush1.msra.mxu0 0.0
    %1648 = vmatprep.subr.mxu0 0.0
    %1649 = vmatpush1.msra.mxu0 0.0
    %1650 = vmatprep.mubr.f32.mxu0 0.0
    %1651 = vmatmul.mubr.f32.gmra.mrb[0].mxu0 %v993
    %v1652 = vpop.f32.mrb[0].mxu0
    %v1653 = vadd.f32 0.0, %v1652
    %v1654 = vpop.f32.mrb[0].mxu0
    %1655 = vmatprep.mubr.f32.mxu0 0.0
    %1656 = vmatmul.mubr.f32.gmra.mrb[0].mxu0 %v996
    %v1657 = vpop.f32.mrb[0].mxu0
    %v1658 = vadd.f32 0.0, %v1657
    %v1659 = vpop.f32.mrb[0].mxu0
    %1660 = vmatprep.mubr.f32.mxu0 0.0
    %1661 = vmatmul.mubr.f32.gmra.mrb[0].mxu0 %v999
    %v1662 = vpop.f32.mrb[0].mxu0
    %v1663 = vadd.f32 0.0, %v1662
    %v1664 = vpop.f32.mrb[0].mxu0
    %1665 = vmatprep.mubr.f32.mxu0 0.0
    %1666 = vmatmul.mubr.f32.gmra.mrb[0].mxu0 %v1002
    %v1667 = vpop.f32.mrb[0].mxu0
    %v1668 = vadd.f32 0.0, %v1667
    %v1669 = vpop.f32.mrb[0].mxu0
    %1670 = vdwg.mxu0
    %1671 = vmatprep.subr.mxu0 0.0
    %1672 = vmatpush1.msra.mxu0 %v1577
    %1673 = vmatprep.subr.mxu0 0.0
    %1674 = vmatpush1.msra.mxu0 %v1578
    %1675 = vmatprep.subr.mxu0 0.0
    %1676 = vmatpush1.msra.mxu0 %v1579
    %1677 = vmatprep.subr.mxu0 0.0
    %1678 = vmatpush1.msra.mxu0 %v1580
    %1679 = vmatprep.subr.mxu0 0.0
    %1680 = vmatpush1.msra.mxu0 0.0
    %1681 = vmatprep.subr.mxu0 0.0
    %1682 = vmatpush1.msra.mxu0 0.0
    %1683 = vmatprep.subr.mxu0 0.0
    %1684 = vmatpush1.msra.mxu0 0.0
    %1685 = vmatprep.subr.mxu0 0.0
    %1686 = vmatpush1.msra.mxu0 0.0
    %1687 = vmatprep.subr.mxu0 0.0
    %1688 = vmatpush1.msra.mxu0 0.0
    %1689 = vmatprep.subr.mxu0 0.0
    %1690 = vmatpush1.msra.mxu0 0.0
    %1691 = vmatprep.subr.mxu0 0.0
    %1692 = vmatpush1.msra.mxu0 0.0
    %1693 = vmatprep.subr.mxu0 0.0
    %1694 = vmatpush1.msra.mxu0 0.0
    %1695 = vmatprep.subr.mxu0 0.0
    %1696 = vmatpush1.msra.mxu0 0.0
    %1697 = vmatprep.subr.mxu0 0.0
    %1698 = vmatpush1.msra.mxu0 0.0
    %1699 = vmatprep.subr.mxu0 0.0
    %1700 = vmatpush1.msra.mxu0 0.0
    %1701 = vmatprep.subr.mxu0 0.0
    %1702 = vmatpush1.msra.mxu0 0.0
    %1703 = vmatprep.subr.mxu0 0.0
    %1704 = vmatpush1.msra.mxu0 0.0
    %1705 = vmatprep.subr.mxu0 0.0
    %1706 = vmatpush1.msra.mxu0 0.0
    %1707 = vmatprep.subr.mxu0 0.0
    %1708 = vmatpush1.msra.mxu0 0.0
    %1709 = vmatprep.subr.mxu0 0.0
    %1710 = vmatpush1.msra.mxu0 0.0
    %1711 = vmatprep.subr.mxu0 0.0
    %1712 = vmatpush1.msra.mxu0 0.0
    %1713 = vmatprep.subr.mxu0 0.0
    %1714 = vmatpush1.msra.mxu0 0.0
    %1715 = vmatprep.subr.mxu0 0.0
    %1716 = vmatpush1.msra.mxu0 0.0
    %1717 = vmatprep.subr.mxu0 0.0
    %1718 = vmatpush1.msra.mxu0 0.0
    %1719 = vmatprep.subr.mxu0 0.0
    %1720 = vmatpush1.msra.mxu0 0.0
    %1721 = vmatprep.subr.mxu0 0.0
    %1722 = vmatpush1.msra.mxu0 0.0
    %1723 = vmatprep.subr.mxu0 0.0
    %1724 = vmatpush1.msra.mxu0 0.0
    %1725 = vmatprep.subr.mxu0 0.0
    %1726 = vmatpush1.msra.mxu0 0.0
    %1727 = vmatprep.subr.mxu0 0.0
    %1728 = vmatpush1.msra.mxu0 0.0
    %1729 = vmatprep.subr.mxu0 0.0
    %1730 = vmatpush1.msra.mxu0 0.0
    %1731 = vmatprep.subr.mxu0 0.0
    %1732 = vmatpush1.msra.mxu0 0.0
    %1733 = vmatprep.subr.mxu0 0.0
    %1734 = vmatpush1.msra.mxu0 0.0
    %1735 = vmatprep.mubr.f32.mxu0 0.0
    %1736 = vmatmul.mubr.f32.gmra.mrb[0].mxu0 %v1090
    %v1737 = vpop.f32.mrb[0].mxu0
    %v1738 = vadd.f32 %v1653, %v1737
    %v1739 = vpop.f32.mrb[0].mxu0
    %1740 = vmatprep.mubr.f32.mxu0 0.0
    %1741 = vmatmul.mubr.f32.gmra.mrb[0].mxu0 %v1093
    %v1742 = vpop.f32.mrb[0].mxu0
    %v1743 = vadd.f32 %v1658, %v1742
    %v1744 = vpop.f32.mrb[0].mxu0
    %1745 = vmatprep.mubr.f32.mxu0 0.0
    %1746 = vmatmul.mubr.f32.gmra.mrb[0].mxu0 %v1096
    %v1747 = vpop.f32.mrb[0].mxu0
    %v1748 = vadd.f32 %v1663, %v1747
    %v1749 = vpop.f32.mrb[0].mxu0
    %1750 = vmatprep.mubr.f32.mxu0 0.0
    %1751 = vmatmul.mubr.f32.gmra.mrb[0].mxu0 %v1099
    %v1752 = vpop.f32.mrb[0].mxu0
    %v1753 = vadd.f32 %v1668, %v1752
    %v1754 = vpop.f32.mrb[0].mxu0
    %1755 = vdwg.mxu0
    %v1756 = vld [vmem:[%s13] sm:$0x1]
    %v1758 = vlaneseq
    %v1759 = vshrl.u32 %v1758, 7
    %v1760 = vsub.s32 0, %v1759
    %v1761 = vrot.slane %v1756, %v1760
    %v1763 = vadd.f32 %v1738, %v1761
    %v1764 = vadd.f32 %v1743, %v1761
    %v1765 = vadd.f32 %v1748, %v1761
    %v1766 = vadd.f32 %v1753, %v1761
    %s1767 = scalar_lea.vmem [#allocation14], 64
    %v1768 = vld [vmem:[%s1767] sm:$0xff]
    %v1769 = vld [vmem:[%s1767 + $0x8] sm:$0xff]
    %v1770 = vld [vmem:[%s1767 + $0x10] sm:$0xff]
    %v1771 = vld [vmem:[%s1767 + $0x18] sm:$0xff]
    %v1772 = vld [vmem:[%s14] sm:$0x1]
    %v1774 = vlaneseq
    %v1775 = vshrl.u32 %v1774, 7
    %v1776 = vsub.s32 0, %v1775
    %v1777 = vrot.slane %v1772, %v1776
    %1779 = vmatprep.subr.mxu0 0.0
    %1780 = vmatpush1.msra.mxu0 %v1768
    %1781 = vmatprep.subr.mxu0 0.0
    %1782 = vmatpush1.msra.mxu0 %v1769
    %1783 = vmatprep.subr.mxu0 0.0
    %1784 = vmatpush1.msra.mxu0 %v1770
    %1785 = vmatprep.subr.mxu0 0.0
    %1786 = vmatpush1.msra.mxu0 %v1771
    %1787 = vmatprep.subr.mxu0 0.0
    %1788 = vmatpush1.msra.mxu0 0.0
    %1789 = vmatprep.subr.mxu0 0.0
    %1790 = vmatpush1.msra.mxu0 0.0
    %1791 = vmatprep.subr.mxu0 0.0
    %1792 = vmatpush1.msra.mxu0 0.0
    %1793 = vmatprep.subr.mxu0 0.0
    %1794 = vmatpush1.msra.mxu0 0.0
    %1795 = vmatprep.subr.mxu0 0.0
    %1796 = vmatpush1.msra.mxu0 0.0
    %1797 = vmatprep.subr.mxu0 0.0
    %1798 = vmatpush1.msra.mxu0 0.0
    %1799 = vmatprep.subr.mxu0 0.0
    %1800 = vmatpush1.msra.mxu0 0.0
    %1801 = vmatprep.subr.mxu0 0.0
    %1802 = vmatpush1.msra.mxu0 0.0
    %1803 = vmatprep.subr.mxu0 0.0
    %1804 = vmatpush1.msra.mxu0 0.0
    %1805 = vmatprep.subr.mxu0 0.0
    %1806 = vmatpush1.msra.mxu0 0.0
    %1807 = vmatprep.subr.mxu0 0.0
    %1808 = vmatpush1.msra.mxu0 0.0
    %1809 = vmatprep.subr.mxu0 0.0
    %1810 = vmatpush1.msra.mxu0 0.0
    %1811 = vmatprep.subr.mxu0 0.0
    %1812 = vmatpush1.msra.mxu0 0.0
    %1813 = vmatprep.subr.mxu0 0.0
    %1814 = vmatpush1.msra.mxu0 0.0
    %1815 = vmatprep.subr.mxu0 0.0
    %1816 = vmatpush1.msra.mxu0 0.0
    %1817 = vmatprep.subr.mxu0 0.0
    %1818 = vmatpush1.msra.mxu0 0.0
    %1819 = vmatprep.subr.mxu0 0.0
    %1820 = vmatpush1.msra.mxu0 0.0
    %1821 = vmatprep.subr.mxu0 0.0
    %1822 = vmatpush1.msra.mxu0 0.0
    %1823 = vmatprep.subr.mxu0 0.0
    %1824 = vmatpush1.msra.mxu0 0.0
    %1825 = vmatprep.subr.mxu0 0.0
    %1826 = vmatpush1.msra.mxu0 0.0
    %1827 = vmatprep.subr.mxu0 0.0
    %1828 = vmatpush1.msra.mxu0 0.0
    %1829 = vmatprep.subr.mxu0 0.0
    %1830 = vmatpush1.msra.mxu0 0.0
    %1831 = vmatprep.subr.mxu0 0.0
    %1832 = vmatpush1.msra.mxu0 0.0
    %1833 = vmatprep.subr.mxu0 0.0
    %1834 = vmatpush1.msra.mxu0 0.0
    %1835 = vmatprep.subr.mxu0 0.0
    %1836 = vmatpush1.msra.mxu0 0.0
    %1837 = vmatprep.subr.mxu0 0.0
    %1838 = vmatpush1.msra.mxu0 0.0
    %1839 = vmatprep.subr.mxu0 0.0
    %1840 = vmatpush1.msra.mxu0 0.0
    %1841 = vmatprep.subr.mxu0 0.0
    %1842 = vmatpush1.msra.mxu0 0.0
    %1843 = vmatprep.mubr.f32.mxu0 0.0
    %1844 = vmatmul.mubr.f32.gmra.mrb[0].mxu0 %v185
    %v1845 = vpop.f32.mrb[0].mxu0
    %v1846 = vadd.f32 %v1777, %v1845
    %v1847 = vpop.f32.mrb[0].mxu0
    %1848 = vmatprep.mubr.f32.mxu0 0.0
    %1849 = vmatmul.mubr.f32.gmra.mrb[0].mxu0 %v188
    %v1850 = vpop.f32.mrb[0].mxu0
    %v1851 = vadd.f32 %v1777, %v1850
    %v1852 = vpop.f32.mrb[0].mxu0
    %1853 = vmatprep.mubr.f32.mxu0 0.0
    %1854 = vmatmul.mubr.f32.gmra.mrb[0].mxu0 %v191
    %v1855 = vpop.f32.mrb[0].mxu0
    %v1856 = vadd.f32 %v1777, %v1855
    %v1857 = vpop.f32.mrb[0].mxu0
    %1858 = vmatprep.mubr.f32.mxu0 0.0
    %1859 = vmatmul.mubr.f32.gmra.mrb[0].mxu0 %v194
    %v1860 = vpop.f32.mrb[0].mxu0
    %v1861 = vadd.f32 %v1777, %v1860
    %v1862 = vpop.f32.mrb[0].mxu0
    %1863 = vdwg.mxu0
    %v1864 = vxor.u32 %v1286, 2147483648
    %v1865 = vxor.u32 %v1287, 2147483648
    %v1866 = vxor.u32 %v1288, 2147483648
    %v1867 = vxor.u32 %v1289, 2147483648
    %v1868 = vmul.f32 %v1864, 1.442695
    %v1869 = vpow.pop %v1868
    %v1870 = vmul.f32 %v1865, 1.442695
    %v1871 = vpow.pop %v1870
    %v1872 = vmul.f32 %v1866, 1.442695
    %v1873 = vpow.pop %v1872
    %v1874 = vmul.f32 %v1867, 1.442695
    %v1875 = vpow.pop %v1874
    %v1876 = vadd.f32 %v1869, 1.0
    %v1877 = vadd.f32 %v1871, 1.0
    %v1878 = vadd.f32 %v1873, 1.0
    %v1879 = vadd.f32 %v1875, 1.0
    %v1880 = vrcp.pop %v1876
    %v1881 = vmul.f32 1.0, %v1880
    %v1882 = vrcp.pop %v1877
    %v1883 = vmul.f32 1.0, %v1882
    %v1884 = vrcp.pop %v1878
    %v1885 = vmul.f32 1.0, %v1884
    %v1886 = vrcp.pop %v1879
    %v1887 = vmul.f32 1.0, %v1886
    %v1888 = vxor.u32 %v1572, 2147483648
    %v1889 = vxor.u32 %v1573, 2147483648
    %v1890 = vxor.u32 %v1574, 2147483648
    %v1891 = vxor.u32 %v1575, 2147483648
    %v1892 = vmul.f32 %v1888, 1.442695
    %v1893 = vpow.pop %v1892
    %v1894 = vmul.f32 %v1889, 1.442695
    %v1895 = vpow.pop %v1894
    %v1896 = vmul.f32 %v1890, 1.442695
    %v1897 = vpow.pop %v1896
    %v1898 = vmul.f32 %v1891, 1.442695
    %v1899 = vpow.pop %v1898
    %v1900 = vadd.f32 %v1893, 1.0
    %v1901 = vadd.f32 %v1895, 1.0
    %v1902 = vadd.f32 %v1897, 1.0
    %v1903 = vadd.f32 %v1899, 1.0
    %v1904 = vrcp.pop %v1900
    %v1905 = vmul.f32 1.0, %v1904
    %v1906 = vrcp.pop %v1901
    %v1907 = vmul.f32 1.0, %v1906
    %v1908 = vrcp.pop %v1902
    %v1909 = vmul.f32 1.0, %v1908
    %v1910 = vrcp.pop %v1903
    %v1911 = vmul.f32 1.0, %v1910
    %v1912 = vmul.f32 %v1881, %v1846
    %v1913 = vmul.f32 %v1883, %v1851
    %v1914 = vmul.f32 %v1885, %v1856
    %v1915 = vmul.f32 %v1887, %v1861
    %v1916 = vadd.f32 %v1763, %v1912
    %v1917 = vadd.f32 %v1764, %v1913
    %v1918 = vadd.f32 %v1765, %v1914
    %v1919 = vadd.f32 %v1766, %v1915
    %v1920 = vtanh.pop %v1916
    %v1921 = vtanh.pop %v1917
    %v1922 = vtanh.pop %v1918
    %v1923 = vtanh.pop %v1919
    %v1924 = vsub.f32 %v168, %v1920
    %v1925 = vsub.f32 %v169, %v1921
    %v1926 = vsub.f32 %v170, %v1922
    %v1927 = vsub.f32 %v171, %v1923
    %v1928 = vmul.f32 %v1905, %v1924
    %v1929 = vmul.f32 %v1907, %v1925
    %v1930 = vmul.f32 %v1909, %v1926
    %v1931 = vmul.f32 %v1911, %v1927
    %v1932 = vadd.f32 %v1920, %v1928
    %v1933 = vadd.f32 %v1921, %v1929
    %v1934 = vadd.f32 %v1922, %v1930
    %v1935 = vadd.f32 %v1923, %v1931
    %v1936 = vld [vmem:[#allocation8] sm:$0xff]
    %v1937 = vld [vmem:[#allocation8 + $0x8] sm:$0xff]
    %v1938 = vld [vmem:[#allocation8 + $0x10] sm:$0xff]
    %v1939 = vld [vmem:[#allocation8 + $0x18] sm:$0xff]
    %v1940 = vld [vmem:[%s4] sm:$0x1]
    %v1942 = vlaneseq
    %v1943 = vshrl.u32 %v1942, 7
    %v1944 = vsub.s32 0, %v1943
    %v1945 = vrot.slane %v1940, %v1944
    %v1948 = vsel %vm183, %v1932, 0
    %v1951 = vsel %vm183, %v1933, 0
    %v1954 = vsel %vm183, %v1934, 0
    %v1957 = vsel %vm183, %v1935, 0
    %1959 = vmatprep.subr.mxu0 0.0
    %1960 = vmatpush1.msra.mxu0 %v1936
    %1961 = vmatprep.subr.mxu0 0.0
    %1962 = vmatpush1.msra.mxu0 %v1937
    %1963 = vmatprep.subr.mxu0 0.0
    %1964 = vmatpush1.msra.mxu0 %v1938
    %1965 = vmatprep.subr.mxu0 0.0
    %1966 = vmatpush1.msra.mxu0 %v1939
    %1967 = vmatprep.subr.mxu0 0.0
    %1968 = vmatpush1.msra.mxu0 0.0
    %1969 = vmatprep.subr.mxu0 0.0
    %1970 = vmatpush1.msra.mxu0 0.0
    %1971 = vmatprep.subr.mxu0 0.0
    %1972 = vmatpush1.msra.mxu0 0.0
    %1973 = vmatprep.subr.mxu0 0.0
    %1974 = vmatpush1.msra.mxu0 0.0
    %1975 = vmatprep.subr.mxu0 0.0
    %1976 = vmatpush1.msra.mxu0 0.0
    %1977 = vmatprep.subr.mxu0 0.0
    %1978 = vmatpush1.msra.mxu0 0.0
    %1979 = vmatprep.subr.mxu0 0.0
    %1980 = vmatpush1.msra.mxu0 0.0
    %1981 = vmatprep.subr.mxu0 0.0
    %1982 = vmatpush1.msra.mxu0 0.0
    %1983 = vmatprep.subr.mxu0 0.0
    %1984 = vmatpush1.msra.mxu0 0.0
    %1985 = vmatprep.subr.mxu0 0.0
    %1986 = vmatpush1.msra.mxu0 0.0
    %1987 = vmatprep.subr.mxu0 0.0
    %1988 = vmatpush1.msra.mxu0 0.0
    %1989 = vmatprep.subr.mxu0 0.0
    %1990 = vmatpush1.msra.mxu0 0.0
    %1991 = vmatprep.subr.mxu0 0.0
    %1992 = vmatpush1.msra.mxu0 0.0
    %1993 = vmatprep.subr.mxu0 0.0
    %1994 = vmatpush1.msra.mxu0 0.0
    %1995 = vmatprep.subr.mxu0 0.0
    %1996 = vmatpush1.msra.mxu0 0.0
    %1997 = vmatprep.subr.mxu0 0.0
    %1998 = vmatpush1.msra.mxu0 0.0
    %1999 = vmatprep.subr.mxu0 0.0
    %2000 = vmatpush1.msra.mxu0 0.0
    %2001 = vmatprep.subr.mxu0 0.0
    %2002 = vmatpush1.msra.mxu0 0.0
    %2003 = vmatprep.subr.mxu0 0.0
    %2004 = vmatpush1.msra.mxu0 0.0
    %2005 = vmatprep.subr.mxu0 0.0
    %2006 = vmatpush1.msra.mxu0 0.0
    %2007 = vmatprep.subr.mxu0 0.0
    %2008 = vmatpush1.msra.mxu0 0.0
    %2009 = vmatprep.subr.mxu0 0.0
    %2010 = vmatpush1.msra.mxu0 0.0
    %2011 = vmatprep.subr.mxu0 0.0
    %2012 = vmatpush1.msra.mxu0 0.0
    %2013 = vmatprep.subr.mxu0 0.0
    %2014 = vmatpush1.msra.mxu0 0.0
    %2015 = vmatprep.subr.mxu0 0.0
    %2016 = vmatpush1.msra.mxu0 0.0
    %2017 = vmatprep.subr.mxu0 0.0
    %2018 = vmatpush1.msra.mxu0 0.0
    %2019 = vmatprep.subr.mxu0 0.0
    %2020 = vmatpush1.msra.mxu0 0.0
    %2021 = vmatprep.subr.mxu0 0.0
    %2022 = vmatpush1.msra.mxu0 0.0
    %2023 = vmatprep.mubr.f32.mxu0 0.0
    %2024 = vmatmul.mubr.f32.gmra.mrb[0].mxu0 %v1948
    %v2025 = vpop.f32.mrb[0].mxu0
    %v2026 = vadd.f32 %v1945, %v2025
    %v2027 = vpop.f32.mrb[0].mxu0
    %2028 = vmatprep.mubr.f32.mxu0 0.0
    %2029 = vmatmul.mubr.f32.gmra.mrb[0].mxu0 %v1951
    %v2030 = vpop.f32.mrb[0].mxu0
    %v2031 = vadd.f32 %v1945, %v2030
    %v2032 = vpop.f32.mrb[0].mxu0
    %2033 = vmatprep.mubr.f32.mxu0 0.0
    %2034 = vmatmul.mubr.f32.gmra.mrb[0].mxu0 %v1954
    %v2035 = vpop.f32.mrb[0].mxu0
    %v2036 = vadd.f32 %v1945, %v2035
    %v2037 = vpop.f32.mrb[0].mxu0
    %2038 = vmatprep.mubr.f32.mxu0 0.0
    %2039 = vmatmul.mubr.f32.gmra.mrb[0].mxu0 %v1957
    %v2040 = vpop.f32.mrb[0].mxu0
    %v2041 = vadd.f32 %v1945, %v2040
    %v2042 = vpop.f32.mrb[0].mxu0
    %2043 = vdwg.mxu0
    %v2044 = vld [vmem:[#allocation10] sm:$0xff]
    %v2045 = vld [vmem:[#allocation10 + $0x8] sm:$0xff]
    %v2046 = vld [vmem:[#allocation10 + $0x10] sm:$0xff]
    %v2047 = vld [vmem:[#allocation10 + $0x18] sm:$0xff]
    %v2048 = vld [vmem:[%s6] sm:$0x1]
    %v2050 = vlaneseq
    %v2051 = vshrl.u32 %v2050, 7
    %v2052 = vsub.s32 0, %v2051
    %v2053 = vrot.slane %v2048, %v2052
    %2055 = vmatprep.subr.mxu0 0.0
    %2056 = vmatpush1.msra.mxu0 %v2044
    %2057 = vmatprep.subr.mxu0 0.0
    %2058 = vmatpush1.msra.mxu0 %v2045
    %2059 = vmatprep.subr.mxu0 0.0
    %2060 = vmatpush1.msra.mxu0 %v2046
    %2061 = vmatprep.subr.mxu0 0.0
    %2062 = vmatpush1.msra.mxu0 %v2047
    %2063 = vmatprep.subr.mxu0 0.0
    %2064 = vmatpush1.msra.mxu0 0.0
    %2065 = vmatprep.subr.mxu0 0.0
    %2066 = vmatpush1.msra.mxu0 0.0
    %2067 = vmatprep.subr.mxu0 0.0
    %2068 = vmatpush1.msra.mxu0 0.0
    %2069 = vmatprep.subr.mxu0 0.0
    %2070 = vmatpush1.msra.mxu0 0.0
    %2071 = vmatprep.subr.mxu0 0.0
    %2072 = vmatpush1.msra.mxu0 0.0
    %2073 = vmatprep.subr.mxu0 0.0
    %2074 = vmatpush1.msra.mxu0 0.0
    %2075 = vmatprep.subr.mxu0 0.0
    %2076 = vmatpush1.msra.mxu0 0.0
    %2077 = vmatprep.subr.mxu0 0.0
    %2078 = vmatpush1.msra.mxu0 0.0
    %2079 = vmatprep.subr.mxu0 0.0
    %2080 = vmatpush1.msra.mxu0 0.0
    %2081 = vmatprep.subr.mxu0 0.0
    %2082 = vmatpush1.msra.mxu0 0.0
    %2083 = vmatprep.subr.mxu0 0.0
    %2084 = vmatpush1.msra.mxu0 0.0
    %2085 = vmatprep.subr.mxu0 0.0
    %2086 = vmatpush1.msra.mxu0 0.0
    %2087 = vmatprep.subr.mxu0 0.0
    %2088 = vmatpush1.msra.mxu0 0.0
    %2089 = vmatprep.subr.mxu0 0.0
    %2090 = vmatpush1.msra.mxu0 0.0
    %2091 = vmatprep.subr.mxu0 0.0
    %2092 = vmatpush1.msra.mxu0 0.0
    %2093 = vmatprep.subr.mxu0 0.0
    %2094 = vmatpush1.msra.mxu0 0.0
    %2095 = vmatprep.subr.mxu0 0.0
    %2096 = vmatpush1.msra.mxu0 0.0
    %2097 = vmatprep.subr.mxu0 0.0
    %2098 = vmatpush1.msra.mxu0 0.0
    %2099 = vmatprep.subr.mxu0 0.0
    %2100 = vmatpush1.msra.mxu0 0.0
    %2101 = vmatprep.subr.mxu0 0.0
    %2102 = vmatpush1.msra.mxu0 0.0
    %2103 = vmatprep.subr.mxu0 0.0
    %2104 = vmatpush1.msra.mxu0 0.0
    %2105 = vmatprep.subr.mxu0 0.0
    %2106 = vmatpush1.msra.mxu0 0.0
    %2107 = vmatprep.subr.mxu0 0.0
    %2108 = vmatpush1.msra.mxu0 0.0
    %2109 = vmatprep.subr.mxu0 0.0
    %2110 = vmatpush1.msra.mxu0 0.0
    %2111 = vmatprep.subr.mxu0 0.0
    %2112 = vmatpush1.msra.mxu0 0.0
    %2113 = vmatprep.subr.mxu0 0.0
    %2114 = vmatpush1.msra.mxu0 0.0
    %2115 = vmatprep.subr.mxu0 0.0
    %2116 = vmatpush1.msra.mxu0 0.0
    %2117 = vmatprep.subr.mxu0 0.0
    %2118 = vmatpush1.msra.mxu0 0.0
    %2119 = vmatprep.mubr.f32.mxu0 0.0
    %2120 = vmatmul.mubr.f32.gmra.mrb[0].mxu0 %v1948
    %v2121 = vpop.f32.mrb[0].mxu0
    %v2122 = vadd.f32 %v2053, %v2121
    %v2123 = vpop.f32.mrb[0].mxu0
    %2124 = vmatprep.mubr.f32.mxu0 0.0
    %2125 = vmatmul.mubr.f32.gmra.mrb[0].mxu0 %v1951
    %v2126 = vpop.f32.mrb[0].mxu0
    %v2127 = vadd.f32 %v2053, %v2126
    %v2128 = vpop.f32.mrb[0].mxu0
    %2129 = vmatprep.mubr.f32.mxu0 0.0
    %2130 = vmatmul.mubr.f32.gmra.mrb[0].mxu0 %v1954
    %v2131 = vpop.f32.mrb[0].mxu0
    %v2132 = vadd.f32 %v2053, %v2131
    %v2133 = vpop.f32.mrb[0].mxu0
    %2134 = vmatprep.mubr.f32.mxu0 0.0
    %2135 = vmatmul.mubr.f32.gmra.mrb[0].mxu0 %v1957
    %v2136 = vpop.f32.mrb[0].mxu0
    %v2137 = vadd.f32 %v2053, %v2136
    %v2138 = vpop.f32.mrb[0].mxu0
    %2139 = vdwg.mxu0
    %2140 = vmatprep.subr.mxu0 0.0
    %2141 = vmatpush1.msra.mxu0 %v2026
    %2142 = vmatprep.subr.mxu0 0.0
    %2143 = vmatpush1.msra.mxu0 0.0
    %2144 = vmatprep.subr.mxu0 0.0
    %2145 = vmatpush1.msra.mxu0 0.0
    %2146 = vmatprep.subr.mxu0 0.0
    %2147 = vmatpush1.msra.mxu0 0.0
    %2148 = vmatprep.subr.mxu0 0.0
    %2149 = vmatpush1.msra.mxu0 0.0
    %2150 = vmatprep.subr.mxu0 0.0
    %2151 = vmatpush1.msra.mxu0 0.0
    %2152 = vmatprep.subr.mxu0 0.0
    %2153 = vmatpush1.msra.mxu0 0.0
    %2154 = vmatprep.subr.mxu0 0.0
    %2155 = vmatpush1.msra.mxu0 0.0
    %2156 = vmatprep.subr.mxu0 0.0
    %2157 = vmatpush1.msra.mxu0 0.0
    %2158 = vmatprep.subr.mxu0 0.0
    %2159 = vmatpush1.msra.mxu0 0.0
    %2160 = vmatprep.subr.mxu0 0.0
    %2161 = vmatpush1.msra.mxu0 0.0
    %2162 = vmatprep.subr.mxu0 0.0
    %2163 = vmatpush1.msra.mxu0 0.0
    %2164 = vmatprep.subr.mxu0 0.0
    %2165 = vmatpush1.msra.mxu0 0.0
    %2166 = vmatprep.subr.mxu0 0.0
    %2167 = vmatpush1.msra.mxu0 0.0
    %2168 = vmatprep.subr.mxu0 0.0
    %2169 = vmatpush1.msra.mxu0 0.0
    %2170 = vmatprep.subr.mxu0 0.0
    %2171 = vmatpush1.msra.mxu0 0.0
    %2172 = vmatprep.subr.mxu0 0.0
    %2173 = vmatpush1.msra.mxu0 0.0
    %2174 = vmatprep.subr.mxu0 0.0
    %2175 = vmatpush1.msra.mxu0 0.0
    %2176 = vmatprep.subr.mxu0 0.0
    %2177 = vmatpush1.msra.mxu0 0.0
    %2178 = vmatprep.subr.mxu0 0.0
    %2179 = vmatpush1.msra.mxu0 0.0
    %2180 = vmatprep.subr.mxu0 0.0
    %2181 = vmatpush1.msra.mxu0 0.0
    %2182 = vmatprep.subr.mxu0 0.0
    %2183 = vmatpush1.msra.mxu0 0.0
    %2184 = vmatprep.subr.mxu0 0.0
    %2185 = vmatpush1.msra.mxu0 0.0
    %2186 = vmatprep.subr.mxu0 0.0
    %2187 = vmatpush1.msra.mxu0 0.0
    %2188 = vmatprep.subr.mxu0 0.0
    %2189 = vmatpush1.msra.mxu0 0.0
    %2190 = vmatprep.subr.mxu0 0.0
    %2191 = vmatpush1.msra.mxu0 0.0
    %2192 = vmatprep.subr.mxu0 0.0
    %2193 = vmatpush1.msra.mxu0 0.0
    %2194 = vmatprep.subr.mxu0 0.0
    %2195 = vmatpush1.msra.mxu0 0.0
    %2196 = vmatprep.subr.mxu0 0.0
    %2197 = vmatpush1.msra.mxu0 0.0
    %2198 = vmatprep.subr.mxu0 0.0
    %2199 = vmatpush1.msra.mxu0 0.0
    %2200 = vmatprep.subr.mxu0 0.0
    %2201 = vmatpush1.msra.mxu0 0.0
    %2202 = vmatprep.subr.mxu0 0.0
    %2203 = vmatpush1.msra.mxu0 0.0
    %2204 = vmatprep.mubr.f32.mxu0 0.0
    %2205 = vmatmul.mubr.f32.gmra.mrb[0].mxu0 %v379
    %v2206 = vpop.f32.mrb[0].mxu0
    %v2207 = vadd.f32 0.0, %v2206
    %v2208 = vpop.f32.mrb[0].mxu0
    %2209 = vdwg.mxu0
    %2210 = vmatprep.subr.mxu0 0.0
    %2211 = vmatpush1.msra.mxu0 %v2031
    %2212 = vmatprep.subr.mxu0 0.0
    %2213 = vmatpush1.msra.mxu0 0.0
    %2214 = vmatprep.subr.mxu0 0.0
    %2215 = vmatpush1.msra.mxu0 0.0
    %2216 = vmatprep.subr.mxu0 0.0
    %2217 = vmatpush1.msra.mxu0 0.0
    %2218 = vmatprep.subr.mxu0 0.0
    %2219 = vmatpush1.msra.mxu0 0.0
    %2220 = vmatprep.subr.mxu0 0.0
    %2221 = vmatpush1.msra.mxu0 0.0
    %2222 = vmatprep.subr.mxu0 0.0
    %2223 = vmatpush1.msra.mxu0 0.0
    %2224 = vmatprep.subr.mxu0 0.0
    %2225 = vmatpush1.msra.mxu0 0.0
    %2226 = vmatprep.subr.mxu0 0.0
    %2227 = vmatpush1.msra.mxu0 0.0
    %2228 = vmatprep.subr.mxu0 0.0
    %2229 = vmatpush1.msra.mxu0 0.0
    %2230 = vmatprep.subr.mxu0 0.0
    %2231 = vmatpush1.msra.mxu0 0.0
    %2232 = vmatprep.subr.mxu0 0.0
    %2233 = vmatpush1.msra.mxu0 0.0
    %2234 = vmatprep.subr.mxu0 0.0
    %2235 = vmatpush1.msra.mxu0 0.0
    %2236 = vmatprep.subr.mxu0 0.0
    %2237 = vmatpush1.msra.mxu0 0.0
    %2238 = vmatprep.subr.mxu0 0.0
    %2239 = vmatpush1.msra.mxu0 0.0
    %2240 = vmatprep.subr.mxu0 0.0
    %2241 = vmatpush1.msra.mxu0 0.0
    %2242 = vmatprep.subr.mxu0 0.0
    %2243 = vmatpush1.msra.mxu0 0.0
    %2244 = vmatprep.subr.mxu0 0.0
    %2245 = vmatpush1.msra.mxu0 0.0
    %2246 = vmatprep.subr.mxu0 0.0
    %2247 = vmatpush1.msra.mxu0 0.0
    %2248 = vmatprep.subr.mxu0 0.0
    %2249 = vmatpush1.msra.mxu0 0.0
    %2250 = vmatprep.subr.mxu0 0.0
    %2251 = vmatpush1.msra.mxu0 0.0
    %2252 = vmatprep.subr.mxu0 0.0
    %2253 = vmatpush1.msra.mxu0 0.0
    %2254 = vmatprep.subr.mxu0 0.0
    %2255 = vmatpush1.msra.mxu0 0.0
    %2256 = vmatprep.subr.mxu0 0.0
    %2257 = vmatpush1.msra.mxu0 0.0
    %2258 = vmatprep.subr.mxu0 0.0
    %2259 = vmatpush1.msra.mxu0 0.0
    %2260 = vmatprep.subr.mxu0 0.0
    %2261 = vmatpush1.msra.mxu0 0.0
    %2262 = vmatprep.subr.mxu0 0.0
    %2263 = vmatpush1.msra.mxu0 0.0
    %2264 = vmatprep.subr.mxu0 0.0
    %2265 = vmatpush1.msra.mxu0 0.0
    %2266 = vmatprep.subr.mxu0 0.0
    %2267 = vmatpush1.msra.mxu0 0.0
    %2268 = vmatprep.subr.mxu0 0.0
    %2269 = vmatpush1.msra.mxu0 0.0
    %2270 = vmatprep.subr.mxu0 0.0
    %2271 = vmatpush1.msra.mxu0 0.0
    %2272 = vmatprep.subr.mxu0 0.0
    %2273 = vmatpush1.msra.mxu0 0.0
    %2274 = vmatprep.mubr.f32.mxu0 0.0
    %2275 = vmatmul.mubr.f32.gmra.mrb[0].mxu0 %v452
    %v2276 = vpop.f32.mrb[0].mxu0
    %v2277 = vadd.f32 0.0, %v2276
    %v2278 = vpop.f32.mrb[0].mxu0
    %2279 = vdwg.mxu0
    %2280 = vmatprep.subr.mxu0 0.0
    %2281 = vmatpush1.msra.mxu0 %v2036
    %2282 = vmatprep.subr.mxu0 0.0
    %2283 = vmatpush1.msra.mxu0 0.0
    %2284 = vmatprep.subr.mxu0 0.0
    %2285 = vmatpush1.msra.mxu0 0.0
    %2286 = vmatprep.subr.mxu0 0.0
    %2287 = vmatpush1.msra.mxu0 0.0
    %2288 = vmatprep.subr.mxu0 0.0
    %2289 = vmatpush1.msra.mxu0 0.0
    %2290 = vmatprep.subr.mxu0 0.0
    %2291 = vmatpush1.msra.mxu0 0.0
    %2292 = vmatprep.subr.mxu0 0.0
    %2293 = vmatpush1.msra.mxu0 0.0
    %2294 = vmatprep.subr.mxu0 0.0
    %2295 = vmatpush1.msra.mxu0 0.0
    %2296 = vmatprep.subr.mxu0 0.0
    %2297 = vmatpush1.msra.mxu0 0.0
    %2298 = vmatprep.subr.mxu0 0.0
    %2299 = vmatpush1.msra.mxu0 0.0
    %2300 = vmatprep.subr.mxu0 0.0
    %2301 = vmatpush1.msra.mxu0 0.0
    %2302 = vmatprep.subr.mxu0 0.0
    %2303 = vmatpush1.msra.mxu0 0.0
    %2304 = vmatprep.subr.mxu0 0.0
    %2305 = vmatpush1.msra.mxu0 0.0
    %2306 = vmatprep.subr.mxu0 0.0
    %2307 = vmatpush1.msra.mxu0 0.0
    %2308 = vmatprep.subr.mxu0 0.0
    %2309 = vmatpush1.msra.mxu0 0.0
    %2310 = vmatprep.subr.mxu0 0.0
    %2311 = vmatpush1.msra.mxu0 0.0
    %2312 = vmatprep.subr.mxu0 0.0
    %2313 = vmatpush1.msra.mxu0 0.0
    %2314 = vmatprep.subr.mxu0 0.0
    %2315 = vmatpush1.msra.mxu0 0.0
    %2316 = vmatprep.subr.mxu0 0.0
    %2317 = vmatpush1.msra.mxu0 0.0
    %2318 = vmatprep.subr.mxu0 0.0
    %2319 = vmatpush1.msra.mxu0 0.0
    %2320 = vmatprep.subr.mxu0 0.0
    %2321 = vmatpush1.msra.mxu0 0.0
    %2322 = vmatprep.subr.mxu0 0.0
    %2323 = vmatpush1.msra.mxu0 0.0
    %2324 = vmatprep.subr.mxu0 0.0
    %2325 = vmatpush1.msra.mxu0 0.0
    %2326 = vmatprep.subr.mxu0 0.0
    %2327 = vmatpush1.msra.mxu0 0.0
    %2328 = vmatprep.subr.mxu0 0.0
    %2329 = vmatpush1.msra.mxu0 0.0
    %2330 = vmatprep.subr.mxu0 0.0
    %2331 = vmatpush1.msra.mxu0 0.0
    %2332 = vmatprep.subr.mxu0 0.0
    %2333 = vmatpush1.msra.mxu0 0.0
    %2334 = vmatprep.subr.mxu0 0.0
    %2335 = vmatpush1.msra.mxu0 0.0
    %2336 = vmatprep.subr.mxu0 0.0
    %2337 = vmatpush1.msra.mxu0 0.0
    %2338 = vmatprep.subr.mxu0 0.0
    %2339 = vmatpush1.msra.mxu0 0.0
    %2340 = vmatprep.subr.mxu0 0.0
    %2341 = vmatpush1.msra.mxu0 0.0
    %2342 = vmatprep.subr.mxu0 0.0
    %2343 = vmatpush1.msra.mxu0 0.0
    %2344 = vmatprep.mubr.f32.mxu0 0.0
    %2345 = vmatmul.mubr.f32.gmra.mrb[0].mxu0 %v525
    %v2346 = vpop.f32.mrb[0].mxu0
    %v2347 = vadd.f32 0.0, %v2346
    %v2348 = vpop.f32.mrb[0].mxu0
    %2349 = vdwg.mxu0
    %2350 = vmatprep.subr.mxu0 0.0
    %2351 = vmatpush1.msra.mxu0 %v2041
    %2352 = vmatprep.subr.mxu0 0.0
    %2353 = vmatpush1.msra.mxu0 0.0
    %2354 = vmatprep.subr.mxu0 0.0
    %2355 = vmatpush1.msra.mxu0 0.0
    %2356 = vmatprep.subr.mxu0 0.0
    %2357 = vmatpush1.msra.mxu0 0.0
    %2358 = vmatprep.subr.mxu0 0.0
    %2359 = vmatpush1.msra.mxu0 0.0
    %2360 = vmatprep.subr.mxu0 0.0
    %2361 = vmatpush1.msra.mxu0 0.0
    %2362 = vmatprep.subr.mxu0 0.0
    %2363 = vmatpush1.msra.mxu0 0.0
    %2364 = vmatprep.subr.mxu0 0.0
    %2365 = vmatpush1.msra.mxu0 0.0
    %2366 = vmatprep.subr.mxu0 0.0
    %2367 = vmatpush1.msra.mxu0 0.0
    %2368 = vmatprep.subr.mxu0 0.0
    %2369 = vmatpush1.msra.mxu0 0.0
    %2370 = vmatprep.subr.mxu0 0.0
    %2371 = vmatpush1.msra.mxu0 0.0
    %2372 = vmatprep.subr.mxu0 0.0
    %2373 = vmatpush1.msra.mxu0 0.0
    %2374 = vmatprep.subr.mxu0 0.0
    %2375 = vmatpush1.msra.mxu0 0.0
    %2376 = vmatprep.subr.mxu0 0.0
    %2377 = vmatpush1.msra.mxu0 0.0
    %2378 = vmatprep.subr.mxu0 0.0
    %2379 = vmatpush1.msra.mxu0 0.0
    %2380 = vmatprep.subr.mxu0 0.0
    %2381 = vmatpush1.msra.mxu0 0.0
    %2382 = vmatprep.subr.mxu0 0.0
    %2383 = vmatpush1.msra.mxu0 0.0
    %2384 = vmatprep.subr.mxu0 0.0
    %2385 = vmatpush1.msra.mxu0 0.0
    %2386 = vmatprep.subr.mxu0 0.0
    %2387 = vmatpush1.msra.mxu0 0.0
    %2388 = vmatprep.subr.mxu0 0.0
    %2389 = vmatpush1.msra.mxu0 0.0
    %2390 = vmatprep.subr.mxu0 0.0
    %2391 = vmatpush1.msra.mxu0 0.0
    %2392 = vmatprep.subr.mxu0 0.0
    %2393 = vmatpush1.msra.mxu0 0.0
    %2394 = vmatprep.subr.mxu0 0.0
    %2395 = vmatpush1.msra.mxu0 0.0
    %2396 = vmatprep.subr.mxu0 0.0
    %2397 = vmatpush1.msra.mxu0 0.0
    %2398 = vmatprep.subr.mxu0 0.0
    %2399 = vmatpush1.msra.mxu0 0.0
    %2400 = vmatprep.subr.mxu0 0.0
    %2401 = vmatpush1.msra.mxu0 0.0
    %2402 = vmatprep.subr.mxu0 0.0
    %2403 = vmatpush1.msra.mxu0 0.0
    %2404 = vmatprep.subr.mxu0 0.0
    %2405 = vmatpush1.msra.mxu0 0.0
    %2406 = vmatprep.subr.mxu0 0.0
    %2407 = vmatpush1.msra.mxu0 0.0
    %2408 = vmatprep.subr.mxu0 0.0
    %2409 = vmatpush1.msra.mxu0 0.0
    %2410 = vmatprep.subr.mxu0 0.0
    %2411 = vmatpush1.msra.mxu0 0.0
    %2412 = vmatprep.subr.mxu0 0.0
    %2413 = vmatpush1.msra.mxu0 0.0
    %2414 = vmatprep.mubr.f32.mxu0 0.0
    %2415 = vmatmul.mubr.f32.gmra.mrb[0].mxu0 %v598
    %v2416 = vpop.f32.mrb[0].mxu0
    %v2417 = vadd.f32 0.0, %v2416
    %v2418 = vpop.f32.mrb[0].mxu0
    %2419 = vdwg.mxu0
    %v2420 = vld [vmem:[%s7] sm:$0x1]
    %v2422 = vlaneseq
    %v2423 = vshrl.u32 %v2422, 7
    %v2424 = vsub.s32 0, %v2423
    %v2425 = vrot.slane %v2420, %v2424
    %v2427 = vadd.f32 %v2207, %v2425
    %v2428 = vadd.f32 %v2277, %v2425
    %v2429 = vadd.f32 %v2347, %v2425
    %v2430 = vadd.f32 %v2417, %v2425
    %2431 = vmatprep.subr.mxu0 0.0
    %2432 = vmatpush1.msra.mxu0 %v2122
    %2433 = vmatprep.subr.mxu0 0.0
    %2434 = vmatpush1.msra.mxu0 0.0
    %2435 = vmatprep.subr.mxu0 0.0
    %2436 = vmatpush1.msra.mxu0 0.0
    %2437 = vmatprep.subr.mxu0 0.0
    %2438 = vmatpush1.msra.mxu0 0.0
    %2439 = vmatprep.subr.mxu0 0.0
    %2440 = vmatpush1.msra.mxu0 0.0
    %2441 = vmatprep.subr.mxu0 0.0
    %2442 = vmatpush1.msra.mxu0 0.0
    %2443 = vmatprep.subr.mxu0 0.0
    %2444 = vmatpush1.msra.mxu0 0.0
    %2445 = vmatprep.subr.mxu0 0.0
    %2446 = vmatpush1.msra.mxu0 0.0
    %2447 = vmatprep.subr.mxu0 0.0
    %2448 = vmatpush1.msra.mxu0 0.0
    %2449 = vmatprep.subr.mxu0 0.0
    %2450 = vmatpush1.msra.mxu0 0.0
    %2451 = vmatprep.subr.mxu0 0.0
    %2452 = vmatpush1.msra.mxu0 0.0
    %2453 = vmatprep.subr.mxu0 0.0
    %2454 = vmatpush1.msra.mxu0 0.0
    %2455 = vmatprep.subr.mxu0 0.0
    %2456 = vmatpush1.msra.mxu0 0.0
    %2457 = vmatprep.subr.mxu0 0.0
    %2458 = vmatpush1.msra.mxu0 0.0
    %2459 = vmatprep.subr.mxu0 0.0
    %2460 = vmatpush1.msra.mxu0 0.0
    %2461 = vmatprep.subr.mxu0 0.0
    %2462 = vmatpush1.msra.mxu0 0.0
    %2463 = vmatprep.subr.mxu0 0.0
    %2464 = vmatpush1.msra.mxu0 0.0
    %2465 = vmatprep.subr.mxu0 0.0
    %2466 = vmatpush1.msra.mxu0 0.0
    %2467 = vmatprep.subr.mxu0 0.0
    %2468 = vmatpush1.msra.mxu0 0.0
    %2469 = vmatprep.subr.mxu0 0.0
    %2470 = vmatpush1.msra.mxu0 0.0
    %2471 = vmatprep.subr.mxu0 0.0
    %2472 = vmatpush1.msra.mxu0 0.0
    %2473 = vmatprep.subr.mxu0 0.0
    %2474 = vmatpush1.msra.mxu0 0.0
    %2475 = vmatprep.subr.mxu0 0.0
    %2476 = vmatpush1.msra.mxu0 0.0
    %2477 = vmatprep.subr.mxu0 0.0
    %2478 = vmatpush1.msra.mxu0 0.0
    %2479 = vmatprep.subr.mxu0 0.0
    %2480 = vmatpush1.msra.mxu0 0.0
    %2481 = vmatprep.subr.mxu0 0.0
    %2482 = vmatpush1.msra.mxu0 0.0
    %2483 = vmatprep.subr.mxu0 0.0
    %2484 = vmatpush1.msra.mxu0 0.0
    %2485 = vmatprep.subr.mxu0 0.0
    %2486 = vmatpush1.msra.mxu0 0.0
    %2487 = vmatprep.subr.mxu0 0.0
    %2488 = vmatpush1.msra.mxu0 0.0
    %2489 = vmatprep.subr.mxu0 0.0
    %2490 = vmatpush1.msra.mxu0 0.0
    %2491 = vmatprep.subr.mxu0 0.0
    %2492 = vmatpush1.msra.mxu0 0.0
    %2493 = vmatprep.subr.mxu0 0.0
    %2494 = vmatpush1.msra.mxu0 0.0
    %2495 = vmatprep.mubr.f32.mxu0 0.0
    %2496 = vmatmul.mubr.f32.gmra.mrb[0].mxu0 %v682
    %v2497 = vpop.f32.mrb[0].mxu0
    %v2498 = vadd.f32 0.0, %v2497
    %v2499 = vpop.f32.mrb[0].mxu0
    %2500 = vdwg.mxu0
    %2501 = vmatprep.subr.mxu0 0.0
    %2502 = vmatpush1.msra.mxu0 %v2127
    %2503 = vmatprep.subr.mxu0 0.0
    %2504 = vmatpush1.msra.mxu0 0.0
    %2505 = vmatprep.subr.mxu0 0.0
    %2506 = vmatpush1.msra.mxu0 0.0
    %2507 = vmatprep.subr.mxu0 0.0
    %2508 = vmatpush1.msra.mxu0 0.0
    %2509 = vmatprep.subr.mxu0 0.0
    %2510 = vmatpush1.msra.mxu0 0.0
    %2511 = vmatprep.subr.mxu0 0.0
    %2512 = vmatpush1.msra.mxu0 0.0
    %2513 = vmatprep.subr.mxu0 0.0
    %2514 = vmatpush1.msra.mxu0 0.0
    %2515 = vmatprep.subr.mxu0 0.0
    %2516 = vmatpush1.msra.mxu0 0.0
    %2517 = vmatprep.subr.mxu0 0.0
    %2518 = vmatpush1.msra.mxu0 0.0
    %2519 = vmatprep.subr.mxu0 0.0
    %2520 = vmatpush1.msra.mxu0 0.0
    %2521 = vmatprep.subr.mxu0 0.0
    %2522 = vmatpush1.msra.mxu0 0.0
    %2523 = vmatprep.subr.mxu0 0.0
    %2524 = vmatpush1.msra.mxu0 0.0
    %2525 = vmatprep.subr.mxu0 0.0
    %2526 = vmatpush1.msra.mxu0 0.0
    %2527 = vmatprep.subr.mxu0 0.0
    %2528 = vmatpush1.msra.mxu0 0.0
    %2529 = vmatprep.subr.mxu0 0.0
    %2530 = vmatpush1.msra.mxu0 0.0
    %2531 = vmatprep.subr.mxu0 0.0
    %2532 = vmatpush1.msra.mxu0 0.0
    %2533 = vmatprep.subr.mxu0 0.0
    %2534 = vmatpush1.msra.mxu0 0.0
    %2535 = vmatprep.subr.mxu0 0.0
    %2536 = vmatpush1.msra.mxu0 0.0
    %2537 = vmatprep.subr.mxu0 0.0
    %2538 = vmatpush1.msra.mxu0 0.0
    %2539 = vmatprep.subr.mxu0 0.0
    %2540 = vmatpush1.msra.mxu0 0.0
    %2541 = vmatprep.subr.mxu0 0.0
    %2542 = vmatpush1.msra.mxu0 0.0
    %2543 = vmatprep.subr.mxu0 0.0
    %2544 = vmatpush1.msra.mxu0 0.0
    %2545 = vmatprep.subr.mxu0 0.0
    %2546 = vmatpush1.msra.mxu0 0.0
    %2547 = vmatprep.subr.mxu0 0.0
    %2548 = vmatpush1.msra.mxu0 0.0
    %2549 = vmatprep.subr.mxu0 0.0
    %2550 = vmatpush1.msra.mxu0 0.0
    %2551 = vmatprep.subr.mxu0 0.0
    %2552 = vmatpush1.msra.mxu0 0.0
    %2553 = vmatprep.subr.mxu0 0.0
    %2554 = vmatpush1.msra.mxu0 0.0
    %2555 = vmatprep.subr.mxu0 0.0
    %2556 = vmatpush1.msra.mxu0 0.0
    %2557 = vmatprep.subr.mxu0 0.0
    %2558 = vmatpush1.msra.mxu0 0.0
    %2559 = vmatprep.subr.mxu0 0.0
    %2560 = vmatpush1.msra.mxu0 0.0
    %2561 = vmatprep.subr.mxu0 0.0
    %2562 = vmatpush1.msra.mxu0 0.0
    %2563 = vmatprep.subr.mxu0 0.0
    %2564 = vmatpush1.msra.mxu0 0.0
    %2565 = vmatprep.mubr.f32.mxu0 0.0
    %2566 = vmatmul.mubr.f32.gmra.mrb[0].mxu0 %v755
    %v2567 = vpop.f32.mrb[0].mxu0
    %v2568 = vadd.f32 0.0, %v2567
    %v2569 = vpop.f32.mrb[0].mxu0
    %2570 = vdwg.mxu0
    %2571 = vmatprep.subr.mxu0 0.0
    %2572 = vmatpush1.msra.mxu0 %v2132
    %2573 = vmatprep.subr.mxu0 0.0
    %2574 = vmatpush1.msra.mxu0 0.0
    %2575 = vmatprep.subr.mxu0 0.0
    %2576 = vmatpush1.msra.mxu0 0.0
    %2577 = vmatprep.subr.mxu0 0.0
    %2578 = vmatpush1.msra.mxu0 0.0
    %2579 = vmatprep.subr.mxu0 0.0
    %2580 = vmatpush1.msra.mxu0 0.0
    %2581 = vmatprep.subr.mxu0 0.0
    %2582 = vmatpush1.msra.mxu0 0.0
    %2583 = vmatprep.subr.mxu0 0.0
    %2584 = vmatpush1.msra.mxu0 0.0
    %2585 = vmatprep.subr.mxu0 0.0
    %2586 = vmatpush1.msra.mxu0 0.0
    %2587 = vmatprep.subr.mxu0 0.0
    %2588 = vmatpush1.msra.mxu0 0.0
    %2589 = vmatprep.subr.mxu0 0.0
    %2590 = vmatpush1.msra.mxu0 0.0
    %2591 = vmatprep.subr.mxu0 0.0
    %2592 = vmatpush1.msra.mxu0 0.0
    %2593 = vmatprep.subr.mxu0 0.0
    %2594 = vmatpush1.msra.mxu0 0.0
    %2595 = vmatprep.subr.mxu0 0.0
    %2596 = vmatpush1.msra.mxu0 0.0
    %2597 = vmatprep.subr.mxu0 0.0
    %2598 = vmatpush1.msra.mxu0 0.0
    %2599 = vmatprep.subr.mxu0 0.0
    %2600 = vmatpush1.msra.mxu0 0.0
    %2601 = vmatprep.subr.mxu0 0.0
    %2602 = vmatpush1.msra.mxu0 0.0
    %2603 = vmatprep.subr.mxu0 0.0
    %2604 = vmatpush1.msra.mxu0 0.0
    %2605 = vmatprep.subr.mxu0 0.0
    %2606 = vmatpush1.msra.mxu0 0.0
    %2607 = vmatprep.subr.mxu0 0.0
    %2608 = vmatpush1.msra.mxu0 0.0
    %2609 = vmatprep.subr.mxu0 0.0
    %2610 = vmatpush1.msra.mxu0 0.0
    %2611 = vmatprep.subr.mxu0 0.0
    %2612 = vmatpush1.msra.mxu0 0.0
    %2613 = vmatprep.subr.mxu0 0.0
    %2614 = vmatpush1.msra.mxu0 0.0
    %2615 = vmatprep.subr.mxu0 0.0
    %2616 = vmatpush1.msra.mxu0 0.0
    %2617 = vmatprep.subr.mxu0 0.0
    %2618 = vmatpush1.msra.mxu0 0.0
    %2619 = vmatprep.subr.mxu0 0.0
    %2620 = vmatpush1.msra.mxu0 0.0
    %2621 = vmatprep.subr.mxu0 0.0
    %2622 = vmatpush1.msra.mxu0 0.0
    %2623 = vmatprep.subr.mxu0 0.0
    %2624 = vmatpush1.msra.mxu0 0.0
    %2625 = vmatprep.subr.mxu0 0.0
    %2626 = vmatpush1.msra.mxu0 0.0
    %2627 = vmatprep.subr.mxu0 0.0
    %2628 = vmatpush1.msra.mxu0 0.0
    %2629 = vmatprep.subr.mxu0 0.0
    %2630 = vmatpush1.msra.mxu0 0.0
    %2631 = vmatprep.subr.mxu0 0.0
    %2632 = vmatpush1.msra.mxu0 0.0
    %2633 = vmatprep.subr.mxu0 0.0
    %2634 = vmatpush1.msra.mxu0 0.0
    %2635 = vmatprep.mubr.f32.mxu0 0.0
    %2636 = vmatmul.mubr.f32.gmra.mrb[0].mxu0 %v828
    %v2637 = vpop.f32.mrb[0].mxu0
    %v2638 = vadd.f32 0.0, %v2637
    %v2639 = vpop.f32.mrb[0].mxu0
    %2640 = vdwg.mxu0
    %2641 = vmatprep.subr.mxu0 0.0
    %2642 = vmatpush1.msra.mxu0 %v2137
    %2643 = vmatprep.subr.mxu0 0.0
    %2644 = vmatpush1.msra.mxu0 0.0
    %2645 = vmatprep.subr.mxu0 0.0
    %2646 = vmatpush1.msra.mxu0 0.0
    %2647 = vmatprep.subr.mxu0 0.0
    %2648 = vmatpush1.msra.mxu0 0.0
    %2649 = vmatprep.subr.mxu0 0.0
    %2650 = vmatpush1.msra.mxu0 0.0
    %2651 = vmatprep.subr.mxu0 0.0
    %2652 = vmatpush1.msra.mxu0 0.0
    %2653 = vmatprep.subr.mxu0 0.0
    %2654 = vmatpush1.msra.mxu0 0.0
    %2655 = vmatprep.subr.mxu0 0.0
    %2656 = vmatpush1.msra.mxu0 0.0
    %2657 = vmatprep.subr.mxu0 0.0
    %2658 = vmatpush1.msra.mxu0 0.0
    %2659 = vmatprep.subr.mxu0 0.0
    %2660 = vmatpush1.msra.mxu0 0.0
    %2661 = vmatprep.subr.mxu0 0.0
    %2662 = vmatpush1.msra.mxu0 0.0
    %2663 = vmatprep.subr.mxu0 0.0
    %2664 = vmatpush1.msra.mxu0 0.0
    %2665 = vmatprep.subr.mxu0 0.0
    %2666 = vmatpush1.msra.mxu0 0.0
    %2667 = vmatprep.subr.mxu0 0.0
    %2668 = vmatpush1.msra.mxu0 0.0
    %2669 = vmatprep.subr.mxu0 0.0
    %2670 = vmatpush1.msra.mxu0 0.0
    %2671 = vmatprep.subr.mxu0 0.0
    %2672 = vmatpush1.msra.mxu0 0.0
    %2673 = vmatprep.subr.mxu0 0.0
    %2674 = vmatpush1.msra.mxu0 0.0
    %2675 = vmatprep.subr.mxu0 0.0
    %2676 = vmatpush1.msra.mxu0 0.0
    %2677 = vmatprep.subr.mxu0 0.0
    %2678 = vmatpush1.msra.mxu0 0.0
    %2679 = vmatprep.subr.mxu0 0.0
    %2680 = vmatpush1.msra.mxu0 0.0
    %2681 = vmatprep.subr.mxu0 0.0
    %2682 = vmatpush1.msra.mxu0 0.0
    %2683 = vmatprep.subr.mxu0 0.0
    %2684 = vmatpush1.msra.mxu0 0.0
    %2685 = vmatprep.subr.mxu0 0.0
    %2686 = vmatpush1.msra.mxu0 0.0
    %2687 = vmatprep.subr.mxu0 0.0
    %2688 = vmatpush1.msra.mxu0 0.0
    %2689 = vmatprep.subr.mxu0 0.0
    %2690 = vmatpush1.msra.mxu0 0.0
    %2691 = vmatprep.subr.mxu0 0.0
    %2692 = vmatpush1.msra.mxu0 0.0
    %2693 = vmatprep.subr.mxu0 0.0
    %2694 = vmatpush1.msra.mxu0 0.0
    %2695 = vmatprep.subr.mxu0 0.0
    %2696 = vmatpush1.msra.mxu0 0.0
    %2697 = vmatprep.subr.mxu0 0.0
    %2698 = vmatpush1.msra.mxu0 0.0
    %2699 = vmatprep.subr.mxu0 0.0
    %2700 = vmatpush1.msra.mxu0 0.0
    %2701 = vmatprep.subr.mxu0 0.0
    %2702 = vmatpush1.msra.mxu0 0.0
    %2703 = vmatprep.subr.mxu0 0.0
    %2704 = vmatpush1.msra.mxu0 0.0
    %2705 = vmatprep.mubr.f32.mxu0 0.0
    %2706 = vmatmul.mubr.f32.gmra.mrb[0].mxu0 %v901
    %v2707 = vpop.f32.mrb[0].mxu0
    %v2708 = vadd.f32 0.0, %v2707
    %v2709 = vpop.f32.mrb[0].mxu0
    %2710 = vdwg.mxu0
    %v2711 = vld [vmem:[%s8] sm:$0x1]
    %v2713 = vlaneseq
    %v2714 = vshrl.u32 %v2713, 7
    %v2715 = vsub.s32 0, %v2714
    %v2716 = vrot.slane %v2711, %v2715
    %v2718 = vadd.f32 %v2498, %v2716
    %v2719 = vadd.f32 %v2568, %v2716
    %v2720 = vadd.f32 %v2638, %v2716
    %v2721 = vadd.f32 %v2708, %v2716
    %v2722 = vld [vmem:[#allocation11] sm:$0xff]
    %v2723 = vld [vmem:[#allocation11 + $0x8] sm:$0xff]
    %v2724 = vld [vmem:[#allocation11 + $0x10] sm:$0xff]
    %v2725 = vld [vmem:[#allocation11 + $0x18] sm:$0xff]
    %v2726 = vld [vmem:[#allocation13] sm:$0xff]
    %v2727 = vld [vmem:[#allocation13 + $0x8] sm:$0xff]
    %v2728 = vld [vmem:[#allocation13 + $0x10] sm:$0xff]
    %v2729 = vld [vmem:[#allocation13 + $0x18] sm:$0xff]
    %v2731 = vsel %vm183, %v2718, 0
    %v2734 = vsel %vm183, %v2719, 0
    %v2737 = vsel %vm183, %v2720, 0
    %v2740 = vsel %vm183, %v2721, 0
    %2742 = vmatprep.subr.mxu0 0.0
    %2743 = vmatpush1.msra.mxu0 %v2726
    %2744 = vmatprep.subr.mxu0 0.0
    %2745 = vmatpush1.msra.mxu0 %v2727
    %2746 = vmatprep.subr.mxu0 0.0
    %2747 = vmatpush1.msra.mxu0 %v2728
    %2748 = vmatprep.subr.mxu0 0.0
    %2749 = vmatpush1.msra.mxu0 %v2729
    %2750 = vmatprep.subr.mxu0 0.0
    %2751 = vmatpush1.msra.mxu0 0.0
    %2752 = vmatprep.subr.mxu0 0.0
    %2753 = vmatpush1.msra.mxu0 0.0
    %2754 = vmatprep.subr.mxu0 0.0
    %2755 = vmatpush1.msra.mxu0 0.0
    %2756 = vmatprep.subr.mxu0 0.0
    %2757 = vmatpush1.msra.mxu0 0.0
    %2758 = vmatprep.subr.mxu0 0.0
    %2759 = vmatpush1.msra.mxu0 0.0
    %2760 = vmatprep.subr.mxu0 0.0
    %2761 = vmatpush1.msra.mxu0 0.0
    %2762 = vmatprep.subr.mxu0 0.0
    %2763 = vmatpush1.msra.mxu0 0.0
    %2764 = vmatprep.subr.mxu0 0.0
    %2765 = vmatpush1.msra.mxu0 0.0
    %2766 = vmatprep.subr.mxu0 0.0
    %2767 = vmatpush1.msra.mxu0 0.0
    %2768 = vmatprep.subr.mxu0 0.0
    %2769 = vmatpush1.msra.mxu0 0.0
    %2770 = vmatprep.subr.mxu0 0.0
    %2771 = vmatpush1.msra.mxu0 0.0
    %2772 = vmatprep.subr.mxu0 0.0
    %2773 = vmatpush1.msra.mxu0 0.0
    %2774 = vmatprep.subr.mxu0 0.0
    %2775 = vmatpush1.msra.mxu0 0.0
    %2776 = vmatprep.subr.mxu0 0.0
    %2777 = vmatpush1.msra.mxu0 0.0
    %2778 = vmatprep.subr.mxu0 0.0
    %2779 = vmatpush1.msra.mxu0 0.0
    %2780 = vmatprep.subr.mxu0 0.0
    %2781 = vmatpush1.msra.mxu0 0.0
    %2782 = vmatprep.subr.mxu0 0.0
    %2783 = vmatpush1.msra.mxu0 0.0
    %2784 = vmatprep.subr.mxu0 0.0
    %2785 = vmatpush1.msra.mxu0 0.0
    %2786 = vmatprep.subr.mxu0 0.0
    %2787 = vmatpush1.msra.mxu0 0.0
    %2788 = vmatprep.subr.mxu0 0.0
    %2789 = vmatpush1.msra.mxu0 0.0
    %2790 = vmatprep.subr.mxu0 0.0
    %2791 = vmatpush1.msra.mxu0 0.0
    %2792 = vmatprep.subr.mxu0 0.0
    %2793 = vmatpush1.msra.mxu0 0.0
    %2794 = vmatprep.subr.mxu0 0.0
    %2795 = vmatpush1.msra.mxu0 0.0
    %2796 = vmatprep.subr.mxu0 0.0
    %2797 = vmatpush1.msra.mxu0 0.0
    %2798 = vmatprep.subr.mxu0 0.0
    %2799 = vmatpush1.msra.mxu0 0.0
    %2800 = vmatprep.subr.mxu0 0.0
    %2801 = vmatpush1.msra.mxu0 0.0
    %2802 = vmatprep.subr.mxu0 0.0
    %2803 = vmatpush1.msra.mxu0 0.0
    %2804 = vmatprep.subr.mxu0 0.0
    %2805 = vmatpush1.msra.mxu0 0.0
    %2806 = vmatprep.mubr.f32.mxu0 0.0
    %2807 = vmatmul.mubr.f32.gmra.mrb[0].mxu0 %v2731
    %v2808 = vpop.f32.mrb[0].mxu0
    %v2809 = vadd.f32 0.0, %v2808
    %v2810 = vpop.f32.mrb[0].mxu0
    %2811 = vmatprep.mubr.f32.mxu0 0.0
    %2812 = vmatmul.mubr.f32.gmra.mrb[0].mxu0 %v2734
    %v2813 = vpop.f32.mrb[0].mxu0
    %v2814 = vadd.f32 0.0, %v2813
    %v2815 = vpop.f32.mrb[0].mxu0
    %2816 = vmatprep.mubr.f32.mxu0 0.0
    %2817 = vmatmul.mubr.f32.gmra.mrb[0].mxu0 %v2737
    %v2818 = vpop.f32.mrb[0].mxu0
    %v2819 = vadd.f32 0.0, %v2818
    %v2820 = vpop.f32.mrb[0].mxu0
    %2821 = vmatprep.mubr.f32.mxu0 0.0
    %2822 = vmatmul.mubr.f32.gmra.mrb[0].mxu0 %v2740
    %v2823 = vpop.f32.mrb[0].mxu0
    %v2824 = vadd.f32 0.0, %v2823
    %v2825 = vpop.f32.mrb[0].mxu0
    %2826 = vdwg.mxu0
    %v2828 = vsel %vm183, %v2427, 0
    %v2831 = vsel %vm183, %v2428, 0
    %v2834 = vsel %vm183, %v2429, 0
    %v2837 = vsel %vm183, %v2430, 0
    %2839 = vmatprep.subr.mxu0 0.0
    %2840 = vmatpush1.msra.mxu0 %v2722
    %2841 = vmatprep.subr.mxu0 0.0
    %2842 = vmatpush1.msra.mxu0 %v2723
    %2843 = vmatprep.subr.mxu0 0.0
    %2844 = vmatpush1.msra.mxu0 %v2724
    %2845 = vmatprep.subr.mxu0 0.0
    %2846 = vmatpush1.msra.mxu0 %v2725
    %2847 = vmatprep.subr.mxu0 0.0
    %2848 = vmatpush1.msra.mxu0 0.0
    %2849 = vmatprep.subr.mxu0 0.0
    %2850 = vmatpush1.msra.mxu0 0.0
    %2851 = vmatprep.subr.mxu0 0.0
    %2852 = vmatpush1.msra.mxu0 0.0
    %2853 = vmatprep.subr.mxu0 0.0
    %2854 = vmatpush1.msra.mxu0 0.0
    %2855 = vmatprep.subr.mxu0 0.0
    %2856 = vmatpush1.msra.mxu0 0.0
    %2857 = vmatprep.subr.mxu0 0.0
    %2858 = vmatpush1.msra.mxu0 0.0
    %2859 = vmatprep.subr.mxu0 0.0
    %2860 = vmatpush1.msra.mxu0 0.0
    %2861 = vmatprep.subr.mxu0 0.0
    %2862 = vmatpush1.msra.mxu0 0.0
    %2863 = vmatprep.subr.mxu0 0.0
    %2864 = vmatpush1.msra.mxu0 0.0
    %2865 = vmatprep.subr.mxu0 0.0
    %2866 = vmatpush1.msra.mxu0 0.0
    %2867 = vmatprep.subr.mxu0 0.0
    %2868 = vmatpush1.msra.mxu0 0.0
    %2869 = vmatprep.subr.mxu0 0.0
    %2870 = vmatpush1.msra.mxu0 0.0
    %2871 = vmatprep.subr.mxu0 0.0
    %2872 = vmatpush1.msra.mxu0 0.0
    %2873 = vmatprep.subr.mxu0 0.0
    %2874 = vmatpush1.msra.mxu0 0.0
    %2875 = vmatprep.subr.mxu0 0.0
    %2876 = vmatpush1.msra.mxu0 0.0
    %2877 = vmatprep.subr.mxu0 0.0
    %2878 = vmatpush1.msra.mxu0 0.0
    %2879 = vmatprep.subr.mxu0 0.0
    %2880 = vmatpush1.msra.mxu0 0.0
    %2881 = vmatprep.subr.mxu0 0.0
    %2882 = vmatpush1.msra.mxu0 0.0
    %2883 = vmatprep.subr.mxu0 0.0
    %2884 = vmatpush1.msra.mxu0 0.0
    %2885 = vmatprep.subr.mxu0 0.0
    %2886 = vmatpush1.msra.mxu0 0.0
    %2887 = vmatprep.subr.mxu0 0.0
    %2888 = vmatpush1.msra.mxu0 0.0
    %2889 = vmatprep.subr.mxu0 0.0
    %2890 = vmatpush1.msra.mxu0 0.0
    %2891 = vmatprep.subr.mxu0 0.0
    %2892 = vmatpush1.msra.mxu0 0.0
    %2893 = vmatprep.subr.mxu0 0.0
    %2894 = vmatpush1.msra.mxu0 0.0
    %2895 = vmatprep.subr.mxu0 0.0
    %2896 = vmatpush1.msra.mxu0 0.0
    %2897 = vmatprep.subr.mxu0 0.0
    %2898 = vmatpush1.msra.mxu0 0.0
    %2899 = vmatprep.subr.mxu0 0.0
    %2900 = vmatpush1.msra.mxu0 0.0
    %2901 = vmatprep.subr.mxu0 0.0
    %2902 = vmatpush1.msra.mxu0 0.0
    %2903 = vmatprep.mubr.f32.mxu0 0.0
    %2904 = vmatmul.mubr.f32.gmra.mrb[0].mxu0 %v2828
    %v2905 = vpop.f32.mrb[0].mxu0
    %v2906 = vadd.f32 %v2809, %v2905
    %v2907 = vpop.f32.mrb[0].mxu0
    %2908 = vmatprep.mubr.f32.mxu0 0.0
    %2909 = vmatmul.mubr.f32.gmra.mrb[0].mxu0 %v2831
    %v2910 = vpop.f32.mrb[0].mxu0
    %v2911 = vadd.f32 %v2814, %v2910
    %v2912 = vpop.f32.mrb[0].mxu0
    %2913 = vmatprep.mubr.f32.mxu0 0.0
    %2914 = vmatmul.mubr.f32.gmra.mrb[0].mxu0 %v2834
    %v2915 = vpop.f32.mrb[0].mxu0
    %v2916 = vadd.f32 %v2819, %v2915
    %v2917 = vpop.f32.mrb[0].mxu0
    %2918 = vmatprep.mubr.f32.mxu0 0.0
    %2919 = vmatmul.mubr.f32.gmra.mrb[0].mxu0 %v2837
    %v2920 = vpop.f32.mrb[0].mxu0
    %v2921 = vadd.f32 %v2824, %v2920
    %v2922 = vpop.f32.mrb[0].mxu0
    %2923 = vdwg.mxu0
    %v2924 = vld [vmem:[#allocation14] sm:$0xff]
    %v2925 = vld [vmem:[#allocation14 + $0x8] sm:$0xff]
    %v2926 = vld [vmem:[#allocation14 + $0x10] sm:$0xff]
    %v2927 = vld [vmem:[#allocation14 + $0x18] sm:$0xff]
    %2928 = vmatprep.subr.mxu0 0.0
    %2929 = vmatpush1.msra.mxu0 %v2924
    %2930 = vmatprep.subr.mxu0 0.0
    %2931 = vmatpush1.msra.mxu0 %v2925
    %2932 = vmatprep.subr.mxu0 0.0
    %2933 = vmatpush1.msra.mxu0 %v2926
    %2934 = vmatprep.subr.mxu0 0.0
    %2935 = vmatpush1.msra.mxu0 %v2927
    %2936 = vmatprep.subr.mxu0 0.0
    %2937 = vmatpush1.msra.mxu0 0.0
    %2938 = vmatprep.subr.mxu0 0.0
    %2939 = vmatpush1.msra.mxu0 0.0
    %2940 = vmatprep.subr.mxu0 0.0
    %2941 = vmatpush1.msra.mxu0 0.0
    %2942 = vmatprep.subr.mxu0 0.0
    %2943 = vmatpush1.msra.mxu0 0.0
    %2944 = vmatprep.subr.mxu0 0.0
    %2945 = vmatpush1.msra.mxu0 0.0
    %2946 = vmatprep.subr.mxu0 0.0
    %2947 = vmatpush1.msra.mxu0 0.0
    %2948 = vmatprep.subr.mxu0 0.0
    %2949 = vmatpush1.msra.mxu0 0.0
    %2950 = vmatprep.subr.mxu0 0.0
    %2951 = vmatpush1.msra.mxu0 0.0
    %2952 = vmatprep.subr.mxu0 0.0
    %2953 = vmatpush1.msra.mxu0 0.0
    %2954 = vmatprep.subr.mxu0 0.0
    %2955 = vmatpush1.msra.mxu0 0.0
    %2956 = vmatprep.subr.mxu0 0.0
    %2957 = vmatpush1.msra.mxu0 0.0
    %2958 = vmatprep.subr.mxu0 0.0
    %2959 = vmatpush1.msra.mxu0 0.0
    %2960 = vmatprep.subr.mxu0 0.0
    %2961 = vmatpush1.msra.mxu0 0.0
    %2962 = vmatprep.subr.mxu0 0.0
    %2963 = vmatpush1.msra.mxu0 0.0
    %2964 = vmatprep.subr.mxu0 0.0
    %2965 = vmatpush1.msra.mxu0 0.0
    %2966 = vmatprep.subr.mxu0 0.0
    %2967 = vmatpush1.msra.mxu0 0.0
    %2968 = vmatprep.subr.mxu0 0.0
    %2969 = vmatpush1.msra.mxu0 0.0
    %2970 = vmatprep.subr.mxu0 0.0
    %2971 = vmatpush1.msra.mxu0 0.0
    %2972 = vmatprep.subr.mxu0 0.0
    %2973 = vmatpush1.msra.mxu0 0.0
    %2974 = vmatprep.subr.mxu0 0.0
    %2975 = vmatpush1.msra.mxu0 0.0
    %2976 = vmatprep.subr.mxu0 0.0
    %2977 = vmatpush1.msra.mxu0 0.0
    %2978 = vmatprep.subr.mxu0 0.0
    %2979 = vmatpush1.msra.mxu0 0.0
    %2980 = vmatprep.subr.mxu0 0.0
    %2981 = vmatpush1.msra.mxu0 0.0
    %2982 = vmatprep.subr.mxu0 0.0
    %2983 = vmatpush1.msra.mxu0 0.0
    %2984 = vmatprep.subr.mxu0 0.0
    %2985 = vmatpush1.msra.mxu0 0.0
    %2986 = vmatprep.subr.mxu0 0.0
    %2987 = vmatpush1.msra.mxu0 0.0
    %2988 = vmatprep.subr.mxu0 0.0
    %2989 = vmatpush1.msra.mxu0 0.0
    %2990 = vmatprep.subr.mxu0 0.0
    %2991 = vmatpush1.msra.mxu0 0.0
    %2992 = vmatprep.mubr.f32.mxu0 0.0
    %2993 = vmatmul.mubr.f32.gmra.mrb[0].mxu0 %v1948
    %v2994 = vpop.f32.mrb[0].mxu0
    %v2995 = vadd.f32 0.0, %v2994
    %v2996 = vpop.f32.mrb[0].mxu0
    %2997 = vmatprep.mubr.f32.mxu0 0.0
    %2998 = vmatmul.mubr.f32.gmra.mrb[0].mxu0 %v1951
    %v2999 = vpop.f32.mrb[0].mxu0
    %v3000 = vadd.f32 0.0, %v2999
    %v3001 = vpop.f32.mrb[0].mxu0
    %3002 = vmatprep.mubr.f32.mxu0 0.0
    %3003 = vmatmul.mubr.f32.gmra.mrb[0].mxu0 %v1954
    %v3004 = vpop.f32.mrb[0].mxu0
    %v3005 = vadd.f32 0.0, %v3004
    %v3006 = vpop.f32.mrb[0].mxu0
    %3007 = vmatprep.mubr.f32.mxu0 0.0
    %3008 = vmatmul.mubr.f32.gmra.mrb[0].mxu0 %v1957
    %v3009 = vpop.f32.mrb[0].mxu0
    %v3010 = vadd.f32 0.0, %v3009
    %v3011 = vpop.f32.mrb[0].mxu0
    %3012 = vdwg.mxu0
    %v3013 = vadd.f32 %v2906, %v2995
    %v3014 = vadd.f32 %v2911, %v3000
    %v3015 = vadd.f32 %v2916, %v3005
    %v3016 = vadd.f32 %v2921, %v3010
    %v3017 = vld [vmem:[%s12] sm:$0x1]
    %v3019 = vlaneseq
    %v3020 = vshrl.u32 %v3019, 7
    %v3021 = vsub.s32 0, %v3020
    %v3022 = vrot.slane %v3017, %v3021
    %v3024 = vadd.f32 %v3013, %v3022
    %v3025 = vadd.f32 %v3014, %v3022
    %v3026 = vadd.f32 %v3015, %v3022
    %v3027 = vadd.f32 %v3016, %v3022
    %v3028 = vld [vmem:[%s1290] sm:$0xff]
    %v3029 = vld [vmem:[%s1290 + $0x8] sm:$0xff]
    %v3030 = vld [vmem:[%s1290 + $0x10] sm:$0xff]
    %v3031 = vld [vmem:[%s1290 + $0x18] sm:$0xff]
    %v3032 = vld [vmem:[%s1295] sm:$0xff]
    %v3033 = vld [vmem:[%s1295 + $0x8] sm:$0xff]
    %v3034 = vld [vmem:[%s1295 + $0x10] sm:$0xff]
    %v3035 = vld [vmem:[%s1295 + $0x18] sm:$0xff]
    %3036 = vmatprep.subr.mxu0 0.0
    %3037 = vmatpush1.msra.mxu0 %v3032
    %3038 = vmatprep.subr.mxu0 0.0
    %3039 = vmatpush1.msra.mxu0 %v3033
    %3040 = vmatprep.subr.mxu0 0.0
    %3041 = vmatpush1.msra.mxu0 %v3034
    %3042 = vmatprep.subr.mxu0 0.0
    %3043 = vmatpush1.msra.mxu0 %v3035
    %3044 = vmatprep.subr.mxu0 0.0
    %3045 = vmatpush1.msra.mxu0 0.0
    %3046 = vmatprep.subr.mxu0 0.0
    %3047 = vmatpush1.msra.mxu0 0.0
    %3048 = vmatprep.subr.mxu0 0.0
    %3049 = vmatpush1.msra.mxu0 0.0
    %3050 = vmatprep.subr.mxu0 0.0
    %3051 = vmatpush1.msra.mxu0 0.0
    %3052 = vmatprep.subr.mxu0 0.0
    %3053 = vmatpush1.msra.mxu0 0.0
    %3054 = vmatprep.subr.mxu0 0.0
    %3055 = vmatpush1.msra.mxu0 0.0
    %3056 = vmatprep.subr.mxu0 0.0
    %3057 = vmatpush1.msra.mxu0 0.0
    %3058 = vmatprep.subr.mxu0 0.0
    %3059 = vmatpush1.msra.mxu0 0.0
    %3060 = vmatprep.subr.mxu0 0.0
    %3061 = vmatpush1.msra.mxu0 0.0
    %3062 = vmatprep.subr.mxu0 0.0
    %3063 = vmatpush1.msra.mxu0 0.0
    %3064 = vmatprep.subr.mxu0 0.0
    %3065 = vmatpush1.msra.mxu0 0.0
    %3066 = vmatprep.subr.mxu0 0.0
    %3067 = vmatpush1.msra.mxu0 0.0
    %3068 = vmatprep.subr.mxu0 0.0
    %3069 = vmatpush1.msra.mxu0 0.0
    %3070 = vmatprep.subr.mxu0 0.0
    %3071 = vmatpush1.msra.mxu0 0.0
    %3072 = vmatprep.subr.mxu0 0.0
    %3073 = vmatpush1.msra.mxu0 0.0
    %3074 = vmatprep.subr.mxu0 0.0
    %3075 = vmatpush1.msra.mxu0 0.0
    %3076 = vmatprep.subr.mxu0 0.0
    %3077 = vmatpush1.msra.mxu0 0.0
    %3078 = vmatprep.subr.mxu0 0.0
    %3079 = vmatpush1.msra.mxu0 0.0
    %3080 = vmatprep.subr.mxu0 0.0
    %3081 = vmatpush1.msra.mxu0 0.0
    %3082 = vmatprep.subr.mxu0 0.0
    %3083 = vmatpush1.msra.mxu0 0.0
    %3084 = vmatprep.subr.mxu0 0.0
    %3085 = vmatpush1.msra.mxu0 0.0
    %3086 = vmatprep.subr.mxu0 0.0
    %3087 = vmatpush1.msra.mxu0 0.0
    %3088 = vmatprep.subr.mxu0 0.0
    %3089 = vmatpush1.msra.mxu0 0.0
    %3090 = vmatprep.subr.mxu0 0.0
    %3091 = vmatpush1.msra.mxu0 0.0
    %3092 = vmatprep.subr.mxu0 0.0
    %3093 = vmatpush1.msra.mxu0 0.0
    %3094 = vmatprep.subr.mxu0 0.0
    %3095 = vmatpush1.msra.mxu0 0.0
    %3096 = vmatprep.subr.mxu0 0.0
    %3097 = vmatpush1.msra.mxu0 0.0
    %3098 = vmatprep.subr.mxu0 0.0
    %3099 = vmatpush1.msra.mxu0 0.0
    %3100 = vmatprep.mubr.f32.mxu0 0.0
    %3101 = vmatmul.mubr.f32.gmra.mrb[0].mxu0 %v2731
    %v3102 = vpop.f32.mrb[0].mxu0
    %v3103 = vadd.f32 0.0, %v3102
    %v3104 = vpop.f32.mrb[0].mxu0
    %3105 = vmatprep.mubr.f32.mxu0 0.0
    %3106 = vmatmul.mubr.f32.gmra.mrb[0].mxu0 %v2734
    %v3107 = vpop.f32.mrb[0].mxu0
    %v3108 = vadd.f32 0.0, %v3107
    %v3109 = vpop.f32.mrb[0].mxu0
    %3110 = vmatprep.mubr.f32.mxu0 0.0
    %3111 = vmatmul.mubr.f32.gmra.mrb[0].mxu0 %v2737
    %v3112 = vpop.f32.mrb[0].mxu0
    %v3113 = vadd.f32 0.0, %v3112
    %v3114 = vpop.f32.mrb[0].mxu0
    %3115 = vmatprep.mubr.f32.mxu0 0.0
    %3116 = vmatmul.mubr.f32.gmra.mrb[0].mxu0 %v2740
    %v3117 = vpop.f32.mrb[0].mxu0
    %v3118 = vadd.f32 0.0, %v3117
    %v3119 = vpop.f32.mrb[0].mxu0
    %3120 = vdwg.mxu0
    %3121 = vmatprep.subr.mxu0 0.0
    %3122 = vmatpush1.msra.mxu0 %v3028
    %3123 = vmatprep.subr.mxu0 0.0
    %3124 = vmatpush1.msra.mxu0 %v3029
    %3125 = vmatprep.subr.mxu0 0.0
    %3126 = vmatpush1.msra.mxu0 %v3030
    %3127 = vmatprep.subr.mxu0 0.0
    %3128 = vmatpush1.msra.mxu0 %v3031
    %3129 = vmatprep.subr.mxu0 0.0
    %3130 = vmatpush1.msra.mxu0 0.0
    %3131 = vmatprep.subr.mxu0 0.0
    %3132 = vmatpush1.msra.mxu0 0.0
    %3133 = vmatprep.subr.mxu0 0.0
    %3134 = vmatpush1.msra.mxu0 0.0
    %3135 = vmatprep.subr.mxu0 0.0
    %3136 = vmatpush1.msra.mxu0 0.0
    %3137 = vmatprep.subr.mxu0 0.0
    %3138 = vmatpush1.msra.mxu0 0.0
    %3139 = vmatprep.subr.mxu0 0.0
    %3140 = vmatpush1.msra.mxu0 0.0
    %3141 = vmatprep.subr.mxu0 0.0
    %3142 = vmatpush1.msra.mxu0 0.0
    %3143 = vmatprep.subr.mxu0 0.0
    %3144 = vmatpush1.msra.mxu0 0.0
    %3145 = vmatprep.subr.mxu0 0.0
    %3146 = vmatpush1.msra.mxu0 0.0
    %3147 = vmatprep.subr.mxu0 0.0
    %3148 = vmatpush1.msra.mxu0 0.0
    %3149 = vmatprep.subr.mxu0 0.0
    %3150 = vmatpush1.msra.mxu0 0.0
    %3151 = vmatprep.subr.mxu0 0.0
    %3152 = vmatpush1.msra.mxu0 0.0
    %3153 = vmatprep.subr.mxu0 0.0
    %3154 = vmatpush1.msra.mxu0 0.0
    %3155 = vmatprep.subr.mxu0 0.0
    %3156 = vmatpush1.msra.mxu0 0.0
    %3157 = vmatprep.subr.mxu0 0.0
    %3158 = vmatpush1.msra.mxu0 0.0
    %3159 = vmatprep.subr.mxu0 0.0
    %3160 = vmatpush1.msra.mxu0 0.0
    %3161 = vmatprep.subr.mxu0 0.0
    %3162 = vmatpush1.msra.mxu0 0.0
    %3163 = vmatprep.subr.mxu0 0.0
    %3164 = vmatpush1.msra.mxu0 0.0
    %3165 = vmatprep.subr.mxu0 0.0
    %3166 = vmatpush1.msra.mxu0 0.0
    %3167 = vmatprep.subr.mxu0 0.0
    %3168 = vmatpush1.msra.mxu0 0.0
    %3169 = vmatprep.subr.mxu0 0.0
    %3170 = vmatpush1.msra.mxu0 0.0
    %3171 = vmatprep.subr.mxu0 0.0
    %3172 = vmatpush1.msra.mxu0 0.0
    %3173 = vmatprep.subr.mxu0 0.0
    %3174 = vmatpush1.msra.mxu0 0.0
    %3175 = vmatprep.subr.mxu0 0.0
    %3176 = vmatpush1.msra.mxu0 0.0
    %3177 = vmatprep.subr.mxu0 0.0
    %3178 = vmatpush1.msra.mxu0 0.0
    %3179 = vmatprep.subr.mxu0 0.0
    %3180 = vmatpush1.msra.mxu0 0.0
    %3181 = vmatprep.subr.mxu0 0.0
    %3182 = vmatpush1.msra.mxu0 0.0
    %3183 = vmatprep.subr.mxu0 0.0
    %3184 = vmatpush1.msra.mxu0 0.0
    %3185 = vmatprep.mubr.f32.mxu0 0.0
    %3186 = vmatmul.mubr.f32.gmra.mrb[0].mxu0 %v2828
    %v3187 = vpop.f32.mrb[0].mxu0
    %v3188 = vadd.f32 %v3103, %v3187
    %v3189 = vpop.f32.mrb[0].mxu0
    %3190 = vmatprep.mubr.f32.mxu0 0.0
    %3191 = vmatmul.mubr.f32.gmra.mrb[0].mxu0 %v2831
    %v3192 = vpop.f32.mrb[0].mxu0
    %v3193 = vadd.f32 %v3108, %v3192
    %v3194 = vpop.f32.mrb[0].mxu0
    %3195 = vmatprep.mubr.f32.mxu0 0.0
    %3196 = vmatmul.mubr.f32.gmra.mrb[0].mxu0 %v2834
    %v3197 = vpop.f32.mrb[0].mxu0
    %v3198 = vadd.f32 %v3113, %v3197
    %v3199 = vpop.f32.mrb[0].mxu0
    %3200 = vmatprep.mubr.f32.mxu0 0.0
    %3201 = vmatmul.mubr.f32.gmra.mrb[0].mxu0 %v2837
    %v3202 = vpop.f32.mrb[0].mxu0
    %v3203 = vadd.f32 %v3118, %v3202
    %v3204 = vpop.f32.mrb[0].mxu0
    %3205 = vdwg.mxu0
    %v3206 = vld [vmem:[%s1470] sm:$0xff]
    %v3207 = vld [vmem:[%s1470 + $0x8] sm:$0xff]
    %v3208 = vld [vmem:[%s1470 + $0x10] sm:$0xff]
    %v3209 = vld [vmem:[%s1470 + $0x18] sm:$0xff]
    %3210 = vmatprep.subr.mxu0 0.0
    %3211 = vmatpush1.msra.mxu0 %v3206
    %3212 = vmatprep.subr.mxu0 0.0
    %3213 = vmatpush1.msra.mxu0 %v3207
    %3214 = vmatprep.subr.mxu0 0.0
    %3215 = vmatpush1.msra.mxu0 %v3208
    %3216 = vmatprep.subr.mxu0 0.0
    %3217 = vmatpush1.msra.mxu0 %v3209
    %3218 = vmatprep.subr.mxu0 0.0
    %3219 = vmatpush1.msra.mxu0 0.0
    %3220 = vmatprep.subr.mxu0 0.0
    %3221 = vmatpush1.msra.mxu0 0.0
    %3222 = vmatprep.subr.mxu0 0.0
    %3223 = vmatpush1.msra.mxu0 0.0
    %3224 = vmatprep.subr.mxu0 0.0
    %3225 = vmatpush1.msra.mxu0 0.0
    %3226 = vmatprep.subr.mxu0 0.0
    %3227 = vmatpush1.msra.mxu0 0.0
    %3228 = vmatprep.subr.mxu0 0.0
    %3229 = vmatpush1.msra.mxu0 0.0
    %3230 = vmatprep.subr.mxu0 0.0
    %3231 = vmatpush1.msra.mxu0 0.0
    %3232 = vmatprep.subr.mxu0 0.0
    %3233 = vmatpush1.msra.mxu0 0.0
    %3234 = vmatprep.subr.mxu0 0.0
    %3235 = vmatpush1.msra.mxu0 0.0
    %3236 = vmatprep.subr.mxu0 0.0
    %3237 = vmatpush1.msra.mxu0 0.0
    %3238 = vmatprep.subr.mxu0 0.0
    %3239 = vmatpush1.msra.mxu0 0.0
    %3240 = vmatprep.subr.mxu0 0.0
    %3241 = vmatpush1.msra.mxu0 0.0
    %3242 = vmatprep.subr.mxu0 0.0
    %3243 = vmatpush1.msra.mxu0 0.0
    %3244 = vmatprep.subr.mxu0 0.0
    %3245 = vmatpush1.msra.mxu0 0.0
    %3246 = vmatprep.subr.mxu0 0.0
    %3247 = vmatpush1.msra.mxu0 0.0
    %3248 = vmatprep.subr.mxu0 0.0
    %3249 = vmatpush1.msra.mxu0 0.0
    %3250 = vmatprep.subr.mxu0 0.0
    %3251 = vmatpush1.msra.mxu0 0.0
    %3252 = vmatprep.subr.mxu0 0.0
    %3253 = vmatpush1.msra.mxu0 0.0
    %3254 = vmatprep.subr.mxu0 0.0
    %3255 = vmatpush1.msra.mxu0 0.0
    %3256 = vmatprep.subr.mxu0 0.0
    %3257 = vmatpush1.msra.mxu0 0.0
    %3258 = vmatprep.subr.mxu0 0.0
    %3259 = vmatpush1.msra.mxu0 0.0
    %3260 = vmatprep.subr.mxu0 0.0
    %3261 = vmatpush1.msra.mxu0 0.0
    %3262 = vmatprep.subr.mxu0 0.0
    %3263 = vmatpush1.msra.mxu0 0.0
    %3264 = vmatprep.subr.mxu0 0.0
    %3265 = vmatpush1.msra.mxu0 0.0
    %3266 = vmatprep.subr.mxu0 0.0
    %3267 = vmatpush1.msra.mxu0 0.0
    %3268 = vmatprep.subr.mxu0 0.0
    %3269 = vmatpush1.msra.mxu0 0.0
    %3270 = vmatprep.subr.mxu0 0.0
    %3271 = vmatpush1.msra.mxu0 0.0
    %3272 = vmatprep.subr.mxu0 0.0
    %3273 = vmatpush1.msra.mxu0 0.0
    %3274 = vmatprep.mubr.f32.mxu0 0.0
    %3275 = vmatmul.mubr.f32.gmra.mrb[0].mxu0 %v1948
    %v3276 = vpop.f32.mrb[0].mxu0
    %v3277 = vadd.f32 0.0, %v3276
    %v3278 = vpop.f32.mrb[0].mxu0
    %3279 = vmatprep.mubr.f32.mxu0 0.0
    %3280 = vmatmul.mubr.f32.gmra.mrb[0].mxu0 %v1951
    %v3281 = vpop.f32.mrb[0].mxu0
    %v3282 = vadd.f32 0.0, %v3281
    %v3283 = vpop.f32.mrb[0].mxu0
    %3284 = vmatprep.mubr.f32.mxu0 0.0
    %3285 = vmatmul.mubr.f32.gmra.mrb[0].mxu0 %v1954
    %v3286 = vpop.f32.mrb[0].mxu0
    %v3287 = vadd.f32 0.0, %v3286
    %v3288 = vpop.f32.mrb[0].mxu0
    %3289 = vmatprep.mubr.f32.mxu0 0.0
    %3290 = vmatmul.mubr.f32.gmra.mrb[0].mxu0 %v1957
    %v3291 = vpop.f32.mrb[0].mxu0
    %v3292 = vadd.f32 0.0, %v3291
    %v3293 = vpop.f32.mrb[0].mxu0
    %3294 = vdwg.mxu0
    %v3295 = vadd.f32 %v3188, %v3277
    %v3296 = vadd.f32 %v3193, %v3282
    %v3297 = vadd.f32 %v3198, %v3287
    %v3298 = vadd.f32 %v3203, %v3292
    %v3299 = vld [vmem:[%s1564] sm:$0x1]
    %v3301 = vlaneseq
    %v3302 = vshrl.u32 %v3301, 7
    %v3303 = vsub.s32 0, %v3302
    %v3304 = vrot.slane %v3299, %v3303
    %v3306 = vadd.f32 %v3295, %v3304
    %v3307 = vadd.f32 %v3296, %v3304
    %v3308 = vadd.f32 %v3297, %v3304
    %v3309 = vadd.f32 %v3298, %v3304
    %v3310 = vld [vmem:[%s1576] sm:$0xff]
    %v3311 = vld [vmem:[%s1576 + $0x8] sm:$0xff]
    %v3312 = vld [vmem:[%s1576 + $0x10] sm:$0xff]
    %v3313 = vld [vmem:[%s1576 + $0x18] sm:$0xff]
    %v3314 = vld [vmem:[%s1581] sm:$0xff]
    %v3315 = vld [vmem:[%s1581 + $0x8] sm:$0xff]
    %v3316 = vld [vmem:[%s1581 + $0x10] sm:$0xff]
    %v3317 = vld [vmem:[%s1581 + $0x18] sm:$0xff]
    %3318 = vmatprep.subr.mxu0 0.0
    %3319 = vmatpush1.msra.mxu0 %v3314
    %3320 = vmatprep.subr.mxu0 0.0
    %3321 = vmatpush1.msra.mxu0 %v3315
    %3322 = vmatprep.subr.mxu0 0.0
    %3323 = vmatpush1.msra.mxu0 %v3316
    %3324 = vmatprep.subr.mxu0 0.0
    %3325 = vmatpush1.msra.mxu0 %v3317
    %3326 = vmatprep.subr.mxu0 0.0
    %3327 = vmatpush1.msra.mxu0 0.0
    %3328 = vmatprep.subr.mxu0 0.0
    %3329 = vmatpush1.msra.mxu0 0.0
    %3330 = vmatprep.subr.mxu0 0.0
    %3331 = vmatpush1.msra.mxu0 0.0
    %3332 = vmatprep.subr.mxu0 0.0
    %3333 = vmatpush1.msra.mxu0 0.0
    %3334 = vmatprep.subr.mxu0 0.0
    %3335 = vmatpush1.msra.mxu0 0.0
    %3336 = vmatprep.subr.mxu0 0.0
    %3337 = vmatpush1.msra.mxu0 0.0
    %3338 = vmatprep.subr.mxu0 0.0
    %3339 = vmatpush1.msra.mxu0 0.0
    %3340 = vmatprep.subr.mxu0 0.0
    %3341 = vmatpush1.msra.mxu0 0.0
    %3342 = vmatprep.subr.mxu0 0.0
    %3343 = vmatpush1.msra.mxu0 0.0
    %3344 = vmatprep.subr.mxu0 0.0
    %3345 = vmatpush1.msra.mxu0 0.0
    %3346 = vmatprep.subr.mxu0 0.0
    %3347 = vmatpush1.msra.mxu0 0.0
    %3348 = vmatprep.subr.mxu0 0.0
    %3349 = vmatpush1.msra.mxu0 0.0
    %3350 = vmatprep.subr.mxu0 0.0
    %3351 = vmatpush1.msra.mxu0 0.0
    %3352 = vmatprep.subr.mxu0 0.0
    %3353 = vmatpush1.msra.mxu0 0.0
    %3354 = vmatprep.subr.mxu0 0.0
    %3355 = vmatpush1.msra.mxu0 0.0
    %3356 = vmatprep.subr.mxu0 0.0
    %3357 = vmatpush1.msra.mxu0 0.0
    %3358 = vmatprep.subr.mxu0 0.0
    %3359 = vmatpush1.msra.mxu0 0.0
    %3360 = vmatprep.subr.mxu0 0.0
    %3361 = vmatpush1.msra.mxu0 0.0
    %3362 = vmatprep.subr.mxu0 0.0
    %3363 = vmatpush1.msra.mxu0 0.0
    %3364 = vmatprep.subr.mxu0 0.0
    %3365 = vmatpush1.msra.mxu0 0.0
    %3366 = vmatprep.subr.mxu0 0.0
    %3367 = vmatpush1.msra.mxu0 0.0
    %3368 = vmatprep.subr.mxu0 0.0
    %3369 = vmatpush1.msra.mxu0 0.0
    %3370 = vmatprep.subr.mxu0 0.0
    %3371 = vmatpush1.msra.mxu0 0.0
    %3372 = vmatprep.subr.mxu0 0.0
    %3373 = vmatpush1.msra.mxu0 0.0
    %3374 = vmatprep.subr.mxu0 0.0
    %3375 = vmatpush1.msra.mxu0 0.0
    %3376 = vmatprep.subr.mxu0 0.0
    %3377 = vmatpush1.msra.mxu0 0.0
    %3378 = vmatprep.subr.mxu0 0.0
    %3379 = vmatpush1.msra.mxu0 0.0
    %3380 = vmatprep.subr.mxu0 0.0
    %3381 = vmatpush1.msra.mxu0 0.0
    %3382 = vmatprep.mubr.f32.mxu0 0.0
    %3383 = vmatmul.mubr.f32.gmra.mrb[0].mxu0 %v2731
    %v3384 = vpop.f32.mrb[0].mxu0
    %v3385 = vadd.f32 0.0, %v3384
    %v3386 = vpop.f32.mrb[0].mxu0
    %3387 = vmatprep.mubr.f32.mxu0 0.0
    %3388 = vmatmul.mubr.f32.gmra.mrb[0].mxu0 %v2734
    %v3389 = vpop.f32.mrb[0].mxu0
    %v3390 = vadd.f32 0.0, %v3389
    %v3391 = vpop.f32.mrb[0].mxu0
    %3392 = vmatprep.mubr.f32.mxu0 0.0
    %3393 = vmatmul.mubr.f32.gmra.mrb[0].mxu0 %v2737
    %v3394 = vpop.f32.mrb[0].mxu0
    %v3395 = vadd.f32 0.0, %v3394
    %v3396 = vpop.f32.mrb[0].mxu0
    %3397 = vmatprep.mubr.f32.mxu0 0.0
    %3398 = vmatmul.mubr.f32.gmra.mrb[0].mxu0 %v2740
    %v3399 = vpop.f32.mrb[0].mxu0
    %v3400 = vadd.f32 0.0, %v3399
    %v3401 = vpop.f32.mrb[0].mxu0
    %3402 = vdwg.mxu0
    %3403 = vmatprep.subr.mxu0 0.0
    %3404 = vmatpush1.msra.mxu0 %v3310
    %3405 = vmatprep.subr.mxu0 0.0
    %3406 = vmatpush1.msra.mxu0 %v3311
    %3407 = vmatprep.subr.mxu0 0.0
    %3408 = vmatpush1.msra.mxu0 %v3312
    %3409 = vmatprep.subr.mxu0 0.0
    %3410 = vmatpush1.msra.mxu0 %v3313
    %3411 = vmatprep.subr.mxu0 0.0
    %3412 = vmatpush1.msra.mxu0 0.0
    %3413 = vmatprep.subr.mxu0 0.0
    %3414 = vmatpush1.msra.mxu0 0.0
    %3415 = vmatprep.subr.mxu0 0.0
    %3416 = vmatpush1.msra.mxu0 0.0
    %3417 = vmatprep.subr.mxu0 0.0
    %3418 = vmatpush1.msra.mxu0 0.0
    %3419 = vmatprep.subr.mxu0 0.0
    %3420 = vmatpush1.msra.mxu0 0.0
    %3421 = vmatprep.subr.mxu0 0.0
    %3422 = vmatpush1.msra.mxu0 0.0
    %3423 = vmatprep.subr.mxu0 0.0
    %3424 = vmatpush1.msra.mxu0 0.0
    %3425 = vmatprep.subr.mxu0 0.0
    %3426 = vmatpush1.msra.mxu0 0.0
    %3427 = vmatprep.subr.mxu0 0.0
    %3428 = vmatpush1.msra.mxu0 0.0
    %3429 = vmatprep.subr.mxu0 0.0
    %3430 = vmatpush1.msra.mxu0 0.0
    %3431 = vmatprep.subr.mxu0 0.0
    %3432 = vmatpush1.msra.mxu0 0.0
    %3433 = vmatprep.subr.mxu0 0.0
    %3434 = vmatpush1.msra.mxu0 0.0
    %3435 = vmatprep.subr.mxu0 0.0
    %3436 = vmatpush1.msra.mxu0 0.0
    %3437 = vmatprep.subr.mxu0 0.0
    %3438 = vmatpush1.msra.mxu0 0.0
    %3439 = vmatprep.subr.mxu0 0.0
    %3440 = vmatpush1.msra.mxu0 0.0
    %3441 = vmatprep.subr.mxu0 0.0
    %3442 = vmatpush1.msra.mxu0 0.0
    %3443 = vmatprep.subr.mxu0 0.0
    %3444 = vmatpush1.msra.mxu0 0.0
    %3445 = vmatprep.subr.mxu0 0.0
    %3446 = vmatpush1.msra.mxu0 0.0
    %3447 = vmatprep.subr.mxu0 0.0
    %3448 = vmatpush1.msra.mxu0 0.0
    %3449 = vmatprep.subr.mxu0 0.0
    %3450 = vmatpush1.msra.mxu0 0.0
    %3451 = vmatprep.subr.mxu0 0.0
    %3452 = vmatpush1.msra.mxu0 0.0
    %3453 = vmatprep.subr.mxu0 0.0
    %3454 = vmatpush1.msra.mxu0 0.0
    %3455 = vmatprep.subr.mxu0 0.0
    %3456 = vmatpush1.msra.mxu0 0.0
    %3457 = vmatprep.subr.mxu0 0.0
    %3458 = vmatpush1.msra.mxu0 0.0
    %3459 = vmatprep.subr.mxu0 0.0
    %3460 = vmatpush1.msra.mxu0 0.0
    %3461 = vmatprep.subr.mxu0 0.0
    %3462 = vmatpush1.msra.mxu0 0.0
    %3463 = vmatprep.subr.mxu0 0.0
    %3464 = vmatpush1.msra.mxu0 0.0
    %3465 = vmatprep.subr.mxu0 0.0
    %3466 = vmatpush1.msra.mxu0 0.0
    %3467 = vmatprep.mubr.f32.mxu0 0.0
    %3468 = vmatmul.mubr.f32.gmra.mrb[0].mxu0 %v2828
    %v3469 = vpop.f32.mrb[0].mxu0
    %v3470 = vadd.f32 %v3385, %v3469
    %v3471 = vpop.f32.mrb[0].mxu0
    %3472 = vmatprep.mubr.f32.mxu0 0.0
    %3473 = vmatmul.mubr.f32.gmra.mrb[0].mxu0 %v2831
    %v3474 = vpop.f32.mrb[0].mxu0
    %v3475 = vadd.f32 %v3390, %v3474
    %v3476 = vpop.f32.mrb[0].mxu0
    %3477 = vmatprep.mubr.f32.mxu0 0.0
    %3478 = vmatmul.mubr.f32.gmra.mrb[0].mxu0 %v2834
    %v3479 = vpop.f32.mrb[0].mxu0
    %v3480 = vadd.f32 %v3395, %v3479
    %v3481 = vpop.f32.mrb[0].mxu0
    %3482 = vmatprep.mubr.f32.mxu0 0.0
    %3483 = vmatmul.mubr.f32.gmra.mrb[0].mxu0 %v2837
    %v3484 = vpop.f32.mrb[0].mxu0
    %v3485 = vadd.f32 %v3400, %v3484
    %v3486 = vpop.f32.mrb[0].mxu0
    %3487 = vdwg.mxu0
    %v3488 = vld [vmem:[%s13] sm:$0x1]
    %v3490 = vlaneseq
    %v3491 = vshrl.u32 %v3490, 7
    %v3492 = vsub.s32 0, %v3491
    %v3493 = vrot.slane %v3488, %v3492
    %v3495 = vadd.f32 %v3470, %v3493
    %v3496 = vadd.f32 %v3475, %v3493
    %v3497 = vadd.f32 %v3480, %v3493
    %v3498 = vadd.f32 %v3485, %v3493
    %v3499 = vld [vmem:[%s1767] sm:$0xff]
    %v3500 = vld [vmem:[%s1767 + $0x8] sm:$0xff]
    %v3501 = vld [vmem:[%s1767 + $0x10] sm:$0xff]
    %v3502 = vld [vmem:[%s1767 + $0x18] sm:$0xff]
    %v3503 = vld [vmem:[%s14] sm:$0x1]
    %v3505 = vlaneseq
    %v3506 = vshrl.u32 %v3505, 7
    %v3507 = vsub.s32 0, %v3506
    %v3508 = vrot.slane %v3503, %v3507
    %3510 = vmatprep.subr.mxu0 0.0
    %3511 = vmatpush1.msra.mxu0 %v3499
    %3512 = vmatprep.subr.mxu0 0.0
    %3513 = vmatpush1.msra.mxu0 %v3500
    %3514 = vmatprep.subr.mxu0 0.0
    %3515 = vmatpush1.msra.mxu0 %v3501
    %3516 = vmatprep.subr.mxu0 0.0
    %3517 = vmatpush1.msra.mxu0 %v3502
    %3518 = vmatprep.subr.mxu0 0.0
    %3519 = vmatpush1.msra.mxu0 0.0
    %3520 = vmatprep.subr.mxu0 0.0
    %3521 = vmatpush1.msra.mxu0 0.0
    %3522 = vmatprep.subr.mxu0 0.0
    %3523 = vmatpush1.msra.mxu0 0.0
    %3524 = vmatprep.subr.mxu0 0.0
    %3525 = vmatpush1.msra.mxu0 0.0
    %3526 = vmatprep.subr.mxu0 0.0
    %3527 = vmatpush1.msra.mxu0 0.0
    %3528 = vmatprep.subr.mxu0 0.0
    %3529 = vmatpush1.msra.mxu0 0.0
    %3530 = vmatprep.subr.mxu0 0.0
    %3531 = vmatpush1.msra.mxu0 0.0
    %3532 = vmatprep.subr.mxu0 0.0
    %3533 = vmatpush1.msra.mxu0 0.0
    %3534 = vmatprep.subr.mxu0 0.0
    %3535 = vmatpush1.msra.mxu0 0.0
    %3536 = vmatprep.subr.mxu0 0.0
    %3537 = vmatpush1.msra.mxu0 0.0
    %3538 = vmatprep.subr.mxu0 0.0
    %3539 = vmatpush1.msra.mxu0 0.0
    %3540 = vmatprep.subr.mxu0 0.0
    %3541 = vmatpush1.msra.mxu0 0.0
    %3542 = vmatprep.subr.mxu0 0.0
    %3543 = vmatpush1.msra.mxu0 0.0
    %3544 = vmatprep.subr.mxu0 0.0
    %3545 = vmatpush1.msra.mxu0 0.0
    %3546 = vmatprep.subr.mxu0 0.0
    %3547 = vmatpush1.msra.mxu0 0.0
    %3548 = vmatprep.subr.mxu0 0.0
    %3549 = vmatpush1.msra.mxu0 0.0
    %3550 = vmatprep.subr.mxu0 0.0
    %3551 = vmatpush1.msra.mxu0 0.0
    %3552 = vmatprep.subr.mxu0 0.0
    %3553 = vmatpush1.msra.mxu0 0.0
    %3554 = vmatprep.subr.mxu0 0.0
    %3555 = vmatpush1.msra.mxu0 0.0
    %3556 = vmatprep.subr.mxu0 0.0
    %3557 = vmatpush1.msra.mxu0 0.0
    %3558 = vmatprep.subr.mxu0 0.0
    %3559 = vmatpush1.msra.mxu0 0.0
    %3560 = vmatprep.subr.mxu0 0.0
    %3561 = vmatpush1.msra.mxu0 0.0
    %3562 = vmatprep.subr.mxu0 0.0
    %3563 = vmatpush1.msra.mxu0 0.0
    %3564 = vmatprep.subr.mxu0 0.0
    %3565 = vmatpush1.msra.mxu0 0.0
    %3566 = vmatprep.subr.mxu0 0.0
    %3567 = vmatpush1.msra.mxu0 0.0
    %3568 = vmatprep.subr.mxu0 0.0
    %3569 = vmatpush1.msra.mxu0 0.0
    %3570 = vmatprep.subr.mxu0 0.0
    %3571 = vmatpush1.msra.mxu0 0.0
    %3572 = vmatprep.subr.mxu0 0.0
    %3573 = vmatpush1.msra.mxu0 0.0
    %3574 = vmatprep.mubr.f32.mxu0 0.0
    %3575 = vmatmul.mubr.f32.gmra.mrb[0].mxu0 %v1948
    %v3576 = vpop.f32.mrb[0].mxu0
    %v3577 = vadd.f32 %v3508, %v3576
    %v3578 = vpop.f32.mrb[0].mxu0
    %3579 = vmatprep.mubr.f32.mxu0 0.0
    %3580 = vmatmul.mubr.f32.gmra.mrb[0].mxu0 %v1951
    %v3581 = vpop.f32.mrb[0].mxu0
    %v3582 = vadd.f32 %v3508, %v3581
    %v3583 = vpop.f32.mrb[0].mxu0
    %3584 = vmatprep.mubr.f32.mxu0 0.0
    %3585 = vmatmul.mubr.f32.gmra.mrb[0].mxu0 %v1954
    %v3586 = vpop.f32.mrb[0].mxu0
    %v3587 = vadd.f32 %v3508, %v3586
    %v3588 = vpop.f32.mrb[0].mxu0
    %3589 = vmatprep.mubr.f32.mxu0 0.0
    %3590 = vmatmul.mubr.f32.gmra.mrb[0].mxu0 %v1957
    %v3591 = vpop.f32.mrb[0].mxu0
    %v3592 = vadd.f32 %v3508, %v3591
    %v3593 = vpop.f32.mrb[0].mxu0
    %3594 = vdwg.mxu0
    %v3595 = vxor.u32 %v3024, 2147483648
    %v3596 = vxor.u32 %v3025, 2147483648
    %v3597 = vxor.u32 %v3026, 2147483648
    %v3598 = vxor.u32 %v3027, 2147483648
    %v3599 = vmul.f32 %v3595, 1.442695
    %v3600 = vpow.pop %v3599
    %v3601 = vmul.f32 %v3596, 1.442695
    %v3602 = vpow.pop %v3601
    %v3603 = vmul.f32 %v3597, 1.442695
    %v3604 = vpow.pop %v3603
    %v3605 = vmul.f32 %v3598, 1.442695
    %v3606 = vpow.pop %v3605
    %v3607 = vadd.f32 %v3600, 1.0
    %v3608 = vadd.f32 %v3602, 1.0
    %v3609 = vadd.f32 %v3604, 1.0
    %v3610 = vadd.f32 %v3606, 1.0
    %v3611 = vrcp.pop %v3607
    %v3612 = vmul.f32 1.0, %v3611
    %v3613 = vrcp.pop %v3608
    %v3614 = vmul.f32 1.0, %v3613
    %v3615 = vrcp.pop %v3609
    %v3616 = vmul.f32 1.0, %v3615
    %v3617 = vrcp.pop %v3610
    %v3618 = vmul.f32 1.0, %v3617
    %v3619 = vxor.u32 %v3306, 2147483648
    %v3620 = vxor.u32 %v3307, 2147483648
    %v3621 = vxor.u32 %v3308, 2147483648
    %v3622 = vxor.u32 %v3309, 2147483648
    %v3623 = vmul.f32 %v3619, 1.442695
    %v3624 = vpow.pop %v3623
    %v3625 = vmul.f32 %v3620, 1.442695
    %v3626 = vpow.pop %v3625
    %v3627 = vmul.f32 %v3621, 1.442695
    %v3628 = vpow.pop %v3627
    %v3629 = vmul.f32 %v3622, 1.442695
    %v3630 = vpow.pop %v3629
    %v3631 = vadd.f32 %v3624, 1.0
    %v3632 = vadd.f32 %v3626, 1.0
    %v3633 = vadd.f32 %v3628, 1.0
    %v3634 = vadd.f32 %v3630, 1.0
    %v3635 = vrcp.pop %v3631
    %v3636 = vmul.f32 1.0, %v3635
    %v3637 = vrcp.pop %v3632
    %v3638 = vmul.f32 1.0, %v3637
    %v3639 = vrcp.pop %v3633
    %v3640 = vmul.f32 1.0, %v3639
    %v3641 = vrcp.pop %v3634
    %v3642 = vmul.f32 1.0, %v3641
    %v3643 = vmul.f32 %v3612, %v3577
    %v3644 = vmul.f32 %v3614, %v3582
    %v3645 = vmul.f32 %v3616, %v3587
    %v3646 = vmul.f32 %v3618, %v3592
    %v3647 = vadd.f32 %v3495, %v3643
    %v3648 = vadd.f32 %v3496, %v3644
    %v3649 = vadd.f32 %v3497, %v3645
    %v3650 = vadd.f32 %v3498, %v3646
    %v3651 = vtanh.pop %v3647
    %v3652 = vtanh.pop %v3648
    %v3653 = vtanh.pop %v3649
    %v3654 = vtanh.pop %v3650
    %v3655 = vsub.f32 %v1932, %v3651
    %v3656 = vsub.f32 %v1933, %v3652
    %v3657 = vsub.f32 %v1934, %v3653
    %v3658 = vsub.f32 %v1935, %v3654
    %v3659 = vmul.f32 %v3636, %v3655
    %v3660 = vmul.f32 %v3638, %v3656
    %v3661 = vmul.f32 %v3640, %v3657
    %v3662 = vmul.f32 %v3642, %v3658
    %v3663 = vadd.f32 %v3651, %v3659
    %v3664 = vadd.f32 %v3652, %v3660
    %v3665 = vadd.f32 %v3653, %v3661
    %v3666 = vadd.f32 %v3654, %v3662
    %3667 = vst.msk [vmem:[#allocation16] sm:$0xff] %vm183, %v3663
    %3668 = vst.msk [vmem:[#allocation16 + $0x8] sm:$0xff] %vm183, %v3664
    %3669 = vst.msk [vmem:[#allocation16 + $0x10] sm:$0xff] %vm183, %v3665
    %3670 = vst.msk [vmem:[#allocation16 + $0x18] sm:$0xff] %vm183, %v3666
    // Predicated region
    $region94: #{tpu_custom_call.1} parent=1 // pred_check
      _
    $region95: #{tpu_custom_call.1} parent=1 // pred_check_branch
      %3672 = sbr.rel (0) target = $region97
    $region96: #{tpu_custom_call.1} parent=1 // pred_region
      %s3674 = ssub.s32 512, 512
      %3675 = vsyncadd [#allocation4], %s3674
      %s3676 = sshll.u32 [#allocation16], 4
      %s3677 = int_to_ptr.vmem [resolvable:$true] %s3676
      %3682 = dma.vmem_to_hbm [thread:$0]  %s3677, 512, %s15, [#allocation4], 128, 128, 8
    $region97: #{tpu_custom_call.1} parent=1 // pred_fallthru
      _
    // Predicated region
    $region98: #{tpu_custom_call.1} parent=1 // pred_check
      _
    $region99: #{tpu_custom_call.1} parent=1 // pred_check_branch
      %3684 = sbr.rel (0) target = $region101
    $region100: #{tpu_custom_call.1} parent=1 // pred_region
      %3685 = dma.done [#allocation4], 512
    $region101: #{tpu_custom_call.1} parent=1 // pred_fallthru
      _
    %3686 = vsyncpa [#allocation3], 1
    %3687 = vsyncpa [#allocation6], 1
    %3688 = vsyncpa [#allocation9], 1
    %3689 = vsyncpa [#allocation12], 1
    %3690 = vsyncpa [#allocation15], 1
    %3691 = vsyncpa [#allocation4], 1

</llo_original>
